<compile_context>
chip_gen: v5e
topology: v5e:2x2
jax: 0.10.0
libtpu: 0.0.40
codegen_flags: <defaults>
</compile_context>

<pallas_src>
import math

import jax
import jax.numpy as jnp
from jax.experimental import pallas as pl
from jax.experimental.pallas import tpu as pltpu


# ----------------------------------------------------------------------------
# Small helpers
# ----------------------------------------------------------------------------
def _round_up(n, m):
    return (n + m - 1) // m * m


def _row_tile(n, max_tile=512):
    """Pick a row-tile (multiple of 8) and a padded row count divisible by it."""
    rt = min(max_tile, _round_up(n, 8))
    return rt, _round_up(n, rt)


# ----------------------------------------------------------------------------
# Pallas kernels
# ----------------------------------------------------------------------------
def _linear_kernel(x_ref, w_ref, b_ref, o_ref):
    """Row-tiled dense layer: out = x @ w + b (used for the hoisted x@Wih)."""
    o_ref[...] = (jnp.dot(x_ref[...], w_ref[...],
                          preferred_element_type=jnp.float32) + b_ref[...])


def _char_cnn_kernel(x_ref, m_ref, w_ref, b_ref, out_ref):
    """Char encoder: im2col width-3 conv as ONE matmul + ReLU + masked max-pool."""
    # x: (Nt, L, 3C)  m: (Nt, L, 1)  w: (3C, Hc)  b: (1, Hc)  out: (Nt, Hc)
    h = jax.lax.dot_general(x_ref[...], w_ref[...],
                            dimension_numbers=(((2,), (0,)), ((), ())),
                            preferred_element_type=jnp.float32)
    h = jax.nn.relu(h + b_ref[...])                        # (Nt, L, Hc)
    hm = h - (1.0 - m_ref[...]) * 1e10                     # mask invalid chars
    out_ref[...] = jnp.max(hm, axis=1)                     # (Nt, Hc)


def _lstm_kernel(gx_ref, m_ref, whh_ref, hseq_ref, h_scr, c_scr):
    """Recurrent-only BiLSTM over one time chunk.

    Both directions are batched along a leading direction axis (backward
    direction's inputs are pre-reversed in time by the wrapper).  The input
    projection x @ Wih + b is precomputed, so each step is only
    h_prev @ Whh + elementwise.  Gate order i, f, g, o (PyTorch).
    """
    @pl.when(pl.program_id(0) == 0)
    def _():
        h_scr[...] = jnp.zeros_like(h_scr)
        c_scr[...] = jnp.zeros_like(c_scr)

    H = h_scr.shape[-1]
    whh = whh_ref[...]                                     # (2, H, 4H), hoisted
    tc = gx_ref.shape[0]

    for t in range(tc):                                    # static unroll (tc <= 8)
        gx_t = gx_ref[t]                                   # (2, B, 4H)
        m_t = m_ref[t]                                     # (2, B, 1)
        h_prev = h_scr[...]
        c_prev = c_scr[...]

        gates = gx_t + jax.lax.dot_general(
            h_prev, whh,
            dimension_numbers=(((2,), (1,)), ((0,), (0,))),
            preferred_element_type=jnp.float32)            # (2, B, 4H)

        i = jax.nn.sigmoid(gates[..., 0 * H:1 * H])
        f = jax.nn.sigmoid(gates[..., 1 * H:2 * H])
        g = jnp.tanh(gates[..., 2 * H:3 * H])
        o = jax.nn.sigmoid(gates[..., 3 * H:4 * H])

        c_new = f * c_prev + i * g
        h_new = o * jnp.tanh(c_new)

        # pack_padded_sequence semantics: only advance state on valid tokens.
        valid = m_t > 0.0
        c_scr[...] = jnp.where(valid, c_new, c_prev)
        h_scr[...] = jnp.where(valid, h_new, h_prev)
        # pad_packed_sequence semantics: padded outputs are zero.
        hseq_ref[t] = h_scr[...] * m_t


def _head_kernel(hid_ref, m_ref, hsse_ref, w1tok_ref, w1sent_ref, w1sse_ref,
                 b1_ref, w2_ref, b2_ref, out_ref):
    """Fused subj+obj heads for one batch element.

    Masked max-pool (sentence_rep) is computed in-kernel; the sentence_rep /
    h_ss / h_se contributions enter as a per-batch bias row (row-block
    decomposition of W1), so no concatenated features are materialized.
    Output columns: [subj_start, subj_end, obj_start, obj_end].
    """
    hid = hid_ref[0]                                       # (T, 2H)
    m = m_ref[0]                                           # (T, 1)

    sent = jnp.max(hid - (1.0 - m) * 1e10, axis=0, keepdims=True)   # (1, 2H)
    bias = (jnp.dot(sent, w1sent_ref[...], preferred_element_type=jnp.float32)
            + jnp.dot(hsse_ref[0], w1sse_ref[...], preferred_element_type=jnp.float32)
            + b1_ref[...])                                 # (1, 4H)

    h1 = jax.nn.relu(jnp.dot(hid, w1tok_ref[...],
                             preferred_element_type=jnp.float32) + bias)   # (T, 4H)
    out_ref[0] = (jnp.dot(h1, w2_ref[...],
                          preferred_element_type=jnp.float32) + b2_ref[...])  # (T, 4)


# ----------------------------------------------------------------------------
# Kernel wrappers
# ----------------------------------------------------------------------------
def row_linear(x, w, b, max_tile=512):
    """out = x @ w + b, tiled over rows of x."""
    n, d = x.shape
    f = w.shape[1]
    rt, n_pad = _row_tile(n, max_tile)
    if n_pad != n:
        x = jnp.pad(x, ((0, n_pad - n), (0, 0)))
    out = pl.pallas_call(
        _linear_kernel,
        out_shape=jax.ShapeDtypeStruct((n_pad, f), jnp.float32),
        grid_spec=pltpu.PrefetchScalarGridSpec(
            num_scalar_prefetch=0,
            grid=(n_pad // rt,),
            in_specs=[pl.BlockSpec((rt, d), lambda i: (i, 0)),
                      pl.BlockSpec((d, f), lambda i: (0, 0)),
                      pl.BlockSpec((1, f), lambda i: (0, 0))],
            out_specs=pl.BlockSpec((rt, f), lambda i: (i, 0)),
        ),
        compiler_params=pltpu.CompilerParams(dimension_semantics=("parallel",)),
    )(x.astype(jnp.float32), w, b)
    return out[:n]


def char_encode(char_x, char_mask, w_flat, b, max_tile=256):
    """char_x (N, L, C) -> (N, Hc) via width-3 conv (im2col) + ReLU + masked max."""
    n, L, c = char_x.shape
    hc = w_flat.shape[1]
    x_pad = jnp.pad(char_x, ((0, 0), (1, 1), (0, 0)))              # "same" padding
    patches = jnp.concatenate([x_pad[:, k:k + L, :] for k in range(3)], axis=2)

    rt, n_pad = _row_tile(n, max_tile)
    if n_pad != n:
        patches = jnp.pad(patches, ((0, n_pad - n), (0, 0), (0, 0)))
        char_mask = jnp.pad(char_mask, ((0, n_pad - n), (0, 0)))

    out = pl.pallas_call(
        _char_cnn_kernel,
        out_shape=jax.ShapeDtypeStruct((n_pad, hc), jnp.float32),
        grid_spec=pltpu.PrefetchScalarGridSpec(
            num_scalar_prefetch=0,
            grid=(n_pad // rt,),
            in_specs=[pl.BlockSpec((rt, L, 3 * c), lambda i: (i, 0, 0)),
                      pl.BlockSpec((rt, L, 1), lambda i: (i, 0, 0)),
                      pl.BlockSpec((3 * c, hc), lambda i: (0, 0)),
                      pl.BlockSpec((1, hc), lambda i: (0, 0))],
            out_specs=pl.BlockSpec((rt, hc), lambda i: (i, 0)),
        ),
        compiler_params=pltpu.CompilerParams(dimension_semantics=("parallel",)),
    )(patches.astype(jnp.float32),
      char_mask.reshape(n_pad, L, 1).astype(jnp.float32),
      w_flat, b)
    return out[:n]


def bilstm_layer(x_tbd, mask_tb1, p_fwd, p_bwd, hidden_dim, time_chunk=8):
    """One bidirectional LSTM layer. x_tbd (T, B, D) -> (T, B, 2H)."""
    T, B, D = x_tbd.shape
    H = hidden_dim

    # Hoisted input projection for BOTH directions in one large matmul.
    wih_cat = jnp.concatenate([p_fwd['wih'], p_bwd['wih']], axis=1)      # (D, 8H)
    b_cat = jnp.concatenate([p_fwd['b'], p_bwd['b']], axis=1)            # (1, 8H)
    gx_all = row_linear(x_tbd.reshape(T * B, D), wih_cat, b_cat)         # (T*B, 8H)
    gx_all = gx_all.reshape(T, B, 8 * H)

    gx_f = gx_all[:, :, :4 * H]
    gx_b = gx_all[:, :, 4 * H:][::-1]                                    # time-reversed
    gx = jnp.stack([gx_f, gx_b], axis=1)                                 # (T, 2, B, 4H)
    m = jnp.stack([mask_tb1, mask_tb1[::-1]], axis=1)                    # (T, 2, B, 1)
    whh = jnp.stack([p_fwd['whh'], p_bwd['whh']], axis=0)                # (2, H, 4H)

    tc = min(time_chunk, T)
    Tp = _round_up(T, tc)
    if Tp != T:   # zero-gx / zero-mask padding: state frozen, outputs zero, sliced off
        gx = jnp.pad(gx, ((0, Tp - T), (0, 0), (0, 0), (0, 0)))
        m = jnp.pad(m, ((0, Tp - T), (0, 0), (0, 0), (0, 0)))

    hseq = pl.pallas_call(
        _lstm_kernel,
        out_shape=jax.ShapeDtypeStruct((Tp, 2, B, H), jnp.float32),
        grid_spec=pltpu.PrefetchScalarGridSpec(
            num_scalar_prefetch=0,
            grid=(Tp // tc,),
            in_specs=[
                pl.BlockSpec((tc, 2, B, 4 * H), lambda i: (i, 0, 0, 0)),
                pl.BlockSpec((tc, 2, B, 1), lambda i: (i, 0, 0, 0)),
                pl.BlockSpec((2, H, 4 * H), lambda i: (0, 0, 0)),
            ],
            out_specs=pl.BlockSpec((tc, 2, B, H), lambda i: (i, 0, 0, 0)),
            scratch_shapes=[pltpu.VMEM((2, B, H), jnp.float32),
                            pltpu.VMEM((2, B, H), jnp.float32)],
        ),
        compiler_params=pltpu.CompilerParams(dimension_semantics=("arbitrary",)),
    )(gx, m, whh)

    hseq = hseq[:T]                                                      # (T, 2, B, H)
    h_f = hseq[:, 0]
    h_b = hseq[:, 1][::-1]                                               # un-reverse
    return jnp.concatenate([h_f, h_b], axis=-1)                          # (T, B, 2H)


def fused_heads(hidden, mask, h_ss, h_se, subj_p, obj_p):
    """Fused subj/obj heads with row-block decomposition of W1."""
    B, T, H2 = hidden.shape                                              # H2 = 2H

    w1s = subj_p['w1']                                                   # (4H, 2H)
    w1o = obj_p['w1']                                                    # (8H, 2H)
    w1s_tok, w1s_sent = w1s[:H2], w1s[H2:]
    w1o_tok = w1o[:H2]
    w1o_sent = w1o[H2:2 * H2]
    w1o_ss = w1o[2 * H2:3 * H2]
    w1o_se = w1o[3 * H2:]

    w1_tok = jnp.concatenate([w1s_tok, w1o_tok], axis=1)                 # (2H, 4H)
    w1_sent = jnp.concatenate([w1s_sent, w1o_sent], axis=1)              # (2H, 4H)
    w1_sse = jnp.concatenate(
        [jnp.zeros((2 * H2, H2), jnp.float32),
         jnp.concatenate([w1o_ss, w1o_se], axis=0)], axis=1)             # (4H, 4H)
    b1 = jnp.concatenate([subj_p['b1'], obj_p['b1']], axis=1)            # (1, 4H)
    w2 = jnp.concatenate(
        [jnp.concatenate([subj_p['w2'], jnp.zeros((H2, 2), jnp.float32)], axis=1),
         jnp.concatenate([jnp.zeros((H2, 2), jnp.float32), obj_p['w2']], axis=1)],
        axis=0)                                                          # (4H, 4) block-diag
    b2 = jnp.concatenate([subj_p['b2'], obj_p['b2']], axis=1)            # (1, 4)

    hsse = jnp.concatenate([h_ss, h_se], axis=1).reshape(B, 1, 2 * H2)   # (B, 1, 4H)
    m = mask.reshape(B, T, 1).astype(jnp.float32)

    return pl.pallas_call(
        _head_kernel,
        out_shape=jax.ShapeDtypeStruct((B, T, 4), jnp.float32),
        grid_spec=pltpu.PrefetchScalarGridSpec(
            num_scalar_prefetch=0,
            grid=(B,),
            in_specs=[
                pl.BlockSpec((1, T, H2), lambda b: (b, 0, 0)),
                pl.BlockSpec((1, T, 1), lambda b: (b, 0, 0)),
                pl.BlockSpec((1, 1, 2 * H2), lambda b: (b, 0, 0)),
                pl.BlockSpec((H2, 2 * H2), lambda b: (0, 0)),
                pl.BlockSpec((H2, 2 * H2), lambda b: (0, 0)),
                pl.BlockSpec((2 * H2, 2 * H2), lambda b: (0, 0)),
                pl.BlockSpec((1, 2 * H2), lambda b: (0, 0)),
                pl.BlockSpec((2 * H2, 4), lambda b: (0, 0)),
                pl.BlockSpec((1, 4), lambda b: (0, 0)),
            ],
            out_specs=pl.BlockSpec((1, T, 4), lambda b: (b, 0, 0)),
        ),
        compiler_params=pltpu.CompilerParams(dimension_semantics=("parallel",)),
    )(hidden, m, hsse, w1_tok, w1_sent, w1_sse, b1, w2, b2)


# ----------------------------------------------------------------------------
# Model: parameters + forward
# ----------------------------------------------------------------------------
def init_params(key, opt):
    H = opt['hidden_dim']
    input_size = opt['word_emb_dim'] + opt['char_hidden_dim'] + opt['pos_emb_dim']
    keys = iter(jax.random.split(key, 64))

    def unif(k, shape, scale):
        return jax.random.uniform(k, shape, jnp.float32, -scale, scale)

    p = {}
    we = unif(next(keys), (opt['word_vocab_size'], opt['word_emb_dim']), 1.0)
    p['word_emb'] = we.at[0].set(0.0)                       # padding_idx=0
    ce = unif(next(keys), (opt['char_vocab_size'], opt['char_emb_dim']), 1.0)
    p['char_emb'] = ce.at[0].set(0.0)
    pe = unif(next(keys), (opt['pos_size'], opt['pos_emb_dim']), 1.0)
    p['pos_emb'] = pe.at[0].set(0.0)

    cc = 1.0 / math.sqrt(3 * opt['char_emb_dim'])
    p['char_conv_w'] = unif(next(keys), (3, opt['char_emb_dim'], opt['char_hidden_dim']), cc)
    p['char_conv_b'] = unif(next(keys), (1, opt['char_hidden_dim']), cc)

    s = 1.0 / math.sqrt(H)
    lstm = []
    for layer_idx in range(opt['num_layers']):
        D = input_size if layer_idx == 0 else 2 * H
        layer = {}
        for direction in ('fwd', 'bwd'):
            layer[direction] = {
                'wih': unif(next(keys), (D, 4 * H), s),
                'whh': unif(next(keys), (H, 4 * H), s),
                # bias_ih + bias_hh combined
                'b': unif(next(keys), (1, 4 * H), s) + unif(next(keys), (1, 4 * H), s),
            }
        lstm.append(layer)
    p['lstm'] = lstm

    def head(k, fin, fmid):
        k1, k2, k3, k4 = jax.random.split(k, 4)
        s1, s2 = 1.0 / math.sqrt(fin), 1.0 / math.sqrt(fmid)
        return {'w1': unif(k1, (fin, fmid), s1), 'b1': unif(k2, (1, fmid), s1),
                'w2': unif(k3, (fmid, 2), s2), 'b2': unif(k4, (1, 2), s2)}

    p['subj'] = head(next(keys), 4 * H, 2 * H)
    p['obj'] = head(next(keys), 8 * H, 2 * H)
    return p


def bilstm_cnn_forward(params, opt, inputs, mask,
                       nearest_subj_position_for_each_token,
                       distance_to_nearest_subj, distance_to_subj,
                       nearest_obj_start_position_for_each_token,
                       distance_to_nearest_obj_start):
    # TODO(synk): nearest-position / distance features feed the unspecified
    # SubjTypeModel/ObjBaseModel internals; accepted but unused here.
    words, chars, pos_tags, subj_start_position, subj_end_position = inputs
    B, T = words.shape
    H = opt['hidden_dim']
    Hc = opt['char_hidden_dim']
    CLEN = chars.shape[-1]

    # --- based_encoder -------------------------------------------------------
    # embedding gathers = glue; dropout is identity (eval mode).
    word_x = jnp.take(params['word_emb'], words, axis=0)                 # (B,T,We)
    pos_x = jnp.take(params['pos_emb'], pos_tags, axis=0)                # (B,T,Pe)

    chars_flat = chars.reshape(B * T, CLEN)
    char_x = jnp.take(params['char_emb'], chars_flat, axis=0)            # (B*T,L,Ce)
    chars_mask = (chars_flat > 0).astype(jnp.float32)
    wc_flat = params['char_conv_w'].reshape(3 * opt['char_emb_dim'], Hc)
    char_h = char_encode(char_x, chars_mask, wc_flat, params['char_conv_b'])
    # Gate by token mask: output-invariant (padded positions are masked later)
    # but avoids feeding ~-1e10 max-pool values of all-pad tokens into the LSTM.
    char_h = char_h.reshape(B, T, Hc) * mask[..., None]

    x = jnp.concatenate([word_x, char_h, pos_x], axis=2).astype(jnp.float32)

    # BiLSTM (time-major, both directions in one kernel, chunked time grid)
    h_tbd = jnp.transpose(x, (1, 0, 2))                                  # (T,B,D)
    mask_tb1 = jnp.transpose(mask, (1, 0)).reshape(T, B, 1).astype(jnp.float32)
    for layer in params['lstm']:
        h_tbd = bilstm_layer(h_tbd, mask_tb1, layer['fwd'], layer['bwd'], H)
    hidden = jnp.transpose(h_tbd, (1, 0, 2))                             # (B,T,2H)

    # --- fused subj / obj heads (sentence_rep computed in-kernel) ------------
    h_ss = hidden[jnp.arange(B), subj_start_position]                    # (B,2H)
    h_se = hidden[jnp.arange(B), subj_end_position]                      # (B,2H)
    logits = fused_heads(hidden, mask, h_ss, h_se, params['subj'], params['obj'])

    return (logits[:, :, 0], logits[:, :, 1], logits[:, :, 2], logits[:, :, 3])


# ----------------------------------------------------------------------------
# Main
# ----------------------------------------------------------------------------
if __name__ == "__main__":
    opt = {
        'word_vocab_size': 100, 'word_emb_dim': 32,
        'char_vocab_size': 40, 'char_emb_dim': 16, 'char_hidden_dim': 16,
        'pos_size': 10, 'pos_emb_dim': 16,
        'hidden_dim': 32, 'num_layers': 1, 'dropout': 0.0,
    }
    B, T, CLEN = 2, 8, 15

    params = init_params(jax.random.PRNGKey(0), opt)

    kw, kc, kp = jax.random.split(jax.random.PRNGKey(0), 3)
    seq_lens = jnp.array([8, 6], dtype=jnp.int32)                        # sorted desc
    pos_ids = jnp.arange(T)[None, :]
    mask = (pos_ids < seq_lens[:, None]).astype(jnp.float32)             # (B,T)
    mask_i = mask.astype(jnp.int32)

    words = jax.random.randint(kw, (B, T), 1, opt['word_vocab_size'], jnp.int32) * mask_i
    pos_tags = jax.random.randint(kp, (B, T), 1, opt['pos_size'], jnp.int32) * mask_i
    chars = jax.random.randint(kc, (B, T, CLEN), 1, opt['char_vocab_size'], jnp.int32)
    char_valid = (jnp.arange(CLEN)[None, None, :] < 7).astype(jnp.int32)
    chars = chars * char_valid * mask_i[:, :, None]

    subj_start_position = jnp.array([1, 0], dtype=jnp.int32)
    subj_end_position = jnp.array([2, 1], dtype=jnp.int32)
    dummy = jnp.zeros((B, T), dtype=jnp.int32)

    @jax.jit
    def run(params, inputs, mask):
        return bilstm_cnn_forward(params, opt, inputs, mask,
                                  dummy, dummy, dummy, dummy, dummy)

    outs = run(params,
               (words, chars, pos_tags, subj_start_position, subj_end_position),
               mask)

    for o in outs:
        jax.block_until_ready(o)
    assert all(o.shape == (B, T) for o in outs)
    assert all(bool(jnp.all(jnp.isfinite(o))) for o in outs)
    print("KERNEL_OK")
</pallas_src>

<mosaic_0001>
module attributes {stable_mosaic.version = 11 : i64} {
  func.func @_char_cnn_kernel(%arg0: i32, %arg1: memref<16x15x48xf32, #tpu.memory_space<vmem>>, %arg2: memref<16x15x1xf32, #tpu.memory_space<vmem>>, %arg3: memref<48x16xf32, #tpu.memory_space<vmem>>, %arg4: memref<1x16xf32, #tpu.memory_space<vmem>>, %arg5: memref<16x16xf32, #tpu.memory_space<vmem>>) attributes {dimension_semantics = [#tpu.dimension_semantics<parallel>], iteration_bounds = array<i64: 1>, scalar_prefetch = 0 : i64, scratch_operands = 0 : i64, tpu.core_type = #tpu.core_type<tc>, window_params = [{transform_indices = @transform_0, window_bounds = array<i64: 16, 15, 48>}, {transform_indices = @transform_1, window_bounds = array<i64: 16, 15, 1>}, {pipeline_mode = #tpu.pipeline_mode<synchronous>, transform_indices = @transform_2, window_bounds = array<i64: 48, 16>}, {pipeline_mode = #tpu.pipeline_mode<synchronous>, transform_indices = @transform_3, window_bounds = array<i64: 1, 16>}, {transform_indices = @transform_4, window_bounds = array<i64: 16, 16>}]} {
    %c0 = arith.constant 0 : index
    %c0_0 = arith.constant 0 : index
    %c0_1 = arith.constant 0 : index
    %0 = vector.load %arg1[%c0, %c0_0, %c0_1] : memref<16x15x48xf32, #tpu.memory_space<vmem>>, vector<16x15x48xf32>
    %c0_2 = arith.constant 0 : index
    %c0_3 = arith.constant 0 : index
    %1 = vector.load %arg3[%c0_2, %c0_3] : memref<48x16xf32, #tpu.memory_space<vmem>>, vector<48x16xf32>
    %cst = arith.constant dense<0.000000e+00> : vector<16x15x16xf32>
    %2 = tpu.matmul %0, %1, %cst {dimension_numbers = #tpu.dot_dimension_numbers<[2], [0], [0, 1], [1], [0, 0, 0, 1, 1, 1], [], []>} : vector<16x15x48xf32>, vector<48x16xf32>, vector<16x15x16xf32> -> vector<16x15x16xf32>
    %c0_4 = arith.constant 0 : index
    %c0_5 = arith.constant 0 : index
    %3 = vector.load %arg4[%c0_4, %c0_5] : memref<1x16xf32, #tpu.memory_space<vmem>>, vector<1x16xf32>
    %4 = vector.shape_cast %3 : vector<1x16xf32> to vector<1x1x16xf32>
    %5 = vector.broadcast %4 : vector<1x1x16xf32> to vector<16x15x16xf32>
    %6 = arith.addf %2, %5 : vector<16x15x16xf32>
    %cst_6 = arith.constant 0.000000e+00 : f32
    %7 = vector.broadcast %cst_6 : f32 to vector<16x15x16xf32>
    %8 = arith.maximumf %6, %7 : vector<16x15x16xf32>
    %c0_7 = arith.constant 0 : index
    %c0_8 = arith.constant 0 : index
    %c0_9 = arith.constant 0 : index
    %9 = vector.load %arg2[%c0_7, %c0_8, %c0_9] : memref<16x15x1xf32, #tpu.memory_space<vmem>>, vector<16x15x1xf32>
    %cst_10 = arith.constant 1.000000e+00 : f32
    %10 = vector.broadcast %cst_10 : f32 to vector<16x15x1xf32>
    %11 = arith.subf %10, %9 : vector<16x15x1xf32>
    %cst_11 = arith.constant 1.000000e+10 : f32
    %12 = vector.broadcast %cst_11 : f32 to vector<16x15x1xf32>
    %13 = arith.mulf %11, %12 : vector<16x15x1xf32>
    %14 = vector.broadcast %13 : vector<16x15x1xf32> to vector<16x15x16xf32>
    %15 = arith.subf %8, %14 : vector<16x15x16xf32>
    %cst_12 = arith.constant dense<0xFF800000> : vector<16x16xf32>
    %16 = vector.multi_reduction <maximumf>, %15, %cst_12 [1] : vector<16x15x16xf32> to vector<16x16xf32>
    %c0_13 = arith.constant 0 : index
    %c0_14 = arith.constant 0 : index
    %17 = vector.load %arg5[%c0_13, %c0_14] : memref<16x16xf32, #tpu.memory_space<vmem>>, vector<16x16xf32>
    tpu.vector_store %arg5[%c0_13, %c0_14], %16 {strides = array<i32>} : memref<16x16xf32, #tpu.memory_space<vmem>>, vector<16x16xf32>,
    return
  }
  func.func @transform_0(%arg0: i32) -> (i32, i32, i32) {
    %c0_i32 = arith.constant 0 : i32
    %c0_i32_0 = arith.constant 0 : i32
    %c0_i32_1 = arith.constant 0 : i32
    return %arg0, %c0_i32, %c0_i32_0 : i32, i32, i32
  }
  func.func @transform_1(%arg0: i32) -> (i32, i32, i32) {
    %c0_i32 = arith.constant 0 : i32
    %c0_i32_0 = arith.constant 0 : i32
    %c0_i32_1 = arith.constant 0 : i32
    return %arg0, %c0_i32, %c0_i32_0 : i32, i32, i32
  }
  func.func @transform_2(%arg0: i32) -> (i32, i32) {
    %c0_i32 = arith.constant 0 : i32
    %c0_i32_0 = arith.constant 0 : i32
    %c0_i32_1 = arith.constant 0 : i32
    return %c0_i32, %c0_i32_0 : i32, i32
  }
  func.func @transform_3(%arg0: i32) -> (i32, i32) {
    %c0_i32 = arith.constant 0 : i32
    %c0_i32_0 = arith.constant 0 : i32
    %c0_i32_1 = arith.constant 0 : i32
    return %c0_i32, %c0_i32_0 : i32, i32
  }
  func.func @transform_4(%arg0: i32) -> (i32, i32) {
    %c0_i32 = arith.constant 0 : i32
    %c0_i32_0 = arith.constant 0 : i32
    return %arg0, %c0_i32 : i32, i32
  }
}

module attributes {stable_mosaic.version = 11 : i64} {
  func.func @_linear_kernel(%arg0: i32, %arg1: memref<16x64xf32, #tpu.memory_space<vmem>>, %arg2: memref<64x256xf32, #tpu.memory_space<vmem>>, %arg3: memref<1x256xf32, #tpu.memory_space<vmem>>, %arg4: memref<16x256xf32, #tpu.memory_space<vmem>>) attributes {dimension_semantics = [#tpu.dimension_semantics<parallel>], iteration_bounds = array<i64: 1>, scalar_prefetch = 0 : i64, scratch_operands = 0 : i64, tpu.core_type = #tpu.core_type<tc>, window_params = [{transform_indices = @transform_0, window_bounds = array<i64: 16, 64>}, {pipeline_mode = #tpu.pipeline_mode<synchronous>, transform_indices = @transform_1, window_bounds = array<i64: 64, 256>}, {pipeline_mode = #tpu.pipeline_mode<synchronous>, transform_indices = @transform_2, window_bounds = array<i64: 1, 256>}, {transform_indices = @transform_3, window_bounds = array<i64: 16, 256>}]} {
    %c0 = arith.constant 0 : index
    %c0_0 = arith.constant 0 : index
    %0 = vector.load %arg1[%c0, %c0_0] : memref<16x64xf32, #tpu.memory_space<vmem>>, vector<16x64xf32>
    %c0_1 = arith.constant 0 : index
    %c0_2 = arith.constant 0 : index
    %1 = vector.load %arg2[%c0_1, %c0_2] : memref<64x256xf32, #tpu.memory_space<vmem>>, vector<64x256xf32>
    %cst = arith.constant dense<0.000000e+00> : vector<16x256xf32>
    %2 = tpu.matmul %0, %1, %cst {dimension_numbers = #tpu.dot_dimension_numbers<[1], [0], [0], [1], [0, 0, 1, 1], [], []>} : vector<16x64xf32>, vector<64x256xf32>, vector<16x256xf32> -> vector<16x256xf32>
    %c0_3 = arith.constant 0 : index
    %c0_4 = arith.constant 0 : index
    %3 = vector.load %arg3[%c0_3, %c0_4] : memref<1x256xf32, #tpu.memory_space<vmem>>, vector<1x256xf32>
    %4 = vector.broadcast %3 : vector<1x256xf32> to vector<16x256xf32>
    %5 = arith.addf %2, %4 : vector<16x256xf32>
    %c0_5 = arith.constant 0 : index
    %c0_6 = arith.constant 0 : index
    %6 = vector.load %arg4[%c0_5, %c0_6] : memref<16x256xf32, #tpu.memory_space<vmem>>, vector<16x256xf32>
    tpu.vector_store %arg4[%c0_5, %c0_6], %5 {strides = array<i32>} : memref<16x256xf32, #tpu.memory_space<vmem>>, vector<16x256xf32>,
    return
  }
  func.func @transform_0(%arg0: i32) -> (i32, i32) {
    %c0_i32 = arith.constant 0 : i32
    %c0_i32_0 = arith.constant 0 : i32
    return %arg0, %c0_i32 : i32, i32
  }
  func.func @transform_1(%arg0: i32) -> (i32, i32) {
    %c0_i32 = arith.constant 0 : i32
    %c0_i32_0 = arith.constant 0 : i32
    %c0_i32_1 = arith.constant 0 : i32
    return %c0_i32, %c0_i32_0 : i32, i32
  }
  func.func @transform_2(%arg0: i32) -> (i32, i32) {
    %c0_i32 = arith.constant 0 : i32
    %c0_i32_0 = arith.constant 0 : i32
    %c0_i32_1 = arith.constant 0 : i32
    return %c0_i32, %c0_i32_0 : i32, i32
  }
  func.func @transform_3(%arg0: i32) -> (i32, i32) {
    %c0_i32 = arith.constant 0 : i32
    %c0_i32_0 = arith.constant 0 : i32
    return %arg0, %c0_i32 : i32, i32
  }
}

module attributes {stable_mosaic.version = 11 : i64} {
  func.func @_lstm_kernel(%arg0: i32, %arg1: memref<8x2x2x128xf32, #tpu.memory_space<vmem>>, %arg2: memref<8x2x2x1xf32, #tpu.memory_space<vmem>>, %arg3: memref<2x32x128xf32, #tpu.memory_space<vmem>>, %arg4: memref<8x2x2x32xf32, #tpu.memory_space<vmem>>, %arg5: memref<2x2x32xf32, #tpu.memory_space<vmem>>, %arg6: memref<2x2x32xf32, #tpu.memory_space<vmem>>) attributes {dimension_semantics = [#tpu.dimension_semantics<arbitrary>], iteration_bounds = array<i64: 1>, scalar_prefetch = 0 : i64, scratch_operands = 2 : i64, tpu.core_type = #tpu.core_type<tc>, window_params = [{transform_indices = @transform_0, window_bounds = array<i64: 8, 2, 2, 128>}, {transform_indices = @transform_1, window_bounds = array<i64: 8, 2, 2, 1>}, {pipeline_mode = #tpu.pipeline_mode<synchronous>, transform_indices = @transform_2, window_bounds = array<i64: 2, 32, 128>}, {transform_indices = @transform_3, window_bounds = array<i64: 8, 2, 2, 32>}]} {
    %c0_i32 = arith.constant 0 : i32
    %0 = arith.cmpi eq, %arg0, %c0_i32 : i32
    %1 = arith.extui %0 : i1 to i32
    %c0_i32_0 = arith.constant 0 : i32
    %2 = arith.cmpi ne, %1, %c0_i32_0 : i32
    scf.if %2 {
      %cst_251 = arith.constant 0.000000e+00 : f32
      %396 = vector.broadcast %cst_251 : f32 to vector<2x2x32xf32>
      %c0_252 = arith.constant 0 : index
      %c0_253 = arith.constant 0 : index
      %c0_254 = arith.constant 0 : index
      %397 = vector.load %arg5[%c0_252, %c0_253, %c0_254] : memref<2x2x32xf32, #tpu.memory_space<vmem>>, vector<2x2x32xf32>
      tpu.vector_store %arg5[%c0_252, %c0_253, %c0_254], %396 {strides = array<i32>} : memref<2x2x32xf32, #tpu.memory_space<vmem>>, vector<2x2x32xf32>,
      %cst_255 = arith.constant 0.000000e+00 : f32
      %398 = vector.broadcast %cst_255 : f32 to vector<2x2x32xf32>
      %c0_256 = arith.constant 0 : index
      %c0_257 = arith.constant 0 : index
      %c0_258 = arith.constant 0 : index
      %399 = vector.load %arg6[%c0_256, %c0_257, %c0_258] : memref<2x2x32xf32, #tpu.memory_space<vmem>>, vector<2x2x32xf32>
      tpu.vector_store %arg6[%c0_256, %c0_257, %c0_258], %398 {strides = array<i32>} : memref<2x2x32xf32, #tpu.memory_space<vmem>>, vector<2x2x32xf32>,
    } else {
    }
    %c0 = arith.constant 0 : index
    %c0_1 = arith.constant 0 : index
    %c0_2 = arith.constant 0 : index
    %3 = vector.load %arg3[%c0, %c0_1, %c0_2] : memref<2x32x128xf32, #tpu.memory_space<vmem>>, vector<2x32x128xf32>
    %c0_3 = arith.constant 0 : index
    %c0_4 = arith.constant 0 : index
    %c0_5 = arith.constant 0 : index
    %c0_6 = arith.constant 0 : index
    %4 = vector.load %arg1[%c0_3, %c0_4, %c0_5, %c0_6] : memref<8x2x2x128xf32, #tpu.memory_space<vmem>>, vector<1x2x2x128xf32>
    %5 = vector.shape_cast %4 : vector<1x2x2x128xf32> to vector<2x2x128xf32>
    %c0_7 = arith.constant 0 : index
    %c0_8 = arith.constant 0 : index
    %c0_9 = arith.constant 0 : index
    %c0_10 = arith.constant 0 : index
    %6 = vector.load %arg2[%c0_7, %c0_8, %c0_9, %c0_10] : memref<8x2x2x1xf32, #tpu.memory_space<vmem>>, vector<1x2x2x1xf32>
    %7 = vector.shape_cast %6 : vector<1x2x2x1xf32> to vector<2x2x1xf32>
    %c0_11 = arith.constant 0 : index
    %c0_12 = arith.constant 0 : index
    %c0_13 = arith.constant 0 : index
    %8 = vector.load %arg5[%c0_11, %c0_12, %c0_13] : memref<2x2x32xf32, #tpu.memory_space<vmem>>, vector<2x2x32xf32>
    %c0_14 = arith.constant 0 : index
    %c0_15 = arith.constant 0 : index
    %c0_16 = arith.constant 0 : index
    %9 = vector.load %arg6[%c0_14, %c0_15, %c0_16] : memref<2x2x32xf32, #tpu.memory_space<vmem>>, vector<2x2x32xf32>
    %cst = arith.constant dense<0.000000e+00> : vector<2x2x128xf32>
    %10 = tpu.matmul %8, %3, %cst {dimension_numbers = #tpu.dot_dimension_numbers<[2], [1], [1], [2], [0, 0, 0, 1, 1, 2], [0], [0]>} : vector<2x2x32xf32>, vector<2x32x128xf32>, vector<2x2x128xf32> -> vector<2x2x128xf32>
    %11 = arith.addf %5, %10 : vector<2x2x128xf32>
    %12 = vector.extract_strided_slice %11 {offsets = [0, 0, 0], sizes = [2, 2, 32], strides = [1, 1, 1]} : vector<2x2x128xf32> to vector<2x2x32xf32>
    %13 = arith.negf %12 : vector<2x2x32xf32>
    %14 = math.exp %13 : vector<2x2x32xf32>
    %cst_17 = arith.constant 1.000000e+00 : f32
    %15 = vector.broadcast %cst_17 : f32 to vector<2x2x32xf32>
    %16 = arith.addf %15, %14 : vector<2x2x32xf32>
    %17 = arith.divf %15, %16 : vector<2x2x32xf32>
    %18 = vector.extract_strided_slice %11 {offsets = [0, 0, 32], sizes = [2, 2, 32], strides = [1, 1, 1]} : vector<2x2x128xf32> to vector<2x2x32xf32>
    %19 = arith.negf %18 : vector<2x2x32xf32>
    %20 = math.exp %19 : vector<2x2x32xf32>
    %cst_18 = arith.constant 1.000000e+00 : f32
    %21 = vector.broadcast %cst_18 : f32 to vector<2x2x32xf32>
    %22 = arith.addf %21, %20 : vector<2x2x32xf32>
    %23 = arith.divf %21, %22 : vector<2x2x32xf32>
    %24 = vector.extract_strided_slice %11 {offsets = [0, 0, 64], sizes = [2, 2, 32], strides = [1, 1, 1]} : vector<2x2x128xf32> to vector<2x2x32xf32>
    %25 = math.tanh %24 : vector<2x2x32xf32>
    %26 = vector.extract_strided_slice %11 {offsets = [0, 0, 96], sizes = [2, 2, 32], strides = [1, 1, 1]} : vector<2x2x128xf32> to vector<2x2x32xf32>
    %27 = arith.negf %26 : vector<2x2x32xf32>
    %28 = math.exp %27 : vector<2x2x32xf32>
    %cst_19 = arith.constant 1.000000e+00 : f32
    %29 = vector.broadcast %cst_19 : f32 to vector<2x2x32xf32>
    %30 = arith.addf %29, %28 : vector<2x2x32xf32>
    %31 = arith.divf %29, %30 : vector<2x2x32xf32>
    %32 = arith.mulf %23, %9 : vector<2x2x32xf32>
    %33 = arith.mulf %17, %25 : vector<2x2x32xf32>
    %34 = arith.addf %32, %33 : vector<2x2x32xf32>
    %35 = math.tanh %34 : vector<2x2x32xf32>
    %36 = arith.mulf %31, %35 : vector<2x2x32xf32>
    %cst_20 = arith.constant 0.000000e+00 : f32
    %37 = vector.broadcast %cst_20 : f32 to vector<2x2x1xf32>
    %38 = arith.cmpf ogt, %7, %37 : vector<2x2x1xf32>
    %39 = vector.shape_cast %38 : vector<2x2x1xi1> to vector<2x2x1xi1>
    %40 = vector.broadcast %39 : vector<2x2x1xi1> to vector<2x2x32xi1>
    %41 = arith.select %40, %34, %9 : vector<2x2x32xi1>, vector<2x2x32xf32>
    %c0_21 = arith.constant 0 : index
    %c0_22 = arith.constant 0 : index
    %c0_23 = arith.constant 0 : index
    %42 = vector.load %arg6[%c0_21, %c0_22, %c0_23] : memref<2x2x32xf32, #tpu.memory_space<vmem>>, vector<2x2x32xf32>
    tpu.vector_store %arg6[%c0_21, %c0_22, %c0_23], %41 {strides = array<i32>} : memref<2x2x32xf32, #tpu.memory_space<vmem>>, vector<2x2x32xf32>,
    %43 = vector.shape_cast %38 : vector<2x2x1xi1> to vector<2x2x1xi1>
    %44 = vector.broadcast %43 : vector<2x2x1xi1> to vector<2x2x32xi1>
    %45 = arith.select %44, %36, %8 : vector<2x2x32xi1>, vector<2x2x32xf32>
    %c0_24 = arith.constant 0 : index
    %c0_25 = arith.constant 0 : index
    %c0_26 = arith.constant 0 : index
    %46 = vector.load %arg5[%c0_24, %c0_25, %c0_26] : memref<2x2x32xf32, #tpu.memory_space<vmem>>, vector<2x2x32xf32>
    tpu.vector_store %arg5[%c0_24, %c0_25, %c0_26], %45 {strides = array<i32>} : memref<2x2x32xf32, #tpu.memory_space<vmem>>, vector<2x2x32xf32>,
    %c0_27 = arith.constant 0 : index
    %c0_28 = arith.constant 0 : index
    %c0_29 = arith.constant 0 : index
    %47 = vector.load %arg5[%c0_27, %c0_28, %c0_29] : memref<2x2x32xf32, #tpu.memory_space<vmem>>, vector<2x2x32xf32>
    %48 = vector.broadcast %7 : vector<2x2x1xf32> to vector<2x2x32xf32>
    %49 = arith.mulf %47, %48 : vector<2x2x32xf32>
    %c0_30 = arith.constant 0 : index
    %c0_31 = arith.constant 0 : index
    %c0_32 = arith.constant 0 : index
    %c0_33 = arith.constant 0 : index
    %50 = vector.load %arg4[%c0_30, %c0_31, %c0_32, %c0_33] : memref<8x2x2x32xf32, #tpu.memory_space<vmem>>, vector<1x2x2x32xf32>
    %51 = vector.shape_cast %50 : vector<1x2x2x32xf32> to vector<2x2x32xf32>
    %52 = vector.shape_cast %49 : vector<2x2x32xf32> to vector<1x2x2x32xf32>
    tpu.vector_store %arg4[%c0_30, %c0_31, %c0_32, %c0_33], %52 {strides = array<i32>} : memref<8x2x2x32xf32, #tpu.memory_space<vmem>>, vector<1x2x2x32xf32>,
    %c1 = arith.constant 1 : index
    %c0_34 = arith.constant 0 : index
    %c0_35 = arith.constant 0 : index
    %c0_36 = arith.constant 0 : index
    %53 = vector.load %arg1[%c1, %c0_34, %c0_35, %c0_36] : memref<8x2x2x128xf32, #tpu.memory_space<vmem>>, vector<1x2x2x128xf32>
    %54 = vector.shape_cast %53 : vector<1x2x2x128xf32> to vector<2x2x128xf32>
    %c1_37 = arith.constant 1 : index
    %c0_38 = arith.constant 0 : index
    %c0_39 = arith.constant 0 : index
    %c0_40 = arith.constant 0 : index
    %55 = vector.load %arg2[%c1_37, %c0_38, %c0_39, %c0_40] : memref<8x2x2x1xf32, #tpu.memory_space<vmem>>, vector<1x2x2x1xf32>
    %56 = vector.shape_cast %55 : vector<1x2x2x1xf32> to vector<2x2x1xf32>
    %c0_41 = arith.constant 0 : index
    %c0_42 = arith.constant 0 : index
    %c0_43 = arith.constant 0 : index
    %57 = vector.load %arg5[%c0_41, %c0_42, %c0_43] : memref<2x2x32xf32, #tpu.memory_space<vmem>>, vector<2x2x32xf32>
    %c0_44 = arith.constant 0 : index
    %c0_45 = arith.constant 0 : index
    %c0_46 = arith.constant 0 : index
    %58 = vector.load %arg6[%c0_44, %c0_45, %c0_46] : memref<2x2x32xf32, #tpu.memory_space<vmem>>, vector<2x2x32xf32>
    %cst_47 = arith.constant dense<0.000000e+00> : vector<2x2x128xf32>
    %59 = tpu.matmul %57, %3, %cst_47 {dimension_numbers = #tpu.dot_dimension_numbers<[2], [1], [1], [2], [0, 0, 0, 1, 1, 2], [0], [0]>} : vector<2x2x32xf32>, vector<2x32x128xf32>, vector<2x2x128xf32> -> vector<2x2x128xf32>
    %60 = arith.addf %54, %59 : vector<2x2x128xf32>
    %61 = vector.extract_strided_slice %60 {offsets = [0, 0, 0], sizes = [2, 2, 32], strides = [1, 1, 1]} : vector<2x2x128xf32> to vector<2x2x32xf32>
    %62 = arith.negf %61 : vector<2x2x32xf32>
    %63 = math.exp %62 : vector<2x2x32xf32>
    %cst_48 = arith.constant 1.000000e+00 : f32
    %64 = vector.broadcast %cst_48 : f32 to vector<2x2x32xf32>
    %65 = arith.addf %64, %63 : vector<2x2x32xf32>
    %66 = arith.divf %64, %65 : vector<2x2x32xf32>
    %67 = vector.extract_strided_slice %60 {offsets = [0, 0, 32], sizes = [2, 2, 32], strides = [1, 1, 1]} : vector<2x2x128xf32> to vector<2x2x32xf32>
    %68 = arith.negf %67 : vector<2x2x32xf32>
    %69 = math.exp %68 : vector<2x2x32xf32>
    %cst_49 = arith.constant 1.000000e+00 : f32
    %70 = vector.broadcast %cst_49 : f32 to vector<2x2x32xf32>
    %71 = arith.addf %70, %69 : vector<2x2x32xf32>
    %72 = arith.divf %70, %71 : vector<2x2x32xf32>
    %73 = vector.extract_strided_slice %60 {offsets = [0, 0, 64], sizes = [2, 2, 32], strides = [1, 1, 1]} : vector<2x2x128xf32> to vector<2x2x32xf32>
    %74 = math.tanh %73 : vector<2x2x32xf32>
    %75 = vector.extract_strided_slice %60 {offsets = [0, 0, 96], sizes = [2, 2, 32], strides = [1, 1, 1]} : vector<2x2x128xf32> to vector<2x2x32xf32>
    %76 = arith.negf %75 : vector<2x2x32xf32>
    %77 = math.exp %76 : vector<2x2x32xf32>
    %cst_50 = arith.constant 1.000000e+00 : f32
    %78 = vector.broadcast %cst_50 : f32 to vector<2x2x32xf32>
    %79 = arith.addf %78, %77 : vector<2x2x32xf32>
    %80 = arith.divf %78, %79 : vector<2x2x32xf32>
    %81 = arith.mulf %72, %58 : vector<2x2x32xf32>
    %82 = arith.mulf %66, %74 : vector<2x2x32xf32>
    %83 = arith.addf %81, %82 : vector<2x2x32xf32>
    %84 = math.tanh %83 : vector<2x2x32xf32>
    %85 = arith.mulf %80, %84 : vector<2x2x32xf32>
    %cst_51 = arith.constant 0.000000e+00 : f32
    %86 = vector.broadcast %cst_51 : f32 to vector<2x2x1xf32>
    %87 = arith.cmpf ogt, %56, %86 : vector<2x2x1xf32>
    %88 = vector.shape_cast %87 : vector<2x2x1xi1> to vector<2x2x1xi1>
    %89 = vector.broadcast %88 : vector<2x2x1xi1> to vector<2x2x32xi1>
    %90 = arith.select %89, %83, %58 : vector<2x2x32xi1>, vector<2x2x32xf32>
    %c0_52 = arith.constant 0 : index
    %c0_53 = arith.constant 0 : index
    %c0_54 = arith.constant 0 : index
    %91 = vector.load %arg6[%c0_52, %c0_53, %c0_54] : memref<2x2x32xf32, #tpu.memory_space<vmem>>, vector<2x2x32xf32>
    tpu.vector_store %arg6[%c0_52, %c0_53, %c0_54], %90 {strides = array<i32>} : memref<2x2x32xf32, #tpu.memory_space<vmem>>, vector<2x2x32xf32>,
    %92 = vector.shape_cast %87 : vector<2x2x1xi1> to vector<2x2x1xi1>
    %93 = vector.broadcast %92 : vector<2x2x1xi1> to vector<2x2x32xi1>
    %94 = arith.select %93, %85, %57 : vector<2x2x32xi1>, vector<2x2x32xf32>
    %c0_55 = arith.constant 0 : index
    %c0_56 = arith.constant 0 : index
    %c0_57 = arith.constant 0 : index
    %95 = vector.load %arg5[%c0_55, %c0_56, %c0_57] : memref<2x2x32xf32, #tpu.memory_space<vmem>>, vector<2x2x32xf32>
    tpu.vector_store %arg5[%c0_55, %c0_56, %c0_57], %94 {strides = array<i32>} : memref<2x2x32xf32, #tpu.memory_space<vmem>>, vector<2x2x32xf32>,
    %c0_58 = arith.constant 0 : index
    %c0_59 = arith.constant 0 : index
    %c0_60 = arith.constant 0 : index
    %96 = vector.load %arg5[%c0_58, %c0_59, %c0_60] : memref<2x2x32xf32, #tpu.memory_space<vmem>>, vector<2x2x32xf32>
    %97 = vector.broadcast %56 : vector<2x2x1xf32> to vector<2x2x32xf32>
    %98 = arith.mulf %96, %97 : vector<2x2x32xf32>
    %c1_61 = arith.constant 1 : index
    %c0_62 = arith.constant 0 : index
    %c0_63 = arith.constant 0 : index
    %c0_64 = arith.constant 0 : index
    %99 = vector.load %arg4[%c1_61, %c0_62, %c0_63, %c0_64] : memref<8x2x2x32xf32, #tpu.memory_space<vmem>>, vector<1x2x2x32xf32>
    %100 = vector.shape_cast %99 : vector<1x2x2x32xf32> to vector<2x2x32xf32>
    %101 = vector.shape_cast %98 : vector<2x2x32xf32> to vector<1x2x2x32xf32>
    tpu.vector_store %arg4[%c1_61, %c0_62, %c0_63, %c0_64], %101 {strides = array<i32>} : memref<8x2x2x32xf32, #tpu.memory_space<vmem>>, vector<1x2x2x32xf32>,
    %c2 = arith.constant 2 : index
    %c0_65 = arith.constant 0 : index
    %c0_66 = arith.constant 0 : index
    %c0_67 = arith.constant 0 : index
    %102 = vector.load %arg1[%c2, %c0_65, %c0_66, %c0_67] : memref<8x2x2x128xf32, #tpu.memory_space<vmem>>, vector<1x2x2x128xf32>
    %103 = vector.shape_cast %102 : vector<1x2x2x128xf32> to vector<2x2x128xf32>
    %c2_68 = arith.constant 2 : index
    %c0_69 = arith.constant 0 : index
    %c0_70 = arith.constant 0 : index
    %c0_71 = arith.constant 0 : index
    %104 = vector.load %arg2[%c2_68, %c0_69, %c0_70, %c0_71] : memref<8x2x2x1xf32, #tpu.memory_space<vmem>>, vector<1x2x2x1xf32>
    %105 = vector.shape_cast %104 : vector<1x2x2x1xf32> to vector<2x2x1xf32>
    %c0_72 = arith.constant 0 : index
    %c0_73 = arith.constant 0 : index
    %c0_74 = arith.constant 0 : index
    %106 = vector.load %arg5[%c0_72, %c0_73, %c0_74] : memref<2x2x32xf32, #tpu.memory_space<vmem>>, vector<2x2x32xf32>
    %c0_75 = arith.constant 0 : index
    %c0_76 = arith.constant 0 : index
    %c0_77 = arith.constant 0 : index
    %107 = vector.load %arg6[%c0_75, %c0_76, %c0_77] : memref<2x2x32xf32, #tpu.memory_space<vmem>>, vector<2x2x32xf32>
    %cst_78 = arith.constant dense<0.000000e+00> : vector<2x2x128xf32>
    %108 = tpu.matmul %106, %3, %cst_78 {dimension_numbers = #tpu.dot_dimension_numbers<[2], [1], [1], [2], [0, 0, 0, 1, 1, 2], [0], [0]>} : vector<2x2x32xf32>, vector<2x32x128xf32>, vector<2x2x128xf32> -> vector<2x2x128xf32>
    %109 = arith.addf %103, %108 : vector<2x2x128xf32>
    %110 = vector.extract_strided_slice %109 {offsets = [0, 0, 0], sizes = [2, 2, 32], strides = [1, 1, 1]} : vector<2x2x128xf32> to vector<2x2x32xf32>
    %111 = arith.negf %110 : vector<2x2x32xf32>
    %112 = math.exp %111 : vector<2x2x32xf32>
    %cst_79 = arith.constant 1.000000e+00 : f32
    %113 = vector.broadcast %cst_79 : f32 to vector<2x2x32xf32>
    %114 = arith.addf %113, %112 : vector<2x2x32xf32>
    %115 = arith.divf %113, %114 : vector<2x2x32xf32>
    %116 = vector.extract_strided_slice %109 {offsets = [0, 0, 32], sizes = [2, 2, 32], strides = [1, 1, 1]} : vector<2x2x128xf32> to vector<2x2x32xf32>
    %117 = arith.negf %116 : vector<2x2x32xf32>
    %118 = math.exp %117 : vector<2x2x32xf32>
    %cst_80 = arith.constant 1.000000e+00 : f32
    %119 = vector.broadcast %cst_80 : f32 to vector<2x2x32xf32>
    %120 = arith.addf %119, %118 : vector<2x2x32xf32>
    %121 = arith.divf %119, %120 : vector<2x2x32xf32>
    %122 = vector.extract_strided_slice %109 {offsets = [0, 0, 64], sizes = [2, 2, 32], strides = [1, 1, 1]} : vector<2x2x128xf32> to vector<2x2x32xf32>
    %123 = math.tanh %122 : vector<2x2x32xf32>
    %124 = vector.extract_strided_slice %109 {offsets = [0, 0, 96], sizes = [2, 2, 32], strides = [1, 1, 1]} : vector<2x2x128xf32> to vector<2x2x32xf32>
    %125 = arith.negf %124 : vector<2x2x32xf32>
    %126 = math.exp %125 : vector<2x2x32xf32>
    %cst_81 = arith.constant 1.000000e+00 : f32
    %127 = vector.broadcast %cst_81 : f32 to vector<2x2x32xf32>
    %128 = arith.addf %127, %126 : vector<2x2x32xf32>
    %129 = arith.divf %127, %128 : vector<2x2x32xf32>
    %130 = arith.mulf %121, %107 : vector<2x2x32xf32>
    %131 = arith.mulf %115, %123 : vector<2x2x32xf32>
    %132 = arith.addf %130, %131 : vector<2x2x32xf32>
    %133 = math.tanh %132 : vector<2x2x32xf32>
    %134 = arith.mulf %129, %133 : vector<2x2x32xf32>
    %cst_82 = arith.constant 0.000000e+00 : f32
    %135 = vector.broadcast %cst_82 : f32 to vector<2x2x1xf32>
    %136 = arith.cmpf ogt, %105, %135 : vector<2x2x1xf32>
    %137 = vector.shape_cast %136 : vector<2x2x1xi1> to vector<2x2x1xi1>
    %138 = vector.broadcast %137 : vector<2x2x1xi1> to vector<2x2x32xi1>
    %139 = arith.select %138, %132, %107 : vector<2x2x32xi1>, vector<2x2x32xf32>
    %c0_83 = arith.constant 0 : index
    %c0_84 = arith.constant 0 : index
    %c0_85 = arith.constant 0 : index
    %140 = vector.load %arg6[%c0_83, %c0_84, %c0_85] : memref<2x2x32xf32, #tpu.memory_space<vmem>>, vector<2x2x32xf32>
    tpu.vector_store %arg6[%c0_83, %c0_84, %c0_85], %139 {strides = array<i32>} : memref<2x2x32xf32, #tpu.memory_space<vmem>>, vector<2x2x32xf32>,
    %141 = vector.shape_cast %136 : vector<2x2x1xi1> to vector<2x2x1xi1>
    %142 = vector.broadcast %141 : vector<2x2x1xi1> to vector<2x2x32xi1>
    %143 = arith.select %142, %134, %106 : vector<2x2x32xi1>, vector<2x2x32xf32>
    %c0_86 = arith.constant 0 : index
    %c0_87 = arith.constant 0 : index
    %c0_88 = arith.constant 0 : index
    %144 = vector.load %arg5[%c0_86, %c0_87, %c0_88] : memref<2x2x32xf32, #tpu.memory_space<vmem>>, vector<2x2x32xf32>
    tpu.vector_store %arg5[%c0_86, %c0_87, %c0_88], %143 {strides = array<i32>} : memref<2x2x32xf32, #tpu.memory_space<vmem>>, vector<2x2x32xf32>,
    %c0_89 = arith.constant 0 : index
    %c0_90 = arith.constant 0 : index
    %c0_91 = arith.constant 0 : index
    %145 = vector.load %arg5[%c0_89, %c0_90, %c0_91] : memref<2x2x32xf32, #tpu.memory_space<vmem>>, vector<2x2x32xf32>
    %146 = vector.broadcast %105 : vector<2x2x1xf32> to vector<2x2x32xf32>
    %147 = arith.mulf %145, %146 : vector<2x2x32xf32>
    %c2_92 = arith.constant 2 : index
    %c0_93 = arith.constant 0 : index
    %c0_94 = arith.constant 0 : index
    %c0_95 = arith.constant 0 : index
    %148 = vector.load %arg4[%c2_92, %c0_93, %c0_94, %c0_95] : memref<8x2x2x32xf32, #tpu.memory_space<vmem>>, vector<1x2x2x32xf32>
    %149 = vector.shape_cast %148 : vector<1x2x2x32xf32> to vector<2x2x32xf32>
    %150 = vector.shape_cast %147 : vector<2x2x32xf32> to vector<1x2x2x32xf32>
    tpu.vector_store %arg4[%c2_92, %c0_93, %c0_94, %c0_95], %150 {strides = array<i32>} : memref<8x2x2x32xf32, #tpu.memory_space<vmem>>, vector<1x2x2x32xf32>,
    %c3 = arith.constant 3 : index
    %c0_96 = arith.constant 0 : index
    %c0_97 = arith.constant 0 : index
    %c0_98 = arith.constant 0 : index
    %151 = vector.load %arg1[%c3, %c0_96, %c0_97, %c0_98] : memref<8x2x2x128xf32, #tpu.memory_space<vmem>>, vector<1x2x2x128xf32>
    %152 = vector.shape_cast %151 : vector<1x2x2x128xf32> to vector<2x2x128xf32>
    %c3_99 = arith.constant 3 : index
    %c0_100 = arith.constant 0 : index
    %c0_101 = arith.constant 0 : index
    %c0_102 = arith.constant 0 : index
    %153 = vector.load %arg2[%c3_99, %c0_100, %c0_101, %c0_102] : memref<8x2x2x1xf32, #tpu.memory_space<vmem>>, vector<1x2x2x1xf32>
    %154 = vector.shape_cast %153 : vector<1x2x2x1xf32> to vector<2x2x1xf32>
    %c0_103 = arith.constant 0 : index
    %c0_104 = arith.constant 0 : index
    %c0_105 = arith.constant 0 : index
    %155 = vector.load %arg5[%c0_103, %c0_104, %c0_105] : memref<2x2x32xf32, #tpu.memory_space<vmem>>, vector<2x2x32xf32>
    %c0_106 = arith.constant 0 : index
    %c0_107 = arith.constant 0 : index
    %c0_108 = arith.constant 0 : index
    %156 = vector.load %arg6[%c0_106, %c0_107, %c0_108] : memref<2x2x32xf32, #tpu.memory_space<vmem>>, vector<2x2x32xf32>
    %cst_109 = arith.constant dense<0.000000e+00> : vector<2x2x128xf32>
    %157 = tpu.matmul %155, %3, %cst_109 {dimension_numbers = #tpu.dot_dimension_numbers<[2], [1], [1], [2], [0, 0, 0, 1, 1, 2], [0], [0]>} : vector<2x2x32xf32>, vector<2x32x128xf32>, vector<2x2x128xf32> -> vector<2x2x128xf32>
    %158 = arith.addf %152, %157 : vector<2x2x128xf32>
    %159 = vector.extract_strided_slice %158 {offsets = [0, 0, 0], sizes = [2, 2, 32], strides = [1, 1, 1]} : vector<2x2x128xf32> to vector<2x2x32xf32>
    %160 = arith.negf %159 : vector<2x2x32xf32>
    %161 = math.exp %160 : vector<2x2x32xf32>
    %cst_110 = arith.constant 1.000000e+00 : f32
    %162 = vector.broadcast %cst_110 : f32 to vector<2x2x32xf32>
    %163 = arith.addf %162, %161 : vector<2x2x32xf32>
    %164 = arith.divf %162, %163 : vector<2x2x32xf32>
    %165 = vector.extract_strided_slice %158 {offsets = [0, 0, 32], sizes = [2, 2, 32], strides = [1, 1, 1]} : vector<2x2x128xf32> to vector<2x2x32xf32>
    %166 = arith.negf %165 : vector<2x2x32xf32>
    %167 = math.exp %166 : vector<2x2x32xf32>
    %cst_111 = arith.constant 1.000000e+00 : f32
    %168 = vector.broadcast %cst_111 : f32 to vector<2x2x32xf32>
    %169 = arith.addf %168, %167 : vector<2x2x32xf32>
    %170 = arith.divf %168, %169 : vector<2x2x32xf32>
    %171 = vector.extract_strided_slice %158 {offsets = [0, 0, 64], sizes = [2, 2, 32], strides = [1, 1, 1]} : vector<2x2x128xf32> to vector<2x2x32xf32>
    %172 = math.tanh %171 : vector<2x2x32xf32>
    %173 = vector.extract_strided_slice %158 {offsets = [0, 0, 96], sizes = [2, 2, 32], strides = [1, 1, 1]} : vector<2x2x128xf32> to vector<2x2x32xf32>
    %174 = arith.negf %173 : vector<2x2x32xf32>
    %175 = math.exp %174 : vector<2x2x32xf32>
    %cst_112 = arith.constant 1.000000e+00 : f32
    %176 = vector.broadcast %cst_112 : f32 to vector<2x2x32xf32>
    %177 = arith.addf %176, %175 : vector<2x2x32xf32>
    %178 = arith.divf %176, %177 : vector<2x2x32xf32>
    %179 = arith.mulf %170, %156 : vector<2x2x32xf32>
    %180 = arith.mulf %164, %172 : vector<2x2x32xf32>
    %181 = arith.addf %179, %180 : vector<2x2x32xf32>
    %182 = math.tanh %181 : vector<2x2x32xf32>
    %183 = arith.mulf %178, %182 : vector<2x2x32xf32>
    %cst_113 = arith.constant 0.000000e+00 : f32
    %184 = vector.broadcast %cst_113 : f32 to vector<2x2x1xf32>
    %185 = arith.cmpf ogt, %154, %184 : vector<2x2x1xf32>
    %186 = vector.shape_cast %185 : vector<2x2x1xi1> to vector<2x2x1xi1>
    %187 = vector.broadcast %186 : vector<2x2x1xi1> to vector<2x2x32xi1>
    %188 = arith.select %187, %181, %156 : vector<2x2x32xi1>, vector<2x2x32xf32>
    %c0_114 = arith.constant 0 : index
    %c0_115 = arith.constant 0 : index
    %c0_116 = arith.constant 0 : index
    %189 = vector.load %arg6[%c0_114, %c0_115, %c0_116] : memref<2x2x32xf32, #tpu.memory_space<vmem>>, vector<2x2x32xf32>
    tpu.vector_store %arg6[%c0_114, %c0_115, %c0_116], %188 {strides = array<i32>} : memref<2x2x32xf32, #tpu.memory_space<vmem>>, vector<2x2x32xf32>,
    %190 = vector.shape_cast %185 : vector<2x2x1xi1> to vector<2x2x1xi1>
    %191 = vector.broadcast %190 : vector<2x2x1xi1> to vector<2x2x32xi1>
    %192 = arith.select %191, %183, %155 : vector<2x2x32xi1>, vector<2x2x32xf32>
    %c0_117 = arith.constant 0 : index
    %c0_118 = arith.constant 0 : index
    %c0_119 = arith.constant 0 : index
    %193 = vector.load %arg5[%c0_117, %c0_118, %c0_119] : memref<2x2x32xf32, #tpu.memory_space<vmem>>, vector<2x2x32xf32>
    tpu.vector_store %arg5[%c0_117, %c0_118, %c0_119], %192 {strides = array<i32>} : memref<2x2x32xf32, #tpu.memory_space<vmem>>, vector<2x2x32xf32>,
    %c0_120 = arith.constant 0 : index
    %c0_121 = arith.constant 0 : index
    %c0_122 = arith.constant 0 : index
    %194 = vector.load %arg5[%c0_120, %c0_121, %c0_122] : memref<2x2x32xf32, #tpu.memory_space<vmem>>, vector<2x2x32xf32>
    %195 = vector.broadcast %154 : vector<2x2x1xf32> to vector<2x2x32xf32>
    %196 = arith.mulf %194, %195 : vector<2x2x32xf32>
    %c3_123 = arith.constant 3 : index
    %c0_124 = arith.constant 0 : index
    %c0_125 = arith.constant 0 : index
    %c0_126 = arith.constant 0 : index
    %197 = vector.load %arg4[%c3_123, %c0_124, %c0_125, %c0_126] : memref<8x2x2x32xf32, #tpu.memory_space<vmem>>, vector<1x2x2x32xf32>
    %198 = vector.shape_cast %197 : vector<1x2x2x32xf32> to vector<2x2x32xf32>
    %199 = vector.shape_cast %196 : vector<2x2x32xf32> to vector<1x2x2x32xf32>
    tpu.vector_store %arg4[%c3_123, %c0_124, %c0_125, %c0_126], %199 {strides = array<i32>} : memref<8x2x2x32xf32, #tpu.memory_space<vmem>>, vector<1x2x2x32xf32>,
    %c4 = arith.constant 4 : index
    %c0_127 = arith.constant 0 : index
    %c0_128 = arith.constant 0 : index
    %c0_129 = arith.constant 0 : index
    %200 = vector.load %arg1[%c4, %c0_127, %c0_128, %c0_129] : memref<8x2x2x128xf32, #tpu.memory_space<vmem>>, vector<1x2x2x128xf32>
    %201 = vector.shape_cast %200 : vector<1x2x2x128xf32> to vector<2x2x128xf32>
    %c4_130 = arith.constant 4 : index
    %c0_131 = arith.constant 0 : index
    %c0_132 = arith.constant 0 : index
    %c0_133 = arith.constant 0 : index
    %202 = vector.load %arg2[%c4_130, %c0_131, %c0_132, %c0_133] : memref<8x2x2x1xf32, #tpu.memory_space<vmem>>, vector<1x2x2x1xf32>
    %203 = vector.shape_cast %202 : vector<1x2x2x1xf32> to vector<2x2x1xf32>
    %c0_134 = arith.constant 0 : index
    %c0_135 = arith.constant 0 : index
    %c0_136 = arith.constant 0 : index
    %204 = vector.load %arg5[%c0_134, %c0_135, %c0_136] : memref<2x2x32xf32, #tpu.memory_space<vmem>>, vector<2x2x32xf32>
    %c0_137 = arith.constant 0 : index
    %c0_138 = arith.constant 0 : index
    %c0_139 = arith.constant 0 : index
    %205 = vector.load %arg6[%c0_137, %c0_138, %c0_139] : memref<2x2x32xf32, #tpu.memory_space<vmem>>, vector<2x2x32xf32>
    %cst_140 = arith.constant dense<0.000000e+00> : vector<2x2x128xf32>
    %206 = tpu.matmul %204, %3, %cst_140 {dimension_numbers = #tpu.dot_dimension_numbers<[2], [1], [1], [2], [0, 0, 0, 1, 1, 2], [0], [0]>} : vector<2x2x32xf32>, vector<2x32x128xf32>, vector<2x2x128xf32> -> vector<2x2x128xf32>
    %207 = arith.addf %201, %206 : vector<2x2x128xf32>
    %208 = vector.extract_strided_slice %207 {offsets = [0, 0, 0], sizes = [2, 2, 32], strides = [1, 1, 1]} : vector<2x2x128xf32> to vector<2x2x32xf32>
    %209 = arith.negf %208 : vector<2x2x32xf32>
    %210 = math.exp %209 : vector<2x2x32xf32>
    %cst_141 = arith.constant 1.000000e+00 : f32
    %211 = vector.broadcast %cst_141 : f32 to vector<2x2x32xf32>
    %212 = arith.addf %211, %210 : vector<2x2x32xf32>
    %213 = arith.divf %211, %212 : vector<2x2x32xf32>
    %214 = vector.extract_strided_slice %207 {offsets = [0, 0, 32], sizes = [2, 2, 32], strides = [1, 1, 1]} : vector<2x2x128xf32> to vector<2x2x32xf32>
    %215 = arith.negf %214 : vector<2x2x32xf32>
    %216 = math.exp %215 : vector<2x2x32xf32>
    %cst_142 = arith.constant 1.000000e+00 : f32
    %217 = vector.broadcast %cst_142 : f32 to vector<2x2x32xf32>
    %218 = arith.addf %217, %216 : vector<2x2x32xf32>
    %219 = arith.divf %217, %218 : vector<2x2x32xf32>
    %220 = vector.extract_strided_slice %207 {offsets = [0, 0, 64], sizes = [2, 2, 32], strides = [1, 1, 1]} : vector<2x2x128xf32> to vector<2x2x32xf32>
    %221 = math.tanh %220 : vector<2x2x32xf32>
    %222 = vector.extract_strided_slice %207 {offsets = [0, 0, 96], sizes = [2, 2, 32], strides = [1, 1, 1]} : vector<2x2x128xf32> to vector<2x2x32xf32>
    %223 = arith.negf %222 : vector<2x2x32xf32>
    %224 = math.exp %223 : vector<2x2x32xf32>
    %cst_143 = arith.constant 1.000000e+00 : f32
    %225 = vector.broadcast %cst_143 : f32 to vector<2x2x32xf32>
    %226 = arith.addf %225, %224 : vector<2x2x32xf32>
    %227 = arith.divf %225, %226 : vector<2x2x32xf32>
    %228 = arith.mulf %219, %205 : vector<2x2x32xf32>
    %229 = arith.mulf %213, %221 : vector<2x2x32xf32>
    %230 = arith.addf %228, %229 : vector<2x2x32xf32>
    %231 = math.tanh %230 : vector<2x2x32xf32>
    %232 = arith.mulf %227, %231 : vector<2x2x32xf32>
    %cst_144 = arith.constant 0.000000e+00 : f32
    %233 = vector.broadcast %cst_144 : f32 to vector<2x2x1xf32>
    %234 = arith.cmpf ogt, %203, %233 : vector<2x2x1xf32>
    %235 = vector.shape_cast %234 : vector<2x2x1xi1> to vector<2x2x1xi1>
    %236 = vector.broadcast %235 : vector<2x2x1xi1> to vector<2x2x32xi1>
    %237 = arith.select %236, %230, %205 : vector<2x2x32xi1>, vector<2x2x32xf32>
    %c0_145 = arith.constant 0 : index
    %c0_146 = arith.constant 0 : index
    %c0_147 = arith.constant 0 : index
    %238 = vector.load %arg6[%c0_145, %c0_146, %c0_147] : memref<2x2x32xf32, #tpu.memory_space<vmem>>, vector<2x2x32xf32>
    tpu.vector_store %arg6[%c0_145, %c0_146, %c0_147], %237 {strides = array<i32>} : memref<2x2x32xf32, #tpu.memory_space<vmem>>, vector<2x2x32xf32>,
    %239 = vector.shape_cast %234 : vector<2x2x1xi1> to vector<2x2x1xi1>
    %240 = vector.broadcast %239 : vector<2x2x1xi1> to vector<2x2x32xi1>
    %241 = arith.select %240, %232, %204 : vector<2x2x32xi1>, vector<2x2x32xf32>
    %c0_148 = arith.constant 0 : index
    %c0_149 = arith.constant 0 : index
    %c0_150 = arith.constant 0 : index
    %242 = vector.load %arg5[%c0_148, %c0_149, %c0_150] : memref<2x2x32xf32, #tpu.memory_space<vmem>>, vector<2x2x32xf32>
    tpu.vector_store %arg5[%c0_148, %c0_149, %c0_150], %241 {strides = array<i32>} : memref<2x2x32xf32, #tpu.memory_space<vmem>>, vector<2x2x32xf32>,
    %c0_151 = arith.constant 0 : index
    %c0_152 = arith.constant 0 : index
    %c0_153 = arith.constant 0 : index
    %243 = vector.load %arg5[%c0_151, %c0_152, %c0_153] : memref<2x2x32xf32, #tpu.memory_space<vmem>>, vector<2x2x32xf32>
    %244 = vector.broadcast %203 : vector<2x2x1xf32> to vector<2x2x32xf32>
    %245 = arith.mulf %243, %244 : vector<2x2x32xf32>
    %c4_154 = arith.constant 4 : index
    %c0_155 = arith.constant 0 : index
    %c0_156 = arith.constant 0 : index
    %c0_157 = arith.constant 0 : index
    %246 = vector.load %arg4[%c4_154, %c0_155, %c0_156, %c0_157] : memref<8x2x2x32xf32, #tpu.memory_space<vmem>>, vector<1x2x2x32xf32>
    %247 = vector.shape_cast %246 : vector<1x2x2x32xf32> to vector<2x2x32xf32>
    %248 = vector.shape_cast %245 : vector<2x2x32xf32> to vector<1x2x2x32xf32>
    tpu.vector_store %arg4[%c4_154, %c0_155, %c0_156, %c0_157], %248 {strides = array<i32>} : memref<8x2x2x32xf32, #tpu.memory_space<vmem>>, vector<1x2x2x32xf32>,
    %c5 = arith.constant 5 : index
    %c0_158 = arith.constant 0 : index
    %c0_159 = arith.constant 0 : index
    %c0_160 = arith.constant 0 : index
    %249 = vector.load %arg1[%c5, %c0_158, %c0_159, %c0_160] : memref<8x2x2x128xf32, #tpu.memory_space<vmem>>, vector<1x2x2x128xf32>
    %250 = vector.shape_cast %249 : vector<1x2x2x128xf32> to vector<2x2x128xf32>
    %c5_161 = arith.constant 5 : index
    %c0_162 = arith.constant 0 : index
    %c0_163 = arith.constant 0 : index
    %c0_164 = arith.constant 0 : index
    %251 = vector.load %arg2[%c5_161, %c0_162, %c0_163, %c0_164] : memref<8x2x2x1xf32, #tpu.memory_space<vmem>>, vector<1x2x2x1xf32>
    %252 = vector.shape_cast %251 : vector<1x2x2x1xf32> to vector<2x2x1xf32>
    %c0_165 = arith.constant 0 : index
    %c0_166 = arith.constant 0 : index
    %c0_167 = arith.constant 0 : index
    %253 = vector.load %arg5[%c0_165, %c0_166, %c0_167] : memref<2x2x32xf32, #tpu.memory_space<vmem>>, vector<2x2x32xf32>
    %c0_168 = arith.constant 0 : index
    %c0_169 = arith.constant 0 : index
    %c0_170 = arith.constant 0 : index
    %254 = vector.load %arg6[%c0_168, %c0_169, %c0_170] : memref<2x2x32xf32, #tpu.memory_space<vmem>>, vector<2x2x32xf32>
    %cst_171 = arith.constant dense<0.000000e+00> : vector<2x2x128xf32>
    %255 = tpu.matmul %253, %3, %cst_171 {dimension_numbers = #tpu.dot_dimension_numbers<[2], [1], [1], [2], [0, 0, 0, 1, 1, 2], [0], [0]>} : vector<2x2x32xf32>, vector<2x32x128xf32>, vector<2x2x128xf32> -> vector<2x2x128xf32>
    %256 = arith.addf %250, %255 : vector<2x2x128xf32>
    %257 = vector.extract_strided_slice %256 {offsets = [0, 0, 0], sizes = [2, 2, 32], strides = [1, 1, 1]} : vector<2x2x128xf32> to vector<2x2x32xf32>
    %258 = arith.negf %257 : vector<2x2x32xf32>
    %259 = math.exp %258 : vector<2x2x32xf32>
    %cst_172 = arith.constant 1.000000e+00 : f32
    %260 = vector.broadcast %cst_172 : f32 to vector<2x2x32xf32>
    %261 = arith.addf %260, %259 : vector<2x2x32xf32>
    %262 = arith.divf %260, %261 : vector<2x2x32xf32>
    %263 = vector.extract_strided_slice %256 {offsets = [0, 0, 32], sizes = [2, 2, 32], strides = [1, 1, 1]} : vector<2x2x128xf32> to vector<2x2x32xf32>
    %264 = arith.negf %263 : vector<2x2x32xf32>
    %265 = math.exp %264 : vector<2x2x32xf32>
    %cst_173 = arith.constant 1.000000e+00 : f32
    %266 = vector.broadcast %cst_173 : f32 to vector<2x2x32xf32>
    %267 = arith.addf %266, %265 : vector<2x2x32xf32>
    %268 = arith.divf %266, %267 : vector<2x2x32xf32>
    %269 = vector.extract_strided_slice %256 {offsets = [0, 0, 64], sizes = [2, 2, 32], strides = [1, 1, 1]} : vector<2x2x128xf32> to vector<2x2x32xf32>
    %270 = math.tanh %269 : vector<2x2x32xf32>
    %271 = vector.extract_strided_slice %256 {offsets = [0, 0, 96], sizes = [2, 2, 32], strides = [1, 1, 1]} : vector<2x2x128xf32> to vector<2x2x32xf32>
    %272 = arith.negf %271 : vector<2x2x32xf32>
    %273 = math.exp %272 : vector<2x2x32xf32>
    %cst_174 = arith.constant 1.000000e+00 : f32
    %274 = vector.broadcast %cst_174 : f32 to vector<2x2x32xf32>
    %275 = arith.addf %274, %273 : vector<2x2x32xf32>
    %276 = arith.divf %274, %275 : vector<2x2x32xf32>
    %277 = arith.mulf %268, %254 : vector<2x2x32xf32>
    %278 = arith.mulf %262, %270 : vector<2x2x32xf32>
    %279 = arith.addf %277, %278 : vector<2x2x32xf32>
    %280 = math.tanh %279 : vector<2x2x32xf32>
    %281 = arith.mulf %276, %280 : vector<2x2x32xf32>
    %cst_175 = arith.constant 0.000000e+00 : f32
    %282 = vector.broadcast %cst_175 : f32 to vector<2x2x1xf32>
    %283 = arith.cmpf ogt, %252, %282 : vector<2x2x1xf32>
    %284 = vector.shape_cast %283 : vector<2x2x1xi1> to vector<2x2x1xi1>
    %285 = vector.broadcast %284 : vector<2x2x1xi1> to vector<2x2x32xi1>
    %286 = arith.select %285, %279, %254 : vector<2x2x32xi1>, vector<2x2x32xf32>
    %c0_176 = arith.constant 0 : index
    %c0_177 = arith.constant 0 : index
    %c0_178 = arith.constant 0 : index
    %287 = vector.load %arg6[%c0_176, %c0_177, %c0_178] : memref<2x2x32xf32, #tpu.memory_space<vmem>>, vector<2x2x32xf32>
    tpu.vector_store %arg6[%c0_176, %c0_177, %c0_178], %286 {strides = array<i32>} : memref<2x2x32xf32, #tpu.memory_space<vmem>>, vector<2x2x32xf32>,
    %288 = vector.shape_cast %283 : vector<2x2x1xi1> to vector<2x2x1xi1>
    %289 = vector.broadcast %288 : vector<2x2x1xi1> to vector<2x2x32xi1>
    %290 = arith.select %289, %281, %253 : vector<2x2x32xi1>, vector<2x2x32xf32>
    %c0_179 = arith.constant 0 : index
    %c0_180 = arith.constant 0 : index
    %c0_181 = arith.constant 0 : index
    %291 = vector.load %arg5[%c0_179, %c0_180, %c0_181] : memref<2x2x32xf32, #tpu.memory_space<vmem>>, vector<2x2x32xf32>
    tpu.vector_store %arg5[%c0_179, %c0_180, %c0_181], %290 {strides = array<i32>} : memref<2x2x32xf32, #tpu.memory_space<vmem>>, vector<2x2x32xf32>,
    %c0_182 = arith.constant 0 : index
    %c0_183 = arith.constant 0 : index
    %c0_184 = arith.constant 0 : index
    %292 = vector.load %arg5[%c0_182, %c0_183, %c0_184] : memref<2x2x32xf32, #tpu.memory_space<vmem>>, vector<2x2x32xf32>
    %293 = vector.broadcast %252 : vector<2x2x1xf32> to vector<2x2x32xf32>
    %294 = arith.mulf %292, %293 : vector<2x2x32xf32>
    %c5_185 = arith.constant 5 : index
    %c0_186 = arith.constant 0 : index
    %c0_187 = arith.constant 0 : index
    %c0_188 = arith.constant 0 : index
    %295 = vector.load %arg4[%c5_185, %c0_186, %c0_187, %c0_188] : memref<8x2x2x32xf32, #tpu.memory_space<vmem>>, vector<1x2x2x32xf32>
    %296 = vector.shape_cast %295 : vector<1x2x2x32xf32> to vector<2x2x32xf32>
    %297 = vector.shape_cast %294 : vector<2x2x32xf32> to vector<1x2x2x32xf32>
    tpu.vector_store %arg4[%c5_185, %c0_186, %c0_187, %c0_188], %297 {strides = array<i32>} : memref<8x2x2x32xf32, #tpu.memory_space<vmem>>, vector<1x2x2x32xf32>,
    %c6 = arith.constant 6 : index
    %c0_189 = arith.constant 0 : index
    %c0_190 = arith.constant 0 : index
    %c0_191 = arith.constant 0 : index
    %298 = vector.load %arg1[%c6, %c0_189, %c0_190, %c0_191] : memref<8x2x2x128xf32, #tpu.memory_space<vmem>>, vector<1x2x2x128xf32>
    %299 = vector.shape_cast %298 : vector<1x2x2x128xf32> to vector<2x2x128xf32>
    %c6_192 = arith.constant 6 : index
    %c0_193 = arith.constant 0 : index
    %c0_194 = arith.constant 0 : index
    %c0_195 = arith.constant 0 : index
    %300 = vector.load %arg2[%c6_192, %c0_193, %c0_194, %c0_195] : memref<8x2x2x1xf32, #tpu.memory_space<vmem>>, vector<1x2x2x1xf32>
    %301 = vector.shape_cast %300 : vector<1x2x2x1xf32> to vector<2x2x1xf32>
    %c0_196 = arith.constant 0 : index
    %c0_197 = arith.constant 0 : index
    %c0_198 = arith.constant 0 : index
    %302 = vector.load %arg5[%c0_196, %c0_197, %c0_198] : memref<2x2x32xf32, #tpu.memory_space<vmem>>, vector<2x2x32xf32>
    %c0_199 = arith.constant 0 : index
    %c0_200 = arith.constant 0 : index
    %c0_201 = arith.constant 0 : index
    %303 = vector.load %arg6[%c0_199, %c0_200, %c0_201] : memref<2x2x32xf32, #tpu.memory_space<vmem>>, vector<2x2x32xf32>
    %cst_202 = arith.constant dense<0.000000e+00> : vector<2x2x128xf32>
    %304 = tpu.matmul %302, %3, %cst_202 {dimension_numbers = #tpu.dot_dimension_numbers<[2], [1], [1], [2], [0, 0, 0, 1, 1, 2], [0], [0]>} : vector<2x2x32xf32>, vector<2x32x128xf32>, vector<2x2x128xf32> -> vector<2x2x128xf32>
    %305 = arith.addf %299, %304 : vector<2x2x128xf32>
    %306 = vector.extract_strided_slice %305 {offsets = [0, 0, 0], sizes = [2, 2, 32], strides = [1, 1, 1]} : vector<2x2x128xf32> to vector<2x2x32xf32>
    %307 = arith.negf %306 : vector<2x2x32xf32>
    %308 = math.exp %307 : vector<2x2x32xf32>
    %cst_203 = arith.constant 1.000000e+00 : f32
    %309 = vector.broadcast %cst_203 : f32 to vector<2x2x32xf32>
    %310 = arith.addf %309, %308 : vector<2x2x32xf32>
    %311 = arith.divf %309, %310 : vector<2x2x32xf32>
    %312 = vector.extract_strided_slice %305 {offsets = [0, 0, 32], sizes = [2, 2, 32], strides = [1, 1, 1]} : vector<2x2x128xf32> to vector<2x2x32xf32>
    %313 = arith.negf %312 : vector<2x2x32xf32>
    %314 = math.exp %313 : vector<2x2x32xf32>
    %cst_204 = arith.constant 1.000000e+00 : f32
    %315 = vector.broadcast %cst_204 : f32 to vector<2x2x32xf32>
    %316 = arith.addf %315, %314 : vector<2x2x32xf32>
    %317 = arith.divf %315, %316 : vector<2x2x32xf32>
    %318 = vector.extract_strided_slice %305 {offsets = [0, 0, 64], sizes = [2, 2, 32], strides = [1, 1, 1]} : vector<2x2x128xf32> to vector<2x2x32xf32>
    %319 = math.tanh %318 : vector<2x2x32xf32>
    %320 = vector.extract_strided_slice %305 {offsets = [0, 0, 96], sizes = [2, 2, 32], strides = [1, 1, 1]} : vector<2x2x128xf32> to vector<2x2x32xf32>
    %321 = arith.negf %320 : vector<2x2x32xf32>
    %322 = math.exp %321 : vector<2x2x32xf32>
    %cst_205 = arith.constant 1.000000e+00 : f32
    %323 = vector.broadcast %cst_205 : f32 to vector<2x2x32xf32>
    %324 = arith.addf %323, %322 : vector<2x2x32xf32>
    %325 = arith.divf %323, %324 : vector<2x2x32xf32>
    %326 = arith.mulf %317, %303 : vector<2x2x32xf32>
    %327 = arith.mulf %311, %319 : vector<2x2x32xf32>
    %328 = arith.addf %326, %327 : vector<2x2x32xf32>
    %329 = math.tanh %328 : vector<2x2x32xf32>
    %330 = arith.mulf %325, %329 : vector<2x2x32xf32>
    %cst_206 = arith.constant 0.000000e+00 : f32
    %331 = vector.broadcast %cst_206 : f32 to vector<2x2x1xf32>
    %332 = arith.cmpf ogt, %301, %331 : vector<2x2x1xf32>
    %333 = vector.shape_cast %332 : vector<2x2x1xi1> to vector<2x2x1xi1>
    %334 = vector.broadcast %333 : vector<2x2x1xi1> to vector<2x2x32xi1>
    %335 = arith.select %334, %328, %303 : vector<2x2x32xi1>, vector<2x2x32xf32>
    %c0_207 = arith.constant 0 : index
    %c0_208 = arith.constant 0 : index
    %c0_209 = arith.constant 0 : index
    %336 = vector.load %arg6[%c0_207, %c0_208, %c0_209] : memref<2x2x32xf32, #tpu.memory_space<vmem>>, vector<2x2x32xf32>
    tpu.vector_store %arg6[%c0_207, %c0_208, %c0_209], %335 {strides = array<i32>} : memref<2x2x32xf32, #tpu.memory_space<vmem>>, vector<2x2x32xf32>,
    %337 = vector.shape_cast %332 : vector<2x2x1xi1> to vector<2x2x1xi1>
    %338 = vector.broadcast %337 : vector<2x2x1xi1> to vector<2x2x32xi1>
    %339 = arith.select %338, %330, %302 : vector<2x2x32xi1>, vector<2x2x32xf32>
    %c0_210 = arith.constant 0 : index
    %c0_211 = arith.constant 0 : index
    %c0_212 = arith.constant 0 : index
    %340 = vector.load %arg5[%c0_210, %c0_211, %c0_212] : memref<2x2x32xf32, #tpu.memory_space<vmem>>, vector<2x2x32xf32>
    tpu.vector_store %arg5[%c0_210, %c0_211, %c0_212], %339 {strides = array<i32>} : memref<2x2x32xf32, #tpu.memory_space<vmem>>, vector<2x2x32xf32>,
    %c0_213 = arith.constant 0 : index
    %c0_214 = arith.constant 0 : index
    %c0_215 = arith.constant 0 : index
    %341 = vector.load %arg5[%c0_213, %c0_214, %c0_215] : memref<2x2x32xf32, #tpu.memory_space<vmem>>, vector<2x2x32xf32>
    %342 = vector.broadcast %301 : vector<2x2x1xf32> to vector<2x2x32xf32>
    %343 = arith.mulf %341, %342 : vector<2x2x32xf32>
    %c6_216 = arith.constant 6 : index
    %c0_217 = arith.constant 0 : index
    %c0_218 = arith.constant 0 : index
    %c0_219 = arith.constant 0 : index
    %344 = vector.load %arg4[%c6_216, %c0_217, %c0_218, %c0_219] : memref<8x2x2x32xf32, #tpu.memory_space<vmem>>, vector<1x2x2x32xf32>
    %345 = vector.shape_cast %344 : vector<1x2x2x32xf32> to vector<2x2x32xf32>
    %346 = vector.shape_cast %343 : vector<2x2x32xf32> to vector<1x2x2x32xf32>
    tpu.vector_store %arg4[%c6_216, %c0_217, %c0_218, %c0_219], %346 {strides = array<i32>} : memref<8x2x2x32xf32, #tpu.memory_space<vmem>>, vector<1x2x2x32xf32>,
    %c7 = arith.constant 7 : index
    %c0_220 = arith.constant 0 : index
    %c0_221 = arith.constant 0 : index
    %c0_222 = arith.constant 0 : index
    %347 = vector.load %arg1[%c7, %c0_220, %c0_221, %c0_222] : memref<8x2x2x128xf32, #tpu.memory_space<vmem>>, vector<1x2x2x128xf32>
    %348 = vector.shape_cast %347 : vector<1x2x2x128xf32> to vector<2x2x128xf32>
    %c7_223 = arith.constant 7 : index
    %c0_224 = arith.constant 0 : index
    %c0_225 = arith.constant 0 : index
    %c0_226 = arith.constant 0 : index
    %349 = vector.load %arg2[%c7_223, %c0_224, %c0_225, %c0_226] : memref<8x2x2x1xf32, #tpu.memory_space<vmem>>, vector<1x2x2x1xf32>
    %350 = vector.shape_cast %349 : vector<1x2x2x1xf32> to vector<2x2x1xf32>
    %c0_227 = arith.constant 0 : index
    %c0_228 = arith.constant 0 : index
    %c0_229 = arith.constant 0 : index
    %351 = vector.load %arg5[%c0_227, %c0_228, %c0_229] : memref<2x2x32xf32, #tpu.memory_space<vmem>>, vector<2x2x32xf32>
    %c0_230 = arith.constant 0 : index
    %c0_231 = arith.constant 0 : index
    %c0_232 = arith.constant 0 : index
    %352 = vector.load %arg6[%c0_230, %c0_231, %c0_232] : memref<2x2x32xf32, #tpu.memory_space<vmem>>, vector<2x2x32xf32>
    %cst_233 = arith.constant dense<0.000000e+00> : vector<2x2x128xf32>
    %353 = tpu.matmul %351, %3, %cst_233 {dimension_numbers = #tpu.dot_dimension_numbers<[2], [1], [1], [2], [0, 0, 0, 1, 1, 2], [0], [0]>} : vector<2x2x32xf32>, vector<2x32x128xf32>, vector<2x2x128xf32> -> vector<2x2x128xf32>
    %354 = arith.addf %348, %353 : vector<2x2x128xf32>
    %355 = vector.extract_strided_slice %354 {offsets = [0, 0, 0], sizes = [2, 2, 32], strides = [1, 1, 1]} : vector<2x2x128xf32> to vector<2x2x32xf32>
    %356 = arith.negf %355 : vector<2x2x32xf32>
    %357 = math.exp %356 : vector<2x2x32xf32>
    %cst_234 = arith.constant 1.000000e+00 : f32
    %358 = vector.broadcast %cst_234 : f32 to vector<2x2x32xf32>
    %359 = arith.addf %358, %357 : vector<2x2x32xf32>
    %360 = arith.divf %358, %359 : vector<2x2x32xf32>
    %361 = vector.extract_strided_slice %354 {offsets = [0, 0, 32], sizes = [2, 2, 32], strides = [1, 1, 1]} : vector<2x2x128xf32> to vector<2x2x32xf32>
    %362 = arith.negf %361 : vector<2x2x32xf32>
    %363 = math.exp %362 : vector<2x2x32xf32>
    %cst_235 = arith.constant 1.000000e+00 : f32
    %364 = vector.broadcast %cst_235 : f32 to vector<2x2x32xf32>
    %365 = arith.addf %364, %363 : vector<2x2x32xf32>
    %366 = arith.divf %364, %365 : vector<2x2x32xf32>
    %367 = vector.extract_strided_slice %354 {offsets = [0, 0, 64], sizes = [2, 2, 32], strides = [1, 1, 1]} : vector<2x2x128xf32> to vector<2x2x32xf32>
    %368 = math.tanh %367 : vector<2x2x32xf32>
    %369 = vector.extract_strided_slice %354 {offsets = [0, 0, 96], sizes = [2, 2, 32], strides = [1, 1, 1]} : vector<2x2x128xf32> to vector<2x2x32xf32>
    %370 = arith.negf %369 : vector<2x2x32xf32>
    %371 = math.exp %370 : vector<2x2x32xf32>
    %cst_236 = arith.constant 1.000000e+00 : f32
    %372 = vector.broadcast %cst_236 : f32 to vector<2x2x32xf32>
    %373 = arith.addf %372, %371 : vector<2x2x32xf32>
    %374 = arith.divf %372, %373 : vector<2x2x32xf32>
    %375 = arith.mulf %366, %352 : vector<2x2x32xf32>
    %376 = arith.mulf %360, %368 : vector<2x2x32xf32>
    %377 = arith.addf %375, %376 : vector<2x2x32xf32>
    %378 = math.tanh %377 : vector<2x2x32xf32>
    %379 = arith.mulf %374, %378 : vector<2x2x32xf32>
    %cst_237 = arith.constant 0.000000e+00 : f32
    %380 = vector.broadcast %cst_237 : f32 to vector<2x2x1xf32>
    %381 = arith.cmpf ogt, %350, %380 : vector<2x2x1xf32>
    %382 = vector.shape_cast %381 : vector<2x2x1xi1> to vector<2x2x1xi1>
    %383 = vector.broadcast %382 : vector<2x2x1xi1> to vector<2x2x32xi1>
    %384 = arith.select %383, %377, %352 : vector<2x2x32xi1>, vector<2x2x32xf32>
    %c0_238 = arith.constant 0 : index
    %c0_239 = arith.constant 0 : index
    %c0_240 = arith.constant 0 : index
    %385 = vector.load %arg6[%c0_238, %c0_239, %c0_240] : memref<2x2x32xf32, #tpu.memory_space<vmem>>, vector<2x2x32xf32>
    tpu.vector_store %arg6[%c0_238, %c0_239, %c0_240], %384 {strides = array<i32>} : memref<2x2x32xf32, #tpu.memory_space<vmem>>, vector<2x2x32xf32>,
    %386 = vector.shape_cast %381 : vector<2x2x1xi1> to vector<2x2x1xi1>
    %387 = vector.broadcast %386 : vector<2x2x1xi1> to vector<2x2x32xi1>
    %388 = arith.select %387, %379, %351 : vector<2x2x32xi1>, vector<2x2x32xf32>
    %c0_241 = arith.constant 0 : index
    %c0_242 = arith.constant 0 : index
    %c0_243 = arith.constant 0 : index
    %389 = vector.load %arg5[%c0_241, %c0_242, %c0_243] : memref<2x2x32xf32, #tpu.memory_space<vmem>>, vector<2x2x32xf32>
    tpu.vector_store %arg5[%c0_241, %c0_242, %c0_243], %388 {strides = array<i32>} : memref<2x2x32xf32, #tpu.memory_space<vmem>>, vector<2x2x32xf32>,
    %c0_244 = arith.constant 0 : index
    %c0_245 = arith.constant 0 : index
    %c0_246 = arith.constant 0 : index
    %390 = vector.load %arg5[%c0_244, %c0_245, %c0_246] : memref<2x2x32xf32, #tpu.memory_space<vmem>>, vector<2x2x32xf32>
    %391 = vector.broadcast %350 : vector<2x2x1xf32> to vector<2x2x32xf32>
    %392 = arith.mulf %390, %391 : vector<2x2x32xf32>
    %c7_247 = arith.constant 7 : index
    %c0_248 = arith.constant 0 : index
    %c0_249 = arith.constant 0 : index
    %c0_250 = arith.constant 0 : index
    %393 = vector.load %arg4[%c7_247, %c0_248, %c0_249, %c0_250] : memref<8x2x2x32xf32, #tpu.memory_space<vmem>>, vector<1x2x2x32xf32>
    %394 = vector.shape_cast %393 : vector<1x2x2x32xf32> to vector<2x2x32xf32>
    %395 = vector.shape_cast %392 : vector<2x2x32xf32> to vector<1x2x2x32xf32>
    tpu.vector_store %arg4[%c7_247, %c0_248, %c0_249, %c0_250], %395 {strides = array<i32>} : memref<8x2x2x32xf32, #tpu.memory_space<vmem>>, vector<1x2x2x32xf32>,
    return
  }
  func.func @transform_0(%arg0: i32) -> (i32, i32, i32, i32) {
    %c0_i32 = arith.constant 0 : i32
    %c0_i32_0 = arith.constant 0 : i32
    %c0_i32_1 = arith.constant 0 : i32
    %c0_i32_2 = arith.constant 0 : i32
    return %arg0, %c0_i32, %c0_i32_0, %c0_i32_1 : i32, i32, i32, i32
  }
  func.func @transform_1(%arg0: i32) -> (i32, i32, i32, i32) {
    %c0_i32 = arith.constant 0 : i32
    %c0_i32_0 = arith.constant 0 : i32
    %c0_i32_1 = arith.constant 0 : i32
    %c0_i32_2 = arith.constant 0 : i32
    return %arg0, %c0_i32, %c0_i32_0, %c0_i32_1 : i32, i32, i32, i32
  }
  func.func @transform_2(%arg0: i32) -> (i32, i32, i32) {
    %c0_i32 = arith.constant 0 : i32
    %c0_i32_0 = arith.constant 0 : i32
    %c0_i32_1 = arith.constant 0 : i32
    %c0_i32_2 = arith.constant 0 : i32
    return %c0_i32, %c0_i32_0, %c0_i32_1 : i32, i32, i32
  }
  func.func @transform_3(%arg0: i32) -> (i32, i32, i32, i32) {
    %c0_i32 = arith.constant 0 : i32
    %c0_i32_0 = arith.constant 0 : i32
    %c0_i32_1 = arith.constant 0 : i32
    %c0_i32_2 = arith.constant 0 : i32
    return %arg0, %c0_i32, %c0_i32_0, %c0_i32_1 : i32, i32, i32, i32
  }
}

module attributes {stable_mosaic.version = 11 : i64} {
  func.func @_head_kernel(%arg0: i32, %arg1: memref<1x8x64xf32, #tpu.memory_space<vmem>>, %arg2: memref<1x8x1xf32, #tpu.memory_space<vmem>>, %arg3: memref<1x1x128xf32, #tpu.memory_space<vmem>>, %arg4: memref<64x128xf32, #tpu.memory_space<vmem>>, %arg5: memref<64x128xf32, #tpu.memory_space<vmem>>, %arg6: memref<128x128xf32, #tpu.memory_space<vmem>>, %arg7: memref<1x128xf32, #tpu.memory_space<vmem>>, %arg8: memref<128x4xf32, #tpu.memory_space<vmem>>, %arg9: memref<1x4xf32, #tpu.memory_space<vmem>>, %arg10: memref<1x8x4xf32, #tpu.memory_space<vmem>>) attributes {dimension_semantics = [#tpu.dimension_semantics<parallel>], iteration_bounds = array<i64: 2>, scalar_prefetch = 0 : i64, scratch_operands = 0 : i64, tpu.core_type = #tpu.core_type<tc>, window_params = [{transform_indices = @transform_0, window_bounds = array<i64: 1, 8, 64>}, {transform_indices = @transform_1, window_bounds = array<i64: 1, 8, 1>}, {transform_indices = @transform_2, window_bounds = array<i64: 1, 1, 128>}, {pipeline_mode = #tpu.pipeline_mode<synchronous>, transform_indices = @transform_3, window_bounds = array<i64: 64, 128>}, {pipeline_mode = #tpu.pipeline_mode<synchronous>, transform_indices = @transform_4, window_bounds = array<i64: 64, 128>}, {pipeline_mode = #tpu.pipeline_mode<synchronous>, transform_indices = @transform_5, window_bounds = array<i64: 128, 128>}, {pipeline_mode = #tpu.pipeline_mode<synchronous>, transform_indices = @transform_6, window_bounds = array<i64: 1, 128>}, {pipeline_mode = #tpu.pipeline_mode<synchronous>, transform_indices = @transform_7, window_bounds = array<i64: 128, 4>}, {pipeline_mode = #tpu.pipeline_mode<synchronous>, transform_indices = @transform_8, window_bounds = array<i64: 1, 4>}, {transform_indices = @transform_9, window_bounds = array<i64: 1, 8, 4>}]} {
    %c0 = arith.constant 0 : index
    %c0_0 = arith.constant 0 : index
    %c0_1 = arith.constant 0 : index
    %0 = vector.load %arg1[%c0, %c0_0, %c0_1] : memref<1x8x64xf32, #tpu.memory_space<vmem>>, vector<1x8x64xf32>
    %1 = vector.shape_cast %0 : vector<1x8x64xf32> to vector<8x64xf32>
    %c0_2 = arith.constant 0 : index
    %c0_3 = arith.constant 0 : index
    %c0_4 = arith.constant 0 : index
    %2 = vector.load %arg2[%c0_2, %c0_3, %c0_4] : memref<1x8x1xf32, #tpu.memory_space<vmem>>, vector<1x8x1xf32>
    %3 = vector.shape_cast %2 : vector<1x8x1xf32> to vector<8x1xf32>
    %cst = arith.constant 1.000000e+00 : f32
    %4 = vector.broadcast %cst : f32 to vector<8x1xf32>
    %5 = arith.subf %4, %3 : vector<8x1xf32>
    %cst_5 = arith.constant 1.000000e+10 : f32
    %6 = vector.broadcast %cst_5 : f32 to vector<8x1xf32>
    %7 = arith.mulf %5, %6 : vector<8x1xf32>
    %8 = vector.broadcast %7 : vector<8x1xf32> to vector<8x64xf32>
    %9 = arith.subf %1, %8 : vector<8x64xf32>
    %cst_6 = arith.constant dense<0xFF800000> : vector<64xf32>
    %10 = vector.multi_reduction <maximumf>, %9, %cst_6 [0] : vector<8x64xf32> to vector<64xf32>
    %11 = vector.shape_cast %10 : vector<64xf32> to vector<1x64xf32>
    %c0_7 = arith.constant 0 : index
    %c0_8 = arith.constant 0 : index
    %12 = vector.load %arg5[%c0_7, %c0_8] : memref<64x128xf32, #tpu.memory_space<vmem>>, vector<64x128xf32>
    %cst_9 = arith.constant dense<0.000000e+00> : vector<1x128xf32>
    %13 = tpu.matmul %11, %12, %cst_9 {dimension_numbers = #tpu.dot_dimension_numbers<[1], [0], [0], [1], [0, 0, 1, 1], [], []>} : vector<1x64xf32>, vector<64x128xf32>, vector<1x128xf32> -> vector<1x128xf32>
    %c0_10 = arith.constant 0 : index
    %c0_11 = arith.constant 0 : index
    %c0_12 = arith.constant 0 : index
    %14 = vector.load %arg3[%c0_10, %c0_11, %c0_12] : memref<1x1x128xf32, #tpu.memory_space<vmem>>, vector<1x1x128xf32>
    %15 = vector.shape_cast %14 : vector<1x1x128xf32> to vector<1x128xf32>
    %c0_13 = arith.constant 0 : index
    %c0_14 = arith.constant 0 : index
    %16 = vector.load %arg6[%c0_13, %c0_14] : memref<128x128xf32, #tpu.memory_space<vmem>>, vector<128x128xf32>
    %cst_15 = arith.constant dense<0.000000e+00> : vector<1x128xf32>
    %17 = tpu.matmul %15, %16, %cst_15 {dimension_numbers = #tpu.dot_dimension_numbers<[1], [0], [0], [1], [0, 0, 1, 1], [], []>} : vector<1x128xf32>, vector<128x128xf32>, vector<1x128xf32> -> vector<1x128xf32>
    %18 = arith.addf %13, %17 : vector<1x128xf32>
    %c0_16 = arith.constant 0 : index
    %c0_17 = arith.constant 0 : index
    %19 = vector.load %arg7[%c0_16, %c0_17] : memref<1x128xf32, #tpu.memory_space<vmem>>, vector<1x128xf32>
    %20 = arith.addf %18, %19 : vector<1x128xf32>
    %c0_18 = arith.constant 0 : index
    %c0_19 = arith.constant 0 : index
    %21 = vector.load %arg4[%c0_18, %c0_19] : memref<64x128xf32, #tpu.memory_space<vmem>>, vector<64x128xf32>
    %cst_20 = arith.constant dense<0.000000e+00> : vector<8x128xf32>
    %22 = tpu.matmul %1, %21, %cst_20 {dimension_numbers = #tpu.dot_dimension_numbers<[1], [0], [0], [1], [0, 0, 1, 1], [], []>} : vector<8x64xf32>, vector<64x128xf32>, vector<8x128xf32> -> vector<8x128xf32>
    %23 = vector.broadcast %20 : vector<1x128xf32> to vector<8x128xf32>
    %24 = arith.addf %22, %23 : vector<8x128xf32>
    %cst_21 = arith.constant 0.000000e+00 : f32
    %25 = vector.broadcast %cst_21 : f32 to vector<8x128xf32>
    %26 = arith.maximumf %24, %25 : vector<8x128xf32>
    %c0_22 = arith.constant 0 : index
    %c0_23 = arith.constant 0 : index
    %27 = vector.load %arg8[%c0_22, %c0_23] : memref<128x4xf32, #tpu.memory_space<vmem>>, vector<128x4xf32>
    %cst_24 = arith.constant dense<0.000000e+00> : vector<8x4xf32>
    %28 = tpu.matmul %26, %27, %cst_24 {dimension_numbers = #tpu.dot_dimension_numbers<[1], [0], [0], [1], [0, 0, 1, 1], [], []>} : vector<8x128xf32>, vector<128x4xf32>, vector<8x4xf32> -> vector<8x4xf32>
    %c0_25 = arith.constant 0 : index
    %c0_26 = arith.constant 0 : index
    %29 = vector.load %arg9[%c0_25, %c0_26] : memref<1x4xf32, #tpu.memory_space<vmem>>, vector<1x4xf32>
    %30 = vector.broadcast %29 : vector<1x4xf32> to vector<8x4xf32>
    %31 = arith.addf %28, %30 : vector<8x4xf32>
    %c0_27 = arith.constant 0 : index
    %c0_28 = arith.constant 0 : index
    %c0_29 = arith.constant 0 : index
    %32 = vector.load %arg10[%c0_27, %c0_28, %c0_29] : memref<1x8x4xf32, #tpu.memory_space<vmem>>, vector<1x8x4xf32>
    %33 = vector.shape_cast %32 : vector<1x8x4xf32> to vector<8x4xf32>
    %34 = vector.shape_cast %31 : vector<8x4xf32> to vector<1x8x4xf32>
    tpu.vector_store %arg10[%c0_27, %c0_28, %c0_29], %34 {strides = array<i32>} : memref<1x8x4xf32, #tpu.memory_space<vmem>>, vector<1x8x4xf32>,
    return
  }
  func.func @transform_0(%arg0: i32) -> (i32, i32, i32) {
    %c0_i32 = arith.constant 0 : i32
    %c0_i32_0 = arith.constant 0 : i32
    %c0_i32_1 = arith.constant 0 : i32
    return %arg0, %c0_i32, %c0_i32_0 : i32, i32, i32
  }
  func.func @transform_1(%arg0: i32) -> (i32, i32, i32) {
    %c0_i32 = arith.constant 0 : i32
    %c0_i32_0 = arith.constant 0 : i32
    %c0_i32_1 = arith.constant 0 : i32
    return %arg0, %c0_i32, %c0_i32_0 : i32, i32, i32
  }
  func.func @transform_2(%arg0: i32) -> (i32, i32, i32) {
    %c0_i32 = arith.constant 0 : i32
    %c0_i32_0 = arith.constant 0 : i32
    %c0_i32_1 = arith.constant 0 : i32
    return %arg0, %c0_i32, %c0_i32_0 : i32, i32, i32
  }
  func.func @transform_3(%arg0: i32) -> (i32, i32) {
    %c0_i32 = arith.constant 0 : i32
    %c0_i32_0 = arith.constant 0 : i32
    %c0_i32_1 = arith.constant 0 : i32
    return %c0_i32, %c0_i32_0 : i32, i32
  }
  func.func @transform_4(%arg0: i32) -> (i32, i32) {
    %c0_i32 = arith.constant 0 : i32
    %c0_i32_0 = arith.constant 0 : i32
    %c0_i32_1 = arith.constant 0 : i32
    return %c0_i32, %c0_i32_0 : i32, i32
  }
  func.func @transform_5(%arg0: i32) -> (i32, i32) {
    %c0_i32 = arith.constant 0 : i32
    %c0_i32_0 = arith.constant 0 : i32
    %c0_i32_1 = arith.constant 0 : i32
    return %c0_i32, %c0_i32_0 : i32, i32
  }
  func.func @transform_6(%arg0: i32) -> (i32, i32) {
    %c0_i32 = arith.constant 0 : i32
    %c0_i32_0 = arith.constant 0 : i32
    %c0_i32_1 = arith.constant 0 : i32
    return %c0_i32, %c0_i32_0 : i32, i32
  }
  func.func @transform_7(%arg0: i32) -> (i32, i32) {
    %c0_i32 = arith.constant 0 : i32
    %c0_i32_0 = arith.constant 0 : i32
    %c0_i32_1 = arith.constant 0 : i32
    return %c0_i32, %c0_i32_0 : i32, i32
  }
  func.func @transform_8(%arg0: i32) -> (i32, i32) {
    %c0_i32 = arith.constant 0 : i32
    %c0_i32_0 = arith.constant 0 : i32
    %c0_i32_1 = arith.constant 0 : i32
    return %c0_i32, %c0_i32_0 : i32, i32
  }
  func.func @transform_9(%arg0: i32) -> (i32, i32, i32) {
    %c0_i32 = arith.constant 0 : i32
    %c0_i32_0 = arith.constant 0 : i32
    %c0_i32_1 = arith.constant 0 : i32
    return %arg0, %c0_i32, %c0_i32_0 : i32, i32, i32
  }
}

</mosaic_0001>

<llo_original>
// kernel: reverse
$region0: #{reverse}
  %s0 = inlined_call_operand.vmem [shape: f32[8,2], index: 0, kind: input, shape index: {}]
  %s1 = inlined_call_operand.vmem [shape: f32[8,2], index: 1, kind: output, shape index: {}]
  %v2 = vlaneseq
  %v3 = vsub.s32 7, %v2
  %4 = vset.pattern.permute.xlu0 %v3
  $region1: #{reverse} parent=0
    #allocation0 [shape = 'u8[4096]{0}', space=vmem, size = 0x1000, scoped, tag = 'operand span for operand 0']
    #allocation1 [shape = 'u8[1024]{0}', space=vmem, size = 0x400, scoped, tag = 'packed  for operand 0']
    #allocation2 [shape = 'u8[4096]{0}', space=vmem, size = 0x1000, scoped, tag = 'operand span for operand 1']
    #allocation3 [shape = 'u8[1024]{0}', space=vmem, size = 0x400, scoped, tag = 'packed  for operand 1']
    // Predicated region
    $region2: #{reverse} parent=1 // pred_check
      _
    $region3: #{reverse} parent=1 // pred_check_branch
      %6 = sbr.rel (0) target = $region5
    $region4: #{reverse} parent=1 // pred_region
      // Predicated region
      $region6: #{reverse} parent=4 // pred_check
        _
      $region7: #{reverse} parent=4 // pred_check_branch
        %8 = sbr.rel target = $region9
      $region8: #{reverse} parent=4 // pred_region
        // Predicated region
        $region21: #{reverse} parent=8 // pred_check
          _
        $region22: #{reverse} parent=8 // pred_check_branch
          %24 = sbr.rel (0) target = $region24
        $region23: #{reverse} parent=8 // pred_region
          %s26 = ssub.s32 4, 1
          loop: start=0, step=1, limit=1
          $region25: #{reverse} parent=23 // loop_pre_header
            _
          $region26: #{reverse} parent=23 // loop_header
            %s28 = sphi 0, %s32
            %p29 = scmp.ge.s32.totalorder %s28, 1
            %s33 = sphi %s0, %s0
            %s34 = sphi [#allocation1], [#allocation1]
          $region27: #{reverse} parent=23 // loop_header_branch
            %31 = sbr.rel (%p29) target = $region31
          $region28: #{reverse} parent=23 // loop_body
            %v35 = vld [vmem:[%s33] sm:%s26]
            %36 = vst [vmem:[%s34] sm:%s26] %v35
          $region29: #{reverse} parent=23 // loop_footer
            %s32 = sadd.s32 1, %s28
          $region30: #{reverse} parent=23 // loop_footer_branch
            %27 = sbr.rel target = $region26
          $region31: #{reverse} parent=23 // loop_exit
            _
        $region24: #{reverse} parent=8 // pred_fallthru
          _
      $region9: #{reverse} parent=4 // pred_fallthru
        _
      // Predicated region
      $region10: #{reverse} parent=4 // pred_check
        _
      $region11: #{reverse} parent=4 // pred_check_branch
        %10 = sbr.rel (0) target = $region13
      $region12: #{reverse} parent=4 // pred_region
        %s12 = ssub.s32 4, 1
        loop: start=0, step=1, limit=1
        $region14: #{reverse} parent=12 // loop_pre_header
          _
        $region15: #{reverse} parent=12 // loop_header
          %s14 = sphi 0, %s18
          %p15 = scmp.ge.s32.totalorder %s14, 1
          %s19 = sphi %s0, %s0
          %s20 = sphi [#allocation1], [#allocation1]
        $region16: #{reverse} parent=12 // loop_header_branch
          %17 = sbr.rel (%p15) target = $region20
        $region17: #{reverse} parent=12 // loop_body
          %v21 = vld [vmem:[%s19] sm:%s12]
          %22 = vst [vmem:[%s20] sm:%s12] %v21
        $region18: #{reverse} parent=12 // loop_footer
          %s18 = sadd.s32 1, %s14
        $region19: #{reverse} parent=12 // loop_footer_branch
          %13 = sbr.rel target = $region15
        $region20: #{reverse} parent=12 // loop_exit
          _
      $region13: #{reverse} parent=4 // pred_fallthru
        _
    $region5: #{reverse} parent=1 // pred_fallthru
      _
    %37 = vnop
    %s39 = ssub.s32 4, 1
    %v40 = vld [vmem:[#allocation1] sm:%s39]
    %41 = vst [vmem:[#allocation0] sm:%s39] %v40
    %v42 = vld [vmem:[#allocation0] sm:$0xff]
    %43 = vperm.xlu0 %4, %v42
    %v44 = vpop.permute.xlu0 %43
    %45 = vst [vmem:[#allocation2] sm:$0xff] %v44
    %s47 = ssub.s32 4, 1
    %v48 = vld [vmem:[#allocation2] sm:%s47]
    %s50 = ssub.s32 4, 1
    %51 = vst [vmem:[#allocation3] sm:%s50] %v48
    // Predicated region
    $region32: #{reverse} parent=1 // pred_check
      _
    $region33: #{reverse} parent=1 // pred_check_branch
      %53 = sbr.rel (0) target = $region35
    $region34: #{reverse} parent=1 // pred_region
      // Predicated region
      $region36: #{reverse} parent=34 // pred_check
        _
      $region37: #{reverse} parent=34 // pred_check_branch
        %55 = sbr.rel target = $region39
      $region38: #{reverse} parent=34 // pred_region
        // Predicated region
        $region51: #{reverse} parent=38 // pred_check
          _
        $region52: #{reverse} parent=38 // pred_check_branch
          %71 = sbr.rel (0) target = $region54
        $region53: #{reverse} parent=38 // pred_region
          %s73 = ssub.s32 4, 1
          loop: start=0, step=1, limit=1
          $region55: #{reverse} parent=53 // loop_pre_header
            _
          $region56: #{reverse} parent=53 // loop_header
            %s75 = sphi 0, %s79
            %p76 = scmp.ge.s32.totalorder %s75, 1
            %s80 = sphi [#allocation3], [#allocation3]
            %s81 = sphi %s1, %s1
          $region57: #{reverse} parent=53 // loop_header_branch
            %78 = sbr.rel (%p76) target = $region61
          $region58: #{reverse} parent=53 // loop_body
            %v82 = vld [vmem:[%s80] sm:%s73]
            %83 = vst [vmem:[%s81] sm:%s73] %v82
          $region59: #{reverse} parent=53 // loop_footer
            %s79 = sadd.s32 1, %s75
          $region60: #{reverse} parent=53 // loop_footer_branch
            %74 = sbr.rel target = $region56
          $region61: #{reverse} parent=53 // loop_exit
            _
        $region54: #{reverse} parent=38 // pred_fallthru
          _
      $region39: #{reverse} parent=34 // pred_fallthru
        _
      // Predicated region
      $region40: #{reverse} parent=34 // pred_check
        _
      $region41: #{reverse} parent=34 // pred_check_branch
        %57 = sbr.rel (0) target = $region43
      $region42: #{reverse} parent=34 // pred_region
        %s59 = ssub.s32 4, 1
        loop: start=0, step=1, limit=1
        $region44: #{reverse} parent=42 // loop_pre_header
          _
        $region45: #{reverse} parent=42 // loop_header
          %s61 = sphi 0, %s65
          %p62 = scmp.ge.s32.totalorder %s61, 1
          %s66 = sphi [#allocation3], [#allocation3]
          %s67 = sphi %s1, %s1
        $region46: #{reverse} parent=42 // loop_header_branch
          %64 = sbr.rel (%p62) target = $region50
        $region47: #{reverse} parent=42 // loop_body
          %v68 = vld [vmem:[%s66] sm:%s59]
          %69 = vst [vmem:[%s67] sm:%s59] %v68
        $region48: #{reverse} parent=42 // loop_footer
          %s65 = sadd.s32 1, %s61
        $region49: #{reverse} parent=42 // loop_footer_branch
          %60 = sbr.rel target = $region45
        $region50: #{reverse} parent=42 // loop_exit
          _
      $region43: #{reverse} parent=34 // pred_fallthru
        _
    $region35: #{reverse} parent=1 // pred_fallthru
      _
    %84 = vnop

// kernel: run.5
$region0: #{run.5}
  #allocation0 [shape = 'u32[]', space=smem, size = 0x4, offset = 0x4, fixed_abs, tag = 'smem constant byte address 0x4 - core index']
  #allocation1 [shape = 'u32[72,128]{1,0:T(1,128)}', space=vmem, size = 0x9000, scoped, tag = 'internal scratch']
  %s0 = inlined_call_operand.vmem [shape: f32[16,64], index: 0, kind: input, shape index: {}]
  %s1 = inlined_call_operand.vmem [shape: f32[64,256], index: 1, kind: input, shape index: {}]
  %s2 = inlined_call_operand.vmem [shape: f32[1,256], index: 2, kind: input, shape index: {}]
  %s3 = inlined_call_operand.vmem [shape: f32[16,256], index: 3, kind: output, shape index: {}]
  %s4 = sld [smem:[#allocation0]]
  $region22: #{run.5} parent=0
    _
  %s6 = ssub.s32 1, %s4
  %s7 = scalar_select 0, %s6, %s4
  // Predicated region
  $region2: #{run.5} parent=0 // pred_check
    _
  $region3: #{run.5} parent=0 // pred_check_branch
    %9 = sbr.rel (0) target = $region5
  $region4: #{run.5} parent=0 // pred_region
    _
  $region5: #{run.5} parent=0 // pred_fallthru
    _
  // Predicated region
  $region6: #{run.5} parent=0 // pred_check
    _
  $region7: #{run.5} parent=0 // pred_check_branch
    %11 = sbr.rel (0) target = $region9
  $region8: #{run.5} parent=0 // pred_region
    _
  $region9: #{run.5} parent=0 // pred_fallthru
    _
  // Predicated region
  $region10: #{run.5} parent=0 // pred_check
    _
  $region11: #{run.5} parent=0 // pred_check_branch
    %13 = sbr.rel (0) target = $region13
  $region12: #{run.5} parent=0 // pred_region
    _
  $region13: #{run.5} parent=0 // pred_fallthru
    _
  %v14 = vld [vmem:[%s0] sm:$0xff]
  %v15 = vld [vmem:[%s0 + $0x8] sm:$0xff]
  %v16 = vld [vmem:[%s1] sm:$0xff]
  %v17 = vld [vmem:[%s1 + $0x8] sm:$0xff]
  %v18 = vld [vmem:[%s1 + $0x10] sm:$0xff]
  %v19 = vld [vmem:[%s1 + $0x18] sm:$0xff]
  %v20 = vld [vmem:[%s1 + $0x20] sm:$0xff]
  %v21 = vld [vmem:[%s1 + $0x28] sm:$0xff]
  %v22 = vld [vmem:[%s1 + $0x30] sm:$0xff]
  %v23 = vld [vmem:[%s1 + $0x38] sm:$0xff]
  %v24 = vld [vmem:[%s1 + $0x40] sm:$0xff]
  %v25 = vld [vmem:[%s1 + $0x48] sm:$0xff]
  %v26 = vld [vmem:[%s1 + $0x50] sm:$0xff]
  %v27 = vld [vmem:[%s1 + $0x58] sm:$0xff]
  %v28 = vld [vmem:[%s1 + $0x60] sm:$0xff]
  %v29 = vld [vmem:[%s1 + $0x68] sm:$0xff]
  %v30 = vld [vmem:[%s1 + $0x70] sm:$0xff]
  %v31 = vld [vmem:[%s1 + $0x78] sm:$0xff]
  %v32 = vld [vmem:[%s2] sm:$0x3]
  %v34 = vperm.slane %v32, 0
  %v35 = vperm.slane %v32, 1
  %vm38 = vcmask 523264
  %v40 = vsel %vm38, %v14, 0
  %v43 = vsel %vm38, %v15, 0
  %45 = vmatpush.msra.mxu0 0.0
  %46 = vmatpush.msra.mxu0 0.0
  %47 = vmatpush.msra.mxu0 0.0
  %48 = vmatpush.msra.mxu0 0.0
  %49 = vmatpush.msra.mxu0 0.0
  %50 = vmatpush.msra.mxu0 0.0
  %51 = vmatpush.msra.mxu0 0.0
  %52 = vmatpush.msra.mxu0 0.0
  %53 = vmatpush.msra.mxu0 %v30
  %54 = vmatpush.msra.mxu0 %v28
  %55 = vmatpush.msra.mxu0 %v26
  %56 = vmatpush.msra.mxu0 %v24
  %57 = vmatpush.msra.mxu0 %v22
  %58 = vmatpush.msra.mxu0 %v20
  %59 = vmatpush.msra.mxu0 %v18
  %60 = vmatpush.msra.mxu0 %v16
  %61 = vmatmul.f32.gmra.mxu0 %v40
  %v62 = vpop.f32.mrf.mxu0
  %v63 = vadd.f32 %v34, %v62
  %64 = vmatmul.f32.gmra.mxu0 %v43
  %v65 = vpop.f32.mrf.mxu0
  %v66 = vadd.f32 %v34, %v65
  %67 = vdwg.mxu0
  %68 = vmatpush.msra.mxu0 0.0
  %69 = vmatpush.msra.mxu0 0.0
  %70 = vmatpush.msra.mxu0 0.0
  %71 = vmatpush.msra.mxu0 0.0
  %72 = vmatpush.msra.mxu0 0.0
  %73 = vmatpush.msra.mxu0 0.0
  %74 = vmatpush.msra.mxu0 0.0
  %75 = vmatpush.msra.mxu0 0.0
  %76 = vmatpush.msra.mxu0 %v31
  %77 = vmatpush.msra.mxu0 %v29
  %78 = vmatpush.msra.mxu0 %v27
  %79 = vmatpush.msra.mxu0 %v25
  %80 = vmatpush.msra.mxu0 %v23
  %81 = vmatpush.msra.mxu0 %v21
  %82 = vmatpush.msra.mxu0 %v19
  %83 = vmatpush.msra.mxu0 %v17
  %84 = vmatmul.f32.gmra.mxu0 %v40
  %v85 = vpop.f32.mrf.mxu0
  %v86 = vadd.f32 %v35, %v85
  %87 = vmatmul.f32.gmra.mxu0 %v43
  %v88 = vpop.f32.mrf.mxu0
  %v89 = vadd.f32 %v35, %v88
  %90 = vdwg.mxu0
  %91 = vst [vmem:[%s3] sm:$0xff] %v63
  %92 = vst [vmem:[%s3 + $0x8] sm:$0xff] %v86
  %93 = vst [vmem:[%s3 + $0x10] sm:$0xff] %v66
  %94 = vst [vmem:[%s3 + $0x18] sm:$0xff] %v89
  // Predicated region
  $region14: #{run.5} parent=0 // pred_check
    _
  $region15: #{run.5} parent=0 // pred_check_branch
    %96 = sbr.rel (0) target = $region17
  $region16: #{run.5} parent=0 // pred_region
    _
  $region17: #{run.5} parent=0 // pred_fallthru
    _
  // Predicated region
  $region18: #{run.5} parent=0 // pred_check
    _
  $region19: #{run.5} parent=0 // pred_check_branch
    %98 = sbr.rel (0) target = $region21
  $region20: #{run.5} parent=0 // pred_region
    _
  $region21: #{run.5} parent=0 // pred_fallthru
    _

// kernel: run.7
$region0: #{run.7}
  #allocation0 [shape = 'u32[]', space=smem, size = 0x4, offset = 0x4, fixed_abs, tag = 'smem constant byte address 0x4 - core index']
  #allocation1 [shape = 'u32[72,128]{1,0:T(1,128)}', space=vmem, size = 0x9000, scoped, tag = 'internal scratch']
  %s0 = inlined_call_operand.vmem [shape: f32[2,8,64], index: 0, kind: input, shape index: {}]
  %s1 = inlined_call_operand.vmem [shape: f32[2,8,1], index: 1, kind: input, shape index: {}]
  %s2 = inlined_call_operand.vmem [shape: f32[2,1,128], index: 2, kind: input, shape index: {}]
  %s3 = inlined_call_operand.vmem [shape: f32[64,128], index: 3, kind: input, shape index: {}]
  %s4 = inlined_call_operand.vmem [shape: f32[64,128], index: 4, kind: input, shape index: {}]
  %s5 = inlined_call_operand.vmem [shape: f32[128,128], index: 5, kind: input, shape index: {}]
  %s6 = inlined_call_operand.vmem [shape: f32[1,128], index: 6, kind: input, shape index: {}]
  %s7 = inlined_call_operand.vmem [shape: f32[128,4], index: 7, kind: input, shape index: {}]
  %s8 = inlined_call_operand.vmem [shape: f32[1,4], index: 8, kind: input, shape index: {}]
  %s9 = inlined_call_operand.vmem [shape: f32[2,8,4], index: 9, kind: output, shape index: {}]
  %s10 = sld [smem:[#allocation0]]
  $region69: #{run.7} parent=0
    _
  %s12 = ssub.s32 1, %s10
  %s13 = scalar_select 0, %s12, %s10
  loop: start=0, step=1, limit=4
  $region2: #{run.7} parent=0 // loop_pre_header
    _
  $region3: #{run.7} parent=0 // loop_header
    %s15 = sphi 0, %s19
    %p16 = scmp.ge.s32.totalorder %s15, 4
    %s25 = sphi 0, %s27
    %s28 = sphi 0, %s25
    %s29 = sphi 0, %s28
    %s45 = sphi 0, %s29
    %s51 = sphi 0, %s53
    %s54 = sphi 0, %s51
    %s55 = sphi 0, %s54
    %s71 = sphi 0, %s55
    %s77 = sphi 0, %s79
    %s80 = sphi 0, %s77
    %s81 = sphi 0, %s80
    %s97 = sphi 0, %s81
    %s101 = sphi 0, %s101
    %s103 = sphi 0, %s101
    %s104 = sphi 0, %s103
    %s118 = sphi 0, %s104
    %s122 = sphi 0, %s122
    %s124 = sphi 0, %s122
    %s125 = sphi 0, %s124
    %s139 = sphi 0, %s125
    %s143 = sphi 0, %s143
    %s145 = sphi 0, %s143
    %s146 = sphi 0, %s145
    %s160 = sphi 0, %s146
    %s164 = sphi 0, %s164
    %s166 = sphi 0, %s164
    %s167 = sphi 0, %s166
    %s181 = sphi 0, %s167
    %s185 = sphi 0, %s185
    %s187 = sphi 0, %s185
    %s188 = sphi 0, %s187
    %s202 = sphi 0, %s188
    %s206 = sphi 0, %s206
    %s208 = sphi 0, %s206
    %s209 = sphi 0, %s208
    %s223 = sphi 0, %s209
    %s229 = sphi 0, %s231
    %s232 = sphi 0, %s229
    %s233 = sphi 0, %s232
    %s249 = sphi 0, %s233
  $region4: #{run.7} parent=0 // loop_header_branch
    %18 = sbr.rel (%p16) target = $region8
  $region5: #{run.7} parent=0 // loop_body
    %s20 = ssub.s32 %s15, 1
    %s21 = ssub.s32 %s15, 2
    %s22 = sadd.s32 %s15, 1
    %s23 = ssub.s32 %s15, %s22
    %p24 = scmp.eq.s32.totalorder %s23, 0
    %s26 = sadd.s32 %s25, 1
    %s27 = scalar_select %p24, %s25, %s26
    %p30 = pneg %p24
    %p31 = scmp.eq.s32.totalorder %s15, 1
    %p32 = por %p30, %p31
    %p33 = scmp.ne.s32.totalorder %s25, %s28
    %p34 = scmp.eq.s32.totalorder %s15, 0
    %p35 = por %p33, %p34
    %p36 = scmp.ne.s32.totalorder %s25, %s28
    %p37 = scmp.eq.s32.totalorder %s20, 1
    %p38 = por %p36, %p37
    %p39 = scmp.ne.s32.totalorder %s28, %s29
    %p40 = scmp.eq.s32.totalorder %s20, 0
    %p41 = por %p39, %p40
    %p42 = scmp.ne.s32.totalorder %s28, %s29
    %p43 = scmp.eq.s32.totalorder %s21, 1
    %p44 = por %p42, %p43
    %p46 = scmp.ne.s32.totalorder %s29, %s45
    %p47 = scmp.eq.s32.totalorder %s21, 0
    %p48 = por %p46, %p47
    %s49 = ssub.s32 %s15, %s22
    %p50 = scmp.eq.s32.totalorder %s49, 0
    %s52 = sadd.s32 %s51, 1
    %s53 = scalar_select %p50, %s51, %s52
    %p56 = pneg %p50
    %p57 = scmp.eq.s32.totalorder %s15, 1
    %p58 = por %p56, %p57
    %p59 = scmp.ne.s32.totalorder %s51, %s54
    %p60 = scmp.eq.s32.totalorder %s15, 0
    %p61 = por %p59, %p60
    %p62 = scmp.ne.s32.totalorder %s51, %s54
    %p63 = scmp.eq.s32.totalorder %s20, 1
    %p64 = por %p62, %p63
    %p65 = scmp.ne.s32.totalorder %s54, %s55
    %p66 = scmp.eq.s32.totalorder %s20, 0
    %p67 = por %p65, %p66
    %p68 = scmp.ne.s32.totalorder %s54, %s55
    %p69 = scmp.eq.s32.totalorder %s21, 1
    %p70 = por %p68, %p69
    %p72 = scmp.ne.s32.totalorder %s55, %s71
    %p73 = scmp.eq.s32.totalorder %s21, 0
    %p74 = por %p72, %p73
    %s75 = ssub.s32 %s15, %s22
    %p76 = scmp.eq.s32.totalorder %s75, 0
    %s78 = sadd.s32 %s77, 1
    %s79 = scalar_select %p76, %s77, %s78
    %p82 = pneg %p76
    %p83 = scmp.eq.s32.totalorder %s15, 1
    %p84 = por %p82, %p83
    %p85 = scmp.ne.s32.totalorder %s77, %s80
    %p86 = scmp.eq.s32.totalorder %s15, 0
    %p87 = por %p85, %p86
    %p88 = scmp.ne.s32.totalorder %s77, %s80
    %p89 = scmp.eq.s32.totalorder %s20, 1
    %p90 = por %p88, %p89
    %p91 = scmp.ne.s32.totalorder %s80, %s81
    %p92 = scmp.eq.s32.totalorder %s20, 0
    %p93 = por %p91, %p92
    %p94 = scmp.ne.s32.totalorder %s80, %s81
    %p95 = scmp.eq.s32.totalorder %s21, 1
    %p96 = por %p94, %p95
    %p98 = scmp.ne.s32.totalorder %s81, %s97
    %p99 = scmp.eq.s32.totalorder %s21, 0
    %p100 = por %p98, %p99
    %s102 = sadd.s32 %s101, 1
    %p105 = scmp.eq.s32.totalorder %s15, 1
    %p106 = scmp.ne.s32.totalorder %s101, %s103
    %p107 = scmp.eq.s32.totalorder %s15, 0
    %p108 = por %p106, %p107
    %p109 = scmp.ne.s32.totalorder %s101, %s103
    %p110 = scmp.eq.s32.totalorder %s20, 1
    %p111 = por %p109, %p110
    %p112 = scmp.ne.s32.totalorder %s103, %s104
    %p113 = scmp.eq.s32.totalorder %s20, 0
    %p114 = por %p112, %p113
    %p115 = scmp.ne.s32.totalorder %s103, %s104
    %p116 = scmp.eq.s32.totalorder %s21, 1
    %p117 = por %p115, %p116
    %p119 = scmp.ne.s32.totalorder %s104, %s118
    %p120 = scmp.eq.s32.totalorder %s21, 0
    %p121 = por %p119, %p120
    %s123 = sadd.s32 %s122, 1
    %p126 = scmp.eq.s32.totalorder %s15, 1
    %p127 = scmp.ne.s32.totalorder %s122, %s124
    %p128 = scmp.eq.s32.totalorder %s15, 0
    %p129 = por %p127, %p128
    %p130 = scmp.ne.s32.totalorder %s122, %s124
    %p131 = scmp.eq.s32.totalorder %s20, 1
    %p132 = por %p130, %p131
    %p133 = scmp.ne.s32.totalorder %s124, %s125
    %p134 = scmp.eq.s32.totalorder %s20, 0
    %p135 = por %p133, %p134
    %p136 = scmp.ne.s32.totalorder %s124, %s125
    %p137 = scmp.eq.s32.totalorder %s21, 1
    %p138 = por %p136, %p137
    %p140 = scmp.ne.s32.totalorder %s125, %s139
    %p141 = scmp.eq.s32.totalorder %s21, 0
    %p142 = por %p140, %p141
    %s144 = sadd.s32 %s143, 1
    %p147 = scmp.eq.s32.totalorder %s15, 1
    %p148 = scmp.ne.s32.totalorder %s143, %s145
    %p149 = scmp.eq.s32.totalorder %s15, 0
    %p150 = por %p148, %p149
    %p151 = scmp.ne.s32.totalorder %s143, %s145
    %p152 = scmp.eq.s32.totalorder %s20, 1
    %p153 = por %p151, %p152
    %p154 = scmp.ne.s32.totalorder %s145, %s146
    %p155 = scmp.eq.s32.totalorder %s20, 0
    %p156 = por %p154, %p155
    %p157 = scmp.ne.s32.totalorder %s145, %s146
    %p158 = scmp.eq.s32.totalorder %s21, 1
    %p159 = por %p157, %p158
    %p161 = scmp.ne.s32.totalorder %s146, %s160
    %p162 = scmp.eq.s32.totalorder %s21, 0
    %p163 = por %p161, %p162
    %s165 = sadd.s32 %s164, 1
    %p168 = scmp.eq.s32.totalorder %s15, 1
    %p169 = scmp.ne.s32.totalorder %s164, %s166
    %p170 = scmp.eq.s32.totalorder %s15, 0
    %p171 = por %p169, %p170
    %p172 = scmp.ne.s32.totalorder %s164, %s166
    %p173 = scmp.eq.s32.totalorder %s20, 1
    %p174 = por %p172, %p173
    %p175 = scmp.ne.s32.totalorder %s166, %s167
    %p176 = scmp.eq.s32.totalorder %s20, 0
    %p177 = por %p175, %p176
    %p178 = scmp.ne.s32.totalorder %s166, %s167
    %p179 = scmp.eq.s32.totalorder %s21, 1
    %p180 = por %p178, %p179
    %p182 = scmp.ne.s32.totalorder %s167, %s181
    %p183 = scmp.eq.s32.totalorder %s21, 0
    %p184 = por %p182, %p183
    %s186 = sadd.s32 %s185, 1
    %p189 = scmp.eq.s32.totalorder %s15, 1
    %p190 = scmp.ne.s32.totalorder %s185, %s187
    %p191 = scmp.eq.s32.totalorder %s15, 0
    %p192 = por %p190, %p191
    %p193 = scmp.ne.s32.totalorder %s185, %s187
    %p194 = scmp.eq.s32.totalorder %s20, 1
    %p195 = por %p193, %p194
    %p196 = scmp.ne.s32.totalorder %s187, %s188
    %p197 = scmp.eq.s32.totalorder %s20, 0
    %p198 = por %p196, %p197
    %p199 = scmp.ne.s32.totalorder %s187, %s188
    %p200 = scmp.eq.s32.totalorder %s21, 1
    %p201 = por %p199, %p200
    %p203 = scmp.ne.s32.totalorder %s188, %s202
    %p204 = scmp.eq.s32.totalorder %s21, 0
    %p205 = por %p203, %p204
    %s207 = sadd.s32 %s206, 1
    %p210 = scmp.eq.s32.totalorder %s15, 1
    %p211 = scmp.ne.s32.totalorder %s206, %s208
    %p212 = scmp.eq.s32.totalorder %s15, 0
    %p213 = por %p211, %p212
    %p214 = scmp.ne.s32.totalorder %s206, %s208
    %p215 = scmp.eq.s32.totalorder %s20, 1
    %p216 = por %p214, %p215
    %p217 = scmp.ne.s32.totalorder %s208, %s209
    %p218 = scmp.eq.s32.totalorder %s20, 0
    %p219 = por %p217, %p218
    %p220 = scmp.ne.s32.totalorder %s208, %s209
    %p221 = scmp.eq.s32.totalorder %s21, 1
    %p222 = por %p220, %p221
    %p224 = scmp.ne.s32.totalorder %s209, %s223
    %p225 = scmp.eq.s32.totalorder %s21, 0
    %p226 = por %p224, %p225
    %s227 = ssub.s32 %s15, %s22
    %p228 = scmp.eq.s32.totalorder %s227, 0
    %s230 = sadd.s32 %s229, 1
    %s231 = scalar_select %p228, %s229, %s230
    %p234 = pneg %p228
    %p235 = scmp.eq.s32.totalorder %s15, 1
    %p236 = por %p234, %p235
    %p237 = scmp.ne.s32.totalorder %s229, %s232
    %p238 = scmp.eq.s32.totalorder %s15, 0
    %p239 = por %p237, %p238
    %p240 = scmp.ne.s32.totalorder %s229, %s232
    %p241 = scmp.eq.s32.totalorder %s20, 1
    %p242 = por %p240, %p241
    %p243 = scmp.ne.s32.totalorder %s232, %s233
    %p244 = scmp.eq.s32.totalorder %s20, 0
    %p245 = por %p243, %p244
    %p246 = scmp.ne.s32.totalorder %s232, %s233
    %p247 = scmp.eq.s32.totalorder %s21, 1
    %p248 = por %p246, %p247
    %p250 = scmp.ne.s32.totalorder %s233, %s249
    %p251 = scmp.eq.s32.totalorder %s21, 0
    %p252 = por %p250, %p251
    %p253 = scmp.le.s32.totalorder 1, %s15
    %p254 = scmp.lt.s32.totalorder %s15, 3
    %p255 = pnand %p253, %p254
    %p256 = pneg %p255
    // Predicated region
    $region9: #{run.7} parent=5 // pred_check
      _
    $region10: #{run.7} parent=5 // pred_check_branch
      %258 = sbr.rel (%p255) target = $region12
    $region11: #{run.7} parent=5 // pred_region
      %s259 = ssub.s32 %s15, 1
      // Predicated region
      $region13: #{run.7} parent=11 // pred_check
        %p260 = pneg %p114
      $region14: #{run.7} parent=11 // pred_check_branch
        %262 = sbr.rel (%p260) target = $region16
      $region15: #{run.7} parent=11 // pred_region
        _
      $region16: #{run.7} parent=11 // pred_fallthru
        _
      // Predicated region
      $region17: #{run.7} parent=11 // pred_check
        %p263 = pneg %p135
      $region18: #{run.7} parent=11 // pred_check_branch
        %265 = sbr.rel (%p263) target = $region20
      $region19: #{run.7} parent=11 // pred_region
        _
      $region20: #{run.7} parent=11 // pred_fallthru
        _
      // Predicated region
      $region21: #{run.7} parent=11 // pred_check
        %p266 = pneg %p156
      $region22: #{run.7} parent=11 // pred_check_branch
        %268 = sbr.rel (%p266) target = $region24
      $region23: #{run.7} parent=11 // pred_region
        _
      $region24: #{run.7} parent=11 // pred_fallthru
        _
      // Predicated region
      $region25: #{run.7} parent=11 // pred_check
        %p269 = pneg %p177
      $region26: #{run.7} parent=11 // pred_check_branch
        %271 = sbr.rel (%p269) target = $region28
      $region27: #{run.7} parent=11 // pred_region
        _
      $region28: #{run.7} parent=11 // pred_fallthru
        _
      // Predicated region
      $region29: #{run.7} parent=11 // pred_check
        %p272 = pneg %p198
      $region30: #{run.7} parent=11 // pred_check_branch
        %274 = sbr.rel (%p272) target = $region32
      $region31: #{run.7} parent=11 // pred_region
        _
      $region32: #{run.7} parent=11 // pred_fallthru
        _
      // Predicated region
      $region33: #{run.7} parent=11 // pred_check
        %p275 = pneg %p219
      $region34: #{run.7} parent=11 // pred_check_branch
        %277 = sbr.rel (%p275) target = $region36
      $region35: #{run.7} parent=11 // pred_region
        _
      $region36: #{run.7} parent=11 // pred_fallthru
        _
    $region12: #{run.7} parent=5 // pred_fallthru
      _
    %p278 = scmp.lt.s32.totalorder %s15, 2
    // Predicated region
    $region37: #{run.7} parent=5 // pred_check
      %p279 = pneg %p278
    $region38: #{run.7} parent=5 // pred_check_branch
      %281 = sbr.rel (%p279) target = $region40
    $region39: #{run.7} parent=5 // pred_region
      // Predicated region
      $region41: #{run.7} parent=39 // pred_check
        %p282 = pneg %p35
      $region42: #{run.7} parent=39 // pred_check_branch
        %284 = sbr.rel (%p282) target = $region44
      $region43: #{run.7} parent=39 // pred_region
        %p285 = scmp.lt.s32.totalorder %s15, 1
        %s286 = scalar_select %p285, %s15, 1
        %s287 = smul.addr %s286, 8
        %s288 = scalar_lea.vmem %s0, %s287
      $region44: #{run.7} parent=39 // pred_fallthru
        _
      // Predicated region
      $region45: #{run.7} parent=39 // pred_check
        %p289 = pneg %p61
      $region46: #{run.7} parent=39 // pred_check_branch
        %291 = sbr.rel (%p289) target = $region48
      $region47: #{run.7} parent=39 // pred_region
        %p292 = scmp.lt.s32.totalorder %s15, 1
        %s293 = scalar_select %p292, %s15, 1
        %s294 = smul.addr %s293, 8
        %s295 = scalar_lea.vmem %s1, %s294
      $region48: #{run.7} parent=39 // pred_fallthru
        _
      // Predicated region
      $region49: #{run.7} parent=39 // pred_check
        %p296 = pneg %p87
      $region50: #{run.7} parent=39 // pred_check_branch
        %298 = sbr.rel (%p296) target = $region52
      $region51: #{run.7} parent=39 // pred_region
        %p299 = scmp.lt.s32.totalorder %s15, 1
        %s300 = scalar_select %p299, %s15, 1
        %s301 = scalar_lea.vmem %s2, %s300
      $region52: #{run.7} parent=39 // pred_fallthru
        _
    $region40: #{run.7} parent=5 // pred_fallthru
      _
    %p302 = scmp.le.s32.totalorder 1, %s15
    %p303 = scmp.lt.s32.totalorder %s15, 3
    %p304 = pnand %p302, %p303
    %p305 = pneg %p304
    // Predicated region
    $region53: #{run.7} parent=5 // pred_check
      _
    $region54: #{run.7} parent=5 // pred_check_branch
      %307 = sbr.rel (%p304) target = $region56
    $region55: #{run.7} parent=5 // pred_region
      %s308 = ssub.s32 %s15, 1
      %p309 = scmp.lt.s32.totalorder %s20, 1
      %s310 = scalar_select %p309, %s20, 1
      %s311 = smul.addr %s310, 8
      %s312 = scalar_lea.vmem %s0, %s311
      %p313 = pneg %p41
      %p314 = pneg %p38
      %p315 = scmp.lt.s32.totalorder %s20, 1
      %s316 = scalar_select %p315, %s20, 1
      %s317 = smul.addr %s316, 8
      %s318 = scalar_lea.vmem %s1, %s317
      %p319 = pneg %p67
      %p320 = pneg %p64
      %p321 = scmp.lt.s32.totalorder %s20, 1
      %s322 = scalar_select %p321, %s20, 1
      %s323 = scalar_lea.vmem %s2, %s322
      %p324 = pneg %p93
      %p325 = pneg %p90
      %p326 = pneg %p114
      %p327 = pneg %p111
      %p328 = pneg %p135
      %p329 = pneg %p132
      %p330 = pneg %p156
      %p331 = pneg %p153
      %p332 = pneg %p177
      %p333 = pneg %p174
      %p334 = pneg %p198
      %p335 = pneg %p195
      %p336 = pneg %p219
      %p337 = pneg %p216
      %p338 = pneg %p245
      %p339 = pneg %p242
      %p340 = scmp.lt.s32.totalorder %s20, 1
      %s341 = scalar_select %p340, %s20, 1
      %s342 = smul.addr %s341, 8
      %s343 = scalar_lea.vmem %s9, %s342
      %p344 = scmp.lt.s32.totalorder %s20, 1
      %s345 = scalar_select %p344, %s20, 1
      %s346 = smul.addr %s345, 8
      %s347 = scalar_lea.vmem %s0, %s346
      %p348 = scmp.lt.s32.totalorder %s20, 1
      %s349 = scalar_select %p348, %s20, 1
      %s350 = smul.addr %s349, 8
      %s351 = scalar_lea.vmem %s1, %s350
      %p352 = scmp.lt.s32.totalorder %s20, 1
      %s353 = scalar_select %p352, %s20, 1
      %s354 = scalar_lea.vmem %s2, %s353
      %p355 = scmp.lt.s32.totalorder %s20, 1
      %s356 = scalar_select %p355, %s20, 1
      %s357 = smul.addr %s356, 8
      %s358 = scalar_lea.vmem %s9, %s357
      %v359 = vld [vmem:[%s347] sm:$0xff]
      %v360 = vld [vmem:[%s351] sm:$0xff]
      %v361 = vsub.f32 1.0, %v360
      %v362 = vmul.f32 %v361, 1e+10
      %364 = vset.pattern.permute.xlu0 0
      %365 = vperm.xlu0 %364, %v362
      %v366 = vpop.permute.xlu0 %365
      %v368 = vsub.f32 %v359, %v366
      %vm369 = vcmask 523264
      %v370 = vsel %vm369, %v368, -inf
      %v371 = vrot.slane %v370, 4
      %v372 = vmax.f32 %v370, %v371
      %v373 = vrot.slane %v372, 2
      %v374 = vmax.f32 %v372, %v373
      %v375 = vrot.slane %v374, 1
      %v376 = vmax.f32 %v374, %v375
      %v377 = vld [vmem:[%s4] sm:$0xff]
      %v378 = vld [vmem:[%s4 + $0x8] sm:$0xff]
      %v379 = vld [vmem:[%s4 + $0x10] sm:$0xff]
      %v380 = vld [vmem:[%s4 + $0x18] sm:$0xff]
      %v381 = vld [vmem:[%s4 + $0x20] sm:$0xff]
      %v382 = vld [vmem:[%s4 + $0x28] sm:$0xff]
      %v383 = vld [vmem:[%s4 + $0x30] sm:$0xff]
      %v384 = vld [vmem:[%s4 + $0x38] sm:$0xff]
      %v385 = vld [vmem:[%s354] sm:$0x1]
      %v386 = vld [vmem:[%s5] sm:$0xff]
      %v387 = vld [vmem:[%s5 + $0x8] sm:$0xff]
      %v388 = vld [vmem:[%s5 + $0x10] sm:$0xff]
      %v389 = vld [vmem:[%s5 + $0x18] sm:$0xff]
      %v390 = vld [vmem:[%s5 + $0x20] sm:$0xff]
      %v391 = vld [vmem:[%s5 + $0x28] sm:$0xff]
      %v392 = vld [vmem:[%s5 + $0x30] sm:$0xff]
      %v393 = vld [vmem:[%s5 + $0x38] sm:$0xff]
      %v394 = vld [vmem:[%s5 + $0x40] sm:$0xff]
      %v395 = vld [vmem:[%s5 + $0x48] sm:$0xff]
      %v396 = vld [vmem:[%s5 + $0x50] sm:$0xff]
      %v397 = vld [vmem:[%s5 + $0x58] sm:$0xff]
      %v398 = vld [vmem:[%s5 + $0x60] sm:$0xff]
      %v399 = vld [vmem:[%s5 + $0x68] sm:$0xff]
      %v400 = vld [vmem:[%s5 + $0x70] sm:$0xff]
      %v401 = vld [vmem:[%s5 + $0x78] sm:$0xff]
      %402 = vmatpush.msra.mxu0 %v401
      %403 = vmatpush.msra.mxu0 %v400
      %404 = vmatpush.msra.mxu0 %v399
      %405 = vmatpush.msra.mxu0 %v398
      %406 = vmatpush.msra.mxu0 %v397
      %407 = vmatpush.msra.mxu0 %v396
      %408 = vmatpush.msra.mxu0 %v395
      %409 = vmatpush.msra.mxu0 %v394
      %410 = vmatpush.msra.mxu0 %v393
      %411 = vmatpush.msra.mxu0 %v392
      %412 = vmatpush.msra.mxu0 %v391
      %413 = vmatpush.msra.mxu0 %v390
      %414 = vmatpush.msra.mxu0 %v389
      %415 = vmatpush.msra.mxu0 %v388
      %416 = vmatpush.msra.mxu0 %v387
      %417 = vmatpush.msra.mxu0 %v386
      %418 = vmatmul.f32.gmra.mxu0 %v385
      %v419 = vpop.f32.mrf.mxu0
      %v420 = vadd.f32 0.0, %v419
      %421 = vdwg.mxu0
      %v423 = vsel %vm369, %v376, 0
      %425 = vmatpush.msra.mxu0 0.0
      %426 = vmatpush.msra.mxu0 0.0
      %427 = vmatpush.msra.mxu0 0.0
      %428 = vmatpush.msra.mxu0 0.0
      %429 = vmatpush.msra.mxu0 0.0
      %430 = vmatpush.msra.mxu0 0.0
      %431 = vmatpush.msra.mxu0 0.0
      %432 = vmatpush.msra.mxu0 0.0
      %433 = vmatpush.msra.mxu0 %v384
      %434 = vmatpush.msra.mxu0 %v383
      %435 = vmatpush.msra.mxu0 %v382
      %436 = vmatpush.msra.mxu0 %v381
      %437 = vmatpush.msra.mxu0 %v380
      %438 = vmatpush.msra.mxu0 %v379
      %439 = vmatpush.msra.mxu0 %v378
      %440 = vmatpush.msra.mxu0 %v377
      %441 = vmatmul.f32.gmra.mxu0 %v423
      %v442 = vpop.f32.mrf.mxu0
      %v443 = vadd.f32 %v420, %v442
      %444 = vdwg.mxu0
      %v445 = vld [vmem:[%s6] sm:$0x1]
      %v446 = vadd.f32 %v443, %v445
      %v447 = vld [vmem:[%s3] sm:$0xff]
      %v448 = vld [vmem:[%s3 + $0x8] sm:$0xff]
      %v449 = vld [vmem:[%s3 + $0x10] sm:$0xff]
      %v450 = vld [vmem:[%s3 + $0x18] sm:$0xff]
      %v451 = vld [vmem:[%s3 + $0x20] sm:$0xff]
      %v452 = vld [vmem:[%s3 + $0x28] sm:$0xff]
      %v453 = vld [vmem:[%s3 + $0x30] sm:$0xff]
      %v454 = vld [vmem:[%s3 + $0x38] sm:$0xff]
      %v455 = vperm.slane %v446, 0
      %v457 = vsel %vm369, %v359, 0
      %459 = vmatpush.msra.mxu0 0.0
      %460 = vmatpush.msra.mxu0 0.0
      %461 = vmatpush.msra.mxu0 0.0
      %462 = vmatpush.msra.mxu0 0.0
      %463 = vmatpush.msra.mxu0 0.0
      %464 = vmatpush.msra.mxu0 0.0
      %465 = vmatpush.msra.mxu0 0.0
      %466 = vmatpush.msra.mxu0 0.0
      %467 = vmatpush.msra.mxu0 %v454
      %468 = vmatpush.msra.mxu0 %v453
      %469 = vmatpush.msra.mxu0 %v452
      %470 = vmatpush.msra.mxu0 %v451
      %471 = vmatpush.msra.mxu0 %v450
      %472 = vmatpush.msra.mxu0 %v449
      %473 = vmatpush.msra.mxu0 %v448
      %474 = vmatpush.msra.mxu0 %v447
      %475 = vmatmul.f32.gmra.mxu0 %v457
      %v476 = vpop.f32.mrf.mxu0
      %v477 = vadd.f32 %v455, %v476
      %478 = vdwg.mxu0
      %v479 = vmax.f32 %v477, 0.0
      %v480 = vld [vmem:[%s7] sm:$0xff]
      %v481 = vld [vmem:[%s7 + $0x8] sm:$0xff]
      %v482 = vld [vmem:[%s7 + $0x10] sm:$0xff]
      %v483 = vld [vmem:[%s7 + $0x18] sm:$0xff]
      %v484 = vld [vmem:[%s7 + $0x20] sm:$0xff]
      %v485 = vld [vmem:[%s7 + $0x28] sm:$0xff]
      %v486 = vld [vmem:[%s7 + $0x30] sm:$0xff]
      %v487 = vld [vmem:[%s7 + $0x38] sm:$0xff]
      %v488 = vld [vmem:[%s7 + $0x40] sm:$0xff]
      %v489 = vld [vmem:[%s7 + $0x48] sm:$0xff]
      %v490 = vld [vmem:[%s7 + $0x50] sm:$0xff]
      %v491 = vld [vmem:[%s7 + $0x58] sm:$0xff]
      %v492 = vld [vmem:[%s7 + $0x60] sm:$0xff]
      %v493 = vld [vmem:[%s7 + $0x68] sm:$0xff]
      %v494 = vld [vmem:[%s7 + $0x70] sm:$0xff]
      %v495 = vld [vmem:[%s7 + $0x78] sm:$0xff]
      %v496 = vld [vmem:[%s8] sm:$0x1]
      %v498 = vperm.slane %v496, 0
      %500 = vmatpush.msra.mxu0 %v495
      %501 = vmatpush.msra.mxu0 %v494
      %502 = vmatpush.msra.mxu0 %v493
      %503 = vmatpush.msra.mxu0 %v492
      %504 = vmatpush.msra.mxu0 %v491
      %505 = vmatpush.msra.mxu0 %v490
      %506 = vmatpush.msra.mxu0 %v489
      %507 = vmatpush.msra.mxu0 %v488
      %508 = vmatpush.msra.mxu0 %v487
      %509 = vmatpush.msra.mxu0 %v486
      %510 = vmatpush.msra.mxu0 %v485
      %511 = vmatpush.msra.mxu0 %v484
      %512 = vmatpush.msra.mxu0 %v483
      %513 = vmatpush.msra.mxu0 %v482
      %514 = vmatpush.msra.mxu0 %v481
      %515 = vmatpush.msra.mxu0 %v480
      %516 = vmatmul.f32.gmra.mxu0 %v479
      %v517 = vpop.f32.mrf.mxu0
      %v518 = vadd.f32 %v498, %v517
      %519 = vdwg.mxu0
      %vm520 = vcmask 31744
      %521 = vst.msk [vmem:[%s358] sm:$0xff] %vm520, %v518
      %p522 = scmp.lt.s32.totalorder %s20, 1
      %s523 = scalar_select %p522, %s20, 1
      %s524 = smul.addr %s523, 8
      %s525 = scalar_lea.vmem %s9, %s524
      // Predicated region
      $region57: #{run.7} parent=55 // pred_check
        %p526 = pneg %p242
      $region58: #{run.7} parent=55 // pred_check_branch
        %528 = sbr.rel (%p526) target = $region60
      $region59: #{run.7} parent=55 // pred_region
        _
      $region60: #{run.7} parent=55 // pred_fallthru
        _
    $region56: #{run.7} parent=5 // pred_fallthru
      _
    %p529 = scmp.le.s32.totalorder 2, %s15
    // Predicated region
    $region61: #{run.7} parent=5 // pred_check
      %p530 = pneg %p529
    $region62: #{run.7} parent=5 // pred_check_branch
      %532 = sbr.rel (%p530) target = $region64
    $region63: #{run.7} parent=5 // pred_region
      %s533 = ssub.s32 %s15, 2
      // Predicated region
      $region65: #{run.7} parent=63 // pred_check
        %p534 = pneg %p248
      $region66: #{run.7} parent=63 // pred_check_branch
        %536 = sbr.rel (%p534) target = $region68
      $region67: #{run.7} parent=63 // pred_region
        %p537 = scmp.lt.s32.totalorder %s21, 1
        %s538 = scalar_select %p537, %s21, 1
        %s539 = smul.addr %s538, 8
        %s540 = scalar_lea.vmem %s9, %s539
      $region68: #{run.7} parent=63 // pred_fallthru
        _
    $region64: #{run.7} parent=5 // pred_fallthru
      _
  $region6: #{run.7} parent=0 // loop_footer
    %s19 = sadd.s32 1, %s15
  $region7: #{run.7} parent=0 // loop_footer_branch
    %14 = sbr.rel target = $region3
  $region8: #{run.7} parent=0 // loop_exit
    _

// kernel: run.6
$region0: #{run.6}
  #allocation0 [shape = 'u32[]', space=smem, size = 0x4, offset = 0x4, fixed_abs, tag = 'smem constant byte address 0x4 - core index']
  #allocation1 [shape = 'u32[72,128]{1,0:T(1,128)}', space=vmem, size = 0x9000, scoped, tag = 'internal scratch']
  #allocation2 [shape = 'f32[2,2,32]{2,1,0:T(2,128)}', space=vmem, size = 0x800, scoped, tag = 'scratch operand']
  #allocation3 [shape = 'f32[2,2,32]{2,1,0:T(2,128)}', space=vmem, size = 0x800, scoped, tag = 'scratch operand']
  %s0 = inlined_call_operand.vmem [shape: f32[8,2,2,128], index: 0, kind: input, shape index: {}]
  %s1 = inlined_call_operand.vmem [shape: f32[8,2,2,1], index: 1, kind: input, shape index: {}]
  %s2 = inlined_call_operand.vmem [shape: f32[2,32,128], index: 2, kind: input, shape index: {}]
  %s3 = inlined_call_operand.vmem [shape: f32[8,2,2,32], index: 3, kind: output, shape index: {}]
  %s4 = sld [smem:[#allocation0]]
  $region26: #{run.6} parent=0
    _
  %s6 = ssub.s32 1, %s4
  %s7 = scalar_select 0, %s6, %s4
  // Predicated region
  $region2: #{run.6} parent=0 // pred_check
    _
  $region3: #{run.6} parent=0 // pred_check_branch
    %9 = sbr.rel (0) target = $region5
  $region4: #{run.6} parent=0 // pred_region
    _
  $region5: #{run.6} parent=0 // pred_fallthru
    _
  // Predicated region
  $region6: #{run.6} parent=0 // pred_check
    _
  $region7: #{run.6} parent=0 // pred_check_branch
    %11 = sbr.rel (0) target = $region9
  $region8: #{run.6} parent=0 // pred_region
    _
  $region9: #{run.6} parent=0 // pred_fallthru
    _
  // Predicated region
  $region10: #{run.6} parent=0 // pred_check
    _
  $region11: #{run.6} parent=0 // pred_check_branch
    %13 = sbr.rel (0) target = $region13
  $region12: #{run.6} parent=0 // pred_region
    _
  $region13: #{run.6} parent=0 // pred_fallthru
    _
  %p14 = scmp.eq.s32.totalorder 0, 0
  // Predicated region
  $region14: #{run.6} parent=0 // pred_check
    %p15 = pneg %p14
  $region15: #{run.6} parent=0 // pred_check_branch
    %17 = sbr.rel (%p15) target = $region17
  $region16: #{run.6} parent=0 // pred_region
    %vm18 = vcmask 254976
    %19 = vst.msk [vmem:[#allocation2] sm:$0x3] %vm18, 0.0
    %20 = vst.msk [vmem:[#allocation2 + $0x2] sm:$0x3] %vm18, 0.0
    %21 = vst.msk [vmem:[#allocation3] sm:$0x3] %vm18, 0.0
    %22 = vst.msk [vmem:[#allocation3 + $0x2] sm:$0x3] %vm18, 0.0
  $region17: #{run.6} parent=0 // pred_fallthru
    _
  %v23 = vld [vmem:[%s2] sm:$0xff]
  %v24 = vld [vmem:[%s2 + $0x8] sm:$0xff]
  %v25 = vld [vmem:[%s2 + $0x10] sm:$0xff]
  %v26 = vld [vmem:[%s2 + $0x18] sm:$0xff]
  %v27 = vld [vmem:[%s2 + $0x20] sm:$0xff]
  %v28 = vld [vmem:[%s2 + $0x28] sm:$0xff]
  %v29 = vld [vmem:[%s2 + $0x30] sm:$0xff]
  %v30 = vld [vmem:[%s2 + $0x38] sm:$0xff]
  %v31 = vld [vmem:[%s0] sm:$0x3]
  %v32 = vld [vmem:[%s0 + $0x2] sm:$0x3]
  %v33 = vld [vmem:[%s1] sm:$0x3]
  %v34 = vld [vmem:[%s1 + $0x2] sm:$0x3]
  %v35 = vld [vmem:[#allocation2] sm:$0x3]
  %v36 = vld [vmem:[#allocation2 + $0x2] sm:$0x3]
  %v37 = vld [vmem:[#allocation3] sm:$0x3]
  %v38 = vld [vmem:[#allocation3 + $0x2] sm:$0x3]
  %vm39 = vcmask 261120
  %v41 = vsel %vm39, %v35, 0
  %43 = vmatpush.msra.mxu0 0.0
  %44 = vmatpush.msra.mxu0 0.0
  %45 = vmatpush.msra.mxu0 0.0
  %46 = vmatpush.msra.mxu0 0.0
  %47 = vmatpush.msra.mxu0 0.0
  %48 = vmatpush.msra.mxu0 0.0
  %49 = vmatpush.msra.mxu0 0.0
  %50 = vmatpush.msra.mxu0 0.0
  %51 = vmatpush.msra.mxu0 0.0
  %52 = vmatpush.msra.mxu0 0.0
  %53 = vmatpush.msra.mxu0 0.0
  %54 = vmatpush.msra.mxu0 0.0
  %55 = vmatpush.msra.mxu0 %v26
  %56 = vmatpush.msra.mxu0 %v25
  %57 = vmatpush.msra.mxu0 %v24
  %58 = vmatpush.msra.mxu0 %v23
  %59 = vmatmul.f32.gmra.mxu0 %v41
  %v60 = vpop.f32.mrf.mxu0
  %v61 = vadd.f32 0.0, %v60
  %62 = vdwg.mxu0
  %v64 = vsel %vm39, %v36, 0
  %66 = vmatpush.msra.mxu0 0.0
  %67 = vmatpush.msra.mxu0 0.0
  %68 = vmatpush.msra.mxu0 0.0
  %69 = vmatpush.msra.mxu0 0.0
  %70 = vmatpush.msra.mxu0 0.0
  %71 = vmatpush.msra.mxu0 0.0
  %72 = vmatpush.msra.mxu0 0.0
  %73 = vmatpush.msra.mxu0 0.0
  %74 = vmatpush.msra.mxu0 0.0
  %75 = vmatpush.msra.mxu0 0.0
  %76 = vmatpush.msra.mxu0 0.0
  %77 = vmatpush.msra.mxu0 0.0
  %78 = vmatpush.msra.mxu0 %v30
  %79 = vmatpush.msra.mxu0 %v29
  %80 = vmatpush.msra.mxu0 %v28
  %81 = vmatpush.msra.mxu0 %v27
  %82 = vmatmul.f32.gmra.mxu0 %v64
  %v83 = vpop.f32.mrf.mxu0
  %v84 = vadd.f32 0.0, %v83
  %85 = vdwg.mxu0
  %v86 = vadd.f32 %v31, %v61
  %v87 = vadd.f32 %v32, %v84
  %v88 = vxor.u32 %v86, 2147483648
  %v89 = vxor.u32 %v87, 2147483648
  %v90 = vmul.f32 %v88, 1.442695
  %v91 = vpow.pop %v90
  %v92 = vmul.f32 %v89, 1.442695
  %v93 = vpow.pop %v92
  %v94 = vadd.f32 %v91, 1.0
  %v95 = vadd.f32 %v93, 1.0
  %v96 = vrcp.pop %v94
  %v97 = vmul.f32 %v94, %v96
  %v98 = vsub.f32 1.0, %v97
  %v99 = vmul.f32 %v96, %v98
  %v100 = vadd.f32 %v96, %v99
  %vm101 = vweird.f32 %v94
  %vm102 = vweird.f32 %v96
  %vm103 = vmor %vm101, %vm102
  %v104 = vsel %vm103, %v96, %v100
  %v105 = vand.u32 2147483647, %v94
  %vm106 = vcmp.eq.f32.partialorder %v105, 8.507059e+37
  %v107 = vand.u32 %v94, 2147483648
  %v108 = vor.u32 1.1754944e-38, %v107
  %v109 = vsel %vm106, %v108, %v104
  %v110 = vmul.f32 1.0, %v109
  %v111 = vrcp.pop %v95
  %v112 = vmul.f32 %v95, %v111
  %v113 = vsub.f32 1.0, %v112
  %v114 = vmul.f32 %v111, %v113
  %v115 = vadd.f32 %v111, %v114
  %vm116 = vweird.f32 %v95
  %vm117 = vweird.f32 %v111
  %vm118 = vmor %vm116, %vm117
  %v119 = vsel %vm118, %v111, %v115
  %v120 = vand.u32 2147483647, %v95
  %vm121 = vcmp.eq.f32.partialorder %v120, 8.507059e+37
  %v122 = vand.u32 %v95, 2147483648
  %v123 = vor.u32 1.1754944e-38, %v122
  %v124 = vsel %vm121, %v123, %v119
  %v125 = vmul.f32 1.0, %v124
  %v126 = vtanh.pop %v86
  %v127 = vtanh.pop %v87
  %130 = vrot.lane.b32.xlu0 %v37, 32
  %v131 = vpop.permute.xlu0 %130
  %132 = vrot.lane.b32.xlu0 %v38, 32
  %v133 = vpop.permute.xlu0 %132
  %v136 = vmul.f32 %v110, %v131
  %v137 = vmul.f32 %v125, %v133
  %140 = vrot.lane.b32.xlu0 %v126, 64
  %v141 = vpop.permute.xlu0 %140
  %142 = vrot.lane.b32.xlu0 %v127, 64
  %v143 = vpop.permute.xlu0 %142
  %v146 = vmul.f32 %v110, %v141
  %v147 = vmul.f32 %v125, %v143
  %150 = vrot.lane.b32.xlu0 %v146, 32
  %v151 = vpop.permute.xlu0 %150
  %152 = vrot.lane.b32.xlu0 %v147, 32
  %v153 = vpop.permute.xlu0 %152
  %v156 = vadd.f32 %v136, %v151
  %v157 = vadd.f32 %v137, %v153
  %v158 = vtanh.pop %v156
  %v159 = vtanh.pop %v157
  %162 = vrot.lane.b32.xlu0 %v158, 64
  %v163 = vpop.permute.xlu0 %162
  %164 = vrot.lane.b32.xlu0 %v159, 64
  %v165 = vpop.permute.xlu0 %164
  %v168 = vmul.f32 %v110, %v163
  %v169 = vmul.f32 %v125, %v165
  %vm170 = vcmp.gt.f32.partialorder %v33, 0.0
  %vm171 = vcmp.gt.f32.partialorder %v34, 0.0
  %v172 = vsel %vm170, 1, 0
  %v173 = vsel %vm171, 1, 0
  %174 = vset.pattern.permute.xlu0 0
  %175 = vperm.xlu0 %174, %v172
  %v176 = vpop.permute.xlu0 %175
  %177 = vset.pattern.permute.xlu0 0
  %178 = vperm.xlu0 %177, %v173
  %v179 = vpop.permute.xlu0 %178
  %vm180 = vcmp.eq.s32.totalorder %v176, 1
  %vm181 = vcmp.eq.s32.totalorder %v179, 1
  %v182 = vsel %vm180, %v156, %v131
  %v183 = vsel %vm181, %v157, %v133
  %186 = vrot.lane.b32.xlu0 %v182, 96
  %v187 = vpop.permute.xlu0 %186
  %188 = vrot.lane.b32.xlu0 %v183, 96
  %v189 = vpop.permute.xlu0 %188
  %vm192 = vcmask 254976
  %193 = vst.msk [vmem:[#allocation3] sm:$0x3] %vm192, %v187
  %194 = vst.msk [vmem:[#allocation3 + $0x2] sm:$0x3] %vm192, %v189
  %195 = vrot.lane.b32.xlu0 %v35, 96
  %v196 = vpop.permute.xlu0 %195
  %197 = vrot.lane.b32.xlu0 %v36, 96
  %v198 = vpop.permute.xlu0 %197
  %v201 = vsel %vm180, %v168, %v196
  %v202 = vsel %vm181, %v169, %v198
  %205 = vrot.lane.b32.xlu0 %v201, 32
  %v206 = vpop.permute.xlu0 %205
  %207 = vrot.lane.b32.xlu0 %v202, 32
  %v208 = vpop.permute.xlu0 %207
  %211 = vst.msk [vmem:[#allocation2] sm:$0x3] %vm192, %v206
  %212 = vst.msk [vmem:[#allocation2 + $0x2] sm:$0x3] %vm192, %v208
  %v213 = vld [vmem:[#allocation2] sm:$0x3]
  %v214 = vld [vmem:[#allocation2 + $0x2] sm:$0x3]
  %216 = vset.pattern.permute.xlu0 0
  %217 = vperm.xlu0 %216, %v33
  %v218 = vpop.permute.xlu0 %217
  %221 = vset.pattern.permute.xlu0 0
  %222 = vperm.xlu0 %221, %v34
  %v223 = vpop.permute.xlu0 %222
  %v225 = vmul.f32 %v213, %v218
  %v226 = vmul.f32 %v214, %v223
  %227 = vst.msk [vmem:[%s3] sm:$0x3] %vm192, %v225
  %228 = vst.msk [vmem:[%s3 + $0x2] sm:$0x3] %vm192, %v226
  %s229 = scalar_lea.vmem %s0, 4
  %v230 = vld [vmem:[%s229] sm:$0x3]
  %v231 = vld [vmem:[%s229 + $0x2] sm:$0x3]
  %s232 = scalar_lea.vmem %s1, 4
  %v233 = vld [vmem:[%s232] sm:$0x3]
  %v234 = vld [vmem:[%s232 + $0x2] sm:$0x3]
  %v235 = vld [vmem:[#allocation2] sm:$0x3]
  %v236 = vld [vmem:[#allocation2 + $0x2] sm:$0x3]
  %v237 = vld [vmem:[#allocation3] sm:$0x3]
  %v238 = vld [vmem:[#allocation3 + $0x2] sm:$0x3]
  %v240 = vsel %vm39, %v235, 0
  %242 = vmatpush.msra.mxu0 0.0
  %243 = vmatpush.msra.mxu0 0.0
  %244 = vmatpush.msra.mxu0 0.0
  %245 = vmatpush.msra.mxu0 0.0
  %246 = vmatpush.msra.mxu0 0.0
  %247 = vmatpush.msra.mxu0 0.0
  %248 = vmatpush.msra.mxu0 0.0
  %249 = vmatpush.msra.mxu0 0.0
  %250 = vmatpush.msra.mxu0 0.0
  %251 = vmatpush.msra.mxu0 0.0
  %252 = vmatpush.msra.mxu0 0.0
  %253 = vmatpush.msra.mxu0 0.0
  %254 = vmatpush.msra.mxu0 %v26
  %255 = vmatpush.msra.mxu0 %v25
  %256 = vmatpush.msra.mxu0 %v24
  %257 = vmatpush.msra.mxu0 %v23
  %258 = vmatmul.f32.gmra.mxu0 %v240
  %v259 = vpop.f32.mrf.mxu0
  %v260 = vadd.f32 0.0, %v259
  %261 = vdwg.mxu0
  %v263 = vsel %vm39, %v236, 0
  %265 = vmatpush.msra.mxu0 0.0
  %266 = vmatpush.msra.mxu0 0.0
  %267 = vmatpush.msra.mxu0 0.0
  %268 = vmatpush.msra.mxu0 0.0
  %269 = vmatpush.msra.mxu0 0.0
  %270 = vmatpush.msra.mxu0 0.0
  %271 = vmatpush.msra.mxu0 0.0
  %272 = vmatpush.msra.mxu0 0.0
  %273 = vmatpush.msra.mxu0 0.0
  %274 = vmatpush.msra.mxu0 0.0
  %275 = vmatpush.msra.mxu0 0.0
  %276 = vmatpush.msra.mxu0 0.0
  %277 = vmatpush.msra.mxu0 %v30
  %278 = vmatpush.msra.mxu0 %v29
  %279 = vmatpush.msra.mxu0 %v28
  %280 = vmatpush.msra.mxu0 %v27
  %281 = vmatmul.f32.gmra.mxu0 %v263
  %v282 = vpop.f32.mrf.mxu0
  %v283 = vadd.f32 0.0, %v282
  %284 = vdwg.mxu0
  %v285 = vadd.f32 %v230, %v260
  %v286 = vadd.f32 %v231, %v283
  %v287 = vxor.u32 %v285, 2147483648
  %v288 = vxor.u32 %v286, 2147483648
  %v289 = vmul.f32 %v287, 1.442695
  %v290 = vpow.pop %v289
  %v291 = vmul.f32 %v288, 1.442695
  %v292 = vpow.pop %v291
  %v293 = vadd.f32 %v290, 1.0
  %v294 = vadd.f32 %v292, 1.0
  %v295 = vrcp.pop %v293
  %v296 = vmul.f32 %v293, %v295
  %v297 = vsub.f32 1.0, %v296
  %v298 = vmul.f32 %v295, %v297
  %v299 = vadd.f32 %v295, %v298
  %vm300 = vweird.f32 %v293
  %vm301 = vweird.f32 %v295
  %vm302 = vmor %vm300, %vm301
  %v303 = vsel %vm302, %v295, %v299
  %v304 = vand.u32 2147483647, %v293
  %vm305 = vcmp.eq.f32.partialorder %v304, 8.507059e+37
  %v306 = vand.u32 %v293, 2147483648
  %v307 = vor.u32 1.1754944e-38, %v306
  %v308 = vsel %vm305, %v307, %v303
  %v309 = vmul.f32 1.0, %v308
  %v310 = vrcp.pop %v294
  %v311 = vmul.f32 %v294, %v310
  %v312 = vsub.f32 1.0, %v311
  %v313 = vmul.f32 %v310, %v312
  %v314 = vadd.f32 %v310, %v313
  %vm315 = vweird.f32 %v294
  %vm316 = vweird.f32 %v310
  %vm317 = vmor %vm315, %vm316
  %v318 = vsel %vm317, %v310, %v314
  %v319 = vand.u32 2147483647, %v294
  %vm320 = vcmp.eq.f32.partialorder %v319, 8.507059e+37
  %v321 = vand.u32 %v294, 2147483648
  %v322 = vor.u32 1.1754944e-38, %v321
  %v323 = vsel %vm320, %v322, %v318
  %v324 = vmul.f32 1.0, %v323
  %v325 = vtanh.pop %v285
  %v326 = vtanh.pop %v286
  %329 = vrot.lane.b32.xlu0 %v237, 32
  %v330 = vpop.permute.xlu0 %329
  %331 = vrot.lane.b32.xlu0 %v238, 32
  %v332 = vpop.permute.xlu0 %331
  %v335 = vmul.f32 %v309, %v330
  %v336 = vmul.f32 %v324, %v332
  %339 = vrot.lane.b32.xlu0 %v325, 64
  %v340 = vpop.permute.xlu0 %339
  %341 = vrot.lane.b32.xlu0 %v326, 64
  %v342 = vpop.permute.xlu0 %341
  %v345 = vmul.f32 %v309, %v340
  %v346 = vmul.f32 %v324, %v342
  %349 = vrot.lane.b32.xlu0 %v345, 32
  %v350 = vpop.permute.xlu0 %349
  %351 = vrot.lane.b32.xlu0 %v346, 32
  %v352 = vpop.permute.xlu0 %351
  %v355 = vadd.f32 %v335, %v350
  %v356 = vadd.f32 %v336, %v352
  %v357 = vtanh.pop %v355
  %v358 = vtanh.pop %v356
  %361 = vrot.lane.b32.xlu0 %v357, 64
  %v362 = vpop.permute.xlu0 %361
  %363 = vrot.lane.b32.xlu0 %v358, 64
  %v364 = vpop.permute.xlu0 %363
  %v367 = vmul.f32 %v309, %v362
  %v368 = vmul.f32 %v324, %v364
  %vm369 = vcmp.gt.f32.partialorder %v233, 0.0
  %vm370 = vcmp.gt.f32.partialorder %v234, 0.0
  %v371 = vsel %vm369, 1, 0
  %v372 = vsel %vm370, 1, 0
  %373 = vset.pattern.permute.xlu0 0
  %374 = vperm.xlu0 %373, %v371
  %v375 = vpop.permute.xlu0 %374
  %376 = vset.pattern.permute.xlu0 0
  %377 = vperm.xlu0 %376, %v372
  %v378 = vpop.permute.xlu0 %377
  %vm379 = vcmp.eq.s32.totalorder %v375, 1
  %vm380 = vcmp.eq.s32.totalorder %v378, 1
  %v381 = vsel %vm379, %v355, %v330
  %v382 = vsel %vm380, %v356, %v332
  %385 = vrot.lane.b32.xlu0 %v381, 96
  %v386 = vpop.permute.xlu0 %385
  %387 = vrot.lane.b32.xlu0 %v382, 96
  %v388 = vpop.permute.xlu0 %387
  %391 = vst.msk [vmem:[#allocation3] sm:$0x3] %vm192, %v386
  %392 = vst.msk [vmem:[#allocation3 + $0x2] sm:$0x3] %vm192, %v388
  %393 = vrot.lane.b32.xlu0 %v235, 96
  %v394 = vpop.permute.xlu0 %393
  %395 = vrot.lane.b32.xlu0 %v236, 96
  %v396 = vpop.permute.xlu0 %395
  %v399 = vsel %vm379, %v367, %v394
  %v400 = vsel %vm380, %v368, %v396
  %403 = vrot.lane.b32.xlu0 %v399, 32
  %v404 = vpop.permute.xlu0 %403
  %405 = vrot.lane.b32.xlu0 %v400, 32
  %v406 = vpop.permute.xlu0 %405
  %409 = vst.msk [vmem:[#allocation2] sm:$0x3] %vm192, %v404
  %410 = vst.msk [vmem:[#allocation2 + $0x2] sm:$0x3] %vm192, %v406
  %v411 = vld [vmem:[#allocation2] sm:$0x3]
  %v412 = vld [vmem:[#allocation2 + $0x2] sm:$0x3]
  %414 = vset.pattern.permute.xlu0 0
  %415 = vperm.xlu0 %414, %v233
  %v416 = vpop.permute.xlu0 %415
  %419 = vset.pattern.permute.xlu0 0
  %420 = vperm.xlu0 %419, %v234
  %v421 = vpop.permute.xlu0 %420
  %v423 = vmul.f32 %v411, %v416
  %v424 = vmul.f32 %v412, %v421
  %s425 = scalar_lea.vmem %s3, 4
  %426 = vst.msk [vmem:[%s425] sm:$0x3] %vm192, %v423
  %427 = vst.msk [vmem:[%s425 + $0x2] sm:$0x3] %vm192, %v424
  %s428 = scalar_lea.vmem %s0, 8
  %v429 = vld [vmem:[%s428] sm:$0x3]
  %v430 = vld [vmem:[%s428 + $0x2] sm:$0x3]
  %s431 = scalar_lea.vmem %s1, 8
  %v432 = vld [vmem:[%s431] sm:$0x3]
  %v433 = vld [vmem:[%s431 + $0x2] sm:$0x3]
  %v434 = vld [vmem:[#allocation2] sm:$0x3]
  %v435 = vld [vmem:[#allocation2 + $0x2] sm:$0x3]
  %v436 = vld [vmem:[#allocation3] sm:$0x3]
  %v437 = vld [vmem:[#allocation3 + $0x2] sm:$0x3]
  %v439 = vsel %vm39, %v434, 0
  %441 = vmatpush.msra.mxu0 0.0
  %442 = vmatpush.msra.mxu0 0.0
  %443 = vmatpush.msra.mxu0 0.0
  %444 = vmatpush.msra.mxu0 0.0
  %445 = vmatpush.msra.mxu0 0.0
  %446 = vmatpush.msra.mxu0 0.0
  %447 = vmatpush.msra.mxu0 0.0
  %448 = vmatpush.msra.mxu0 0.0
  %449 = vmatpush.msra.mxu0 0.0
  %450 = vmatpush.msra.mxu0 0.0
  %451 = vmatpush.msra.mxu0 0.0
  %452 = vmatpush.msra.mxu0 0.0
  %453 = vmatpush.msra.mxu0 %v26
  %454 = vmatpush.msra.mxu0 %v25
  %455 = vmatpush.msra.mxu0 %v24
  %456 = vmatpush.msra.mxu0 %v23
  %457 = vmatmul.f32.gmra.mxu0 %v439
  %v458 = vpop.f32.mrf.mxu0
  %v459 = vadd.f32 0.0, %v458
  %460 = vdwg.mxu0
  %v462 = vsel %vm39, %v435, 0
  %464 = vmatpush.msra.mxu0 0.0
  %465 = vmatpush.msra.mxu0 0.0
  %466 = vmatpush.msra.mxu0 0.0
  %467 = vmatpush.msra.mxu0 0.0
  %468 = vmatpush.msra.mxu0 0.0
  %469 = vmatpush.msra.mxu0 0.0
  %470 = vmatpush.msra.mxu0 0.0
  %471 = vmatpush.msra.mxu0 0.0
  %472 = vmatpush.msra.mxu0 0.0
  %473 = vmatpush.msra.mxu0 0.0
  %474 = vmatpush.msra.mxu0 0.0
  %475 = vmatpush.msra.mxu0 0.0
  %476 = vmatpush.msra.mxu0 %v30
  %477 = vmatpush.msra.mxu0 %v29
  %478 = vmatpush.msra.mxu0 %v28
  %479 = vmatpush.msra.mxu0 %v27
  %480 = vmatmul.f32.gmra.mxu0 %v462
  %v481 = vpop.f32.mrf.mxu0
  %v482 = vadd.f32 0.0, %v481
  %483 = vdwg.mxu0
  %v484 = vadd.f32 %v429, %v459
  %v485 = vadd.f32 %v430, %v482
  %v486 = vxor.u32 %v484, 2147483648
  %v487 = vxor.u32 %v485, 2147483648
  %v488 = vmul.f32 %v486, 1.442695
  %v489 = vpow.pop %v488
  %v490 = vmul.f32 %v487, 1.442695
  %v491 = vpow.pop %v490
  %v492 = vadd.f32 %v489, 1.0
  %v493 = vadd.f32 %v491, 1.0
  %v494 = vrcp.pop %v492
  %v495 = vmul.f32 %v492, %v494
  %v496 = vsub.f32 1.0, %v495
  %v497 = vmul.f32 %v494, %v496
  %v498 = vadd.f32 %v494, %v497
  %vm499 = vweird.f32 %v492
  %vm500 = vweird.f32 %v494
  %vm501 = vmor %vm499, %vm500
  %v502 = vsel %vm501, %v494, %v498
  %v503 = vand.u32 2147483647, %v492
  %vm504 = vcmp.eq.f32.partialorder %v503, 8.507059e+37
  %v505 = vand.u32 %v492, 2147483648
  %v506 = vor.u32 1.1754944e-38, %v505
  %v507 = vsel %vm504, %v506, %v502
  %v508 = vmul.f32 1.0, %v507
  %v509 = vrcp.pop %v493
  %v510 = vmul.f32 %v493, %v509
  %v511 = vsub.f32 1.0, %v510
  %v512 = vmul.f32 %v509, %v511
  %v513 = vadd.f32 %v509, %v512
  %vm514 = vweird.f32 %v493
  %vm515 = vweird.f32 %v509
  %vm516 = vmor %vm514, %vm515
  %v517 = vsel %vm516, %v509, %v513
  %v518 = vand.u32 2147483647, %v493
  %vm519 = vcmp.eq.f32.partialorder %v518, 8.507059e+37
  %v520 = vand.u32 %v493, 2147483648
  %v521 = vor.u32 1.1754944e-38, %v520
  %v522 = vsel %vm519, %v521, %v517
  %v523 = vmul.f32 1.0, %v522
  %v524 = vtanh.pop %v484
  %v525 = vtanh.pop %v485
  %528 = vrot.lane.b32.xlu0 %v436, 32
  %v529 = vpop.permute.xlu0 %528
  %530 = vrot.lane.b32.xlu0 %v437, 32
  %v531 = vpop.permute.xlu0 %530
  %v534 = vmul.f32 %v508, %v529
  %v535 = vmul.f32 %v523, %v531
  %538 = vrot.lane.b32.xlu0 %v524, 64
  %v539 = vpop.permute.xlu0 %538
  %540 = vrot.lane.b32.xlu0 %v525, 64
  %v541 = vpop.permute.xlu0 %540
  %v544 = vmul.f32 %v508, %v539
  %v545 = vmul.f32 %v523, %v541
  %548 = vrot.lane.b32.xlu0 %v544, 32
  %v549 = vpop.permute.xlu0 %548
  %550 = vrot.lane.b32.xlu0 %v545, 32
  %v551 = vpop.permute.xlu0 %550
  %v554 = vadd.f32 %v534, %v549
  %v555 = vadd.f32 %v535, %v551
  %v556 = vtanh.pop %v554
  %v557 = vtanh.pop %v555
  %560 = vrot.lane.b32.xlu0 %v556, 64
  %v561 = vpop.permute.xlu0 %560
  %562 = vrot.lane.b32.xlu0 %v557, 64
  %v563 = vpop.permute.xlu0 %562
  %v566 = vmul.f32 %v508, %v561
  %v567 = vmul.f32 %v523, %v563
  %vm568 = vcmp.gt.f32.partialorder %v432, 0.0
  %vm569 = vcmp.gt.f32.partialorder %v433, 0.0
  %v570 = vsel %vm568, 1, 0
  %v571 = vsel %vm569, 1, 0
  %572 = vset.pattern.permute.xlu0 0
  %573 = vperm.xlu0 %572, %v570
  %v574 = vpop.permute.xlu0 %573
  %575 = vset.pattern.permute.xlu0 0
  %576 = vperm.xlu0 %575, %v571
  %v577 = vpop.permute.xlu0 %576
  %vm578 = vcmp.eq.s32.totalorder %v574, 1
  %vm579 = vcmp.eq.s32.totalorder %v577, 1
  %v580 = vsel %vm578, %v554, %v529
  %v581 = vsel %vm579, %v555, %v531
  %584 = vrot.lane.b32.xlu0 %v580, 96
  %v585 = vpop.permute.xlu0 %584
  %586 = vrot.lane.b32.xlu0 %v581, 96
  %v587 = vpop.permute.xlu0 %586
  %590 = vst.msk [vmem:[#allocation3] sm:$0x3] %vm192, %v585
  %591 = vst.msk [vmem:[#allocation3 + $0x2] sm:$0x3] %vm192, %v587
  %592 = vrot.lane.b32.xlu0 %v434, 96
  %v593 = vpop.permute.xlu0 %592
  %594 = vrot.lane.b32.xlu0 %v435, 96
  %v595 = vpop.permute.xlu0 %594
  %v598 = vsel %vm578, %v566, %v593
  %v599 = vsel %vm579, %v567, %v595
  %602 = vrot.lane.b32.xlu0 %v598, 32
  %v603 = vpop.permute.xlu0 %602
  %604 = vrot.lane.b32.xlu0 %v599, 32
  %v605 = vpop.permute.xlu0 %604
  %608 = vst.msk [vmem:[#allocation2] sm:$0x3] %vm192, %v603
  %609 = vst.msk [vmem:[#allocation2 + $0x2] sm:$0x3] %vm192, %v605
  %v610 = vld [vmem:[#allocation2] sm:$0x3]
  %v611 = vld [vmem:[#allocation2 + $0x2] sm:$0x3]
  %613 = vset.pattern.permute.xlu0 0
  %614 = vperm.xlu0 %613, %v432
  %v615 = vpop.permute.xlu0 %614
  %618 = vset.pattern.permute.xlu0 0
  %619 = vperm.xlu0 %618, %v433
  %v620 = vpop.permute.xlu0 %619
  %v622 = vmul.f32 %v610, %v615
  %v623 = vmul.f32 %v611, %v620
  %s624 = scalar_lea.vmem %s3, 8
  %625 = vst.msk [vmem:[%s624] sm:$0x3] %vm192, %v622
  %626 = vst.msk [vmem:[%s624 + $0x2] sm:$0x3] %vm192, %v623
  %s627 = scalar_lea.vmem %s0, 12
  %v628 = vld [vmem:[%s627] sm:$0x3]
  %v629 = vld [vmem:[%s627 + $0x2] sm:$0x3]
  %s630 = scalar_lea.vmem %s1, 12
  %v631 = vld [vmem:[%s630] sm:$0x3]
  %v632 = vld [vmem:[%s630 + $0x2] sm:$0x3]
  %v633 = vld [vmem:[#allocation2] sm:$0x3]
  %v634 = vld [vmem:[#allocation2 + $0x2] sm:$0x3]
  %v635 = vld [vmem:[#allocation3] sm:$0x3]
  %v636 = vld [vmem:[#allocation3 + $0x2] sm:$0x3]
  %v638 = vsel %vm39, %v633, 0
  %640 = vmatpush.msra.mxu0 0.0
  %641 = vmatpush.msra.mxu0 0.0
  %642 = vmatpush.msra.mxu0 0.0
  %643 = vmatpush.msra.mxu0 0.0
  %644 = vmatpush.msra.mxu0 0.0
  %645 = vmatpush.msra.mxu0 0.0
  %646 = vmatpush.msra.mxu0 0.0
  %647 = vmatpush.msra.mxu0 0.0
  %648 = vmatpush.msra.mxu0 0.0
  %649 = vmatpush.msra.mxu0 0.0
  %650 = vmatpush.msra.mxu0 0.0
  %651 = vmatpush.msra.mxu0 0.0
  %652 = vmatpush.msra.mxu0 %v26
  %653 = vmatpush.msra.mxu0 %v25
  %654 = vmatpush.msra.mxu0 %v24
  %655 = vmatpush.msra.mxu0 %v23
  %656 = vmatmul.f32.gmra.mxu0 %v638
  %v657 = vpop.f32.mrf.mxu0
  %v658 = vadd.f32 0.0, %v657
  %659 = vdwg.mxu0
  %v661 = vsel %vm39, %v634, 0
  %663 = vmatpush.msra.mxu0 0.0
  %664 = vmatpush.msra.mxu0 0.0
  %665 = vmatpush.msra.mxu0 0.0
  %666 = vmatpush.msra.mxu0 0.0
  %667 = vmatpush.msra.mxu0 0.0
  %668 = vmatpush.msra.mxu0 0.0
  %669 = vmatpush.msra.mxu0 0.0
  %670 = vmatpush.msra.mxu0 0.0
  %671 = vmatpush.msra.mxu0 0.0
  %672 = vmatpush.msra.mxu0 0.0
  %673 = vmatpush.msra.mxu0 0.0
  %674 = vmatpush.msra.mxu0 0.0
  %675 = vmatpush.msra.mxu0 %v30
  %676 = vmatpush.msra.mxu0 %v29
  %677 = vmatpush.msra.mxu0 %v28
  %678 = vmatpush.msra.mxu0 %v27
  %679 = vmatmul.f32.gmra.mxu0 %v661
  %v680 = vpop.f32.mrf.mxu0
  %v681 = vadd.f32 0.0, %v680
  %682 = vdwg.mxu0
  %v683 = vadd.f32 %v628, %v658
  %v684 = vadd.f32 %v629, %v681
  %v685 = vxor.u32 %v683, 2147483648
  %v686 = vxor.u32 %v684, 2147483648
  %v687 = vmul.f32 %v685, 1.442695
  %v688 = vpow.pop %v687
  %v689 = vmul.f32 %v686, 1.442695
  %v690 = vpow.pop %v689
  %v691 = vadd.f32 %v688, 1.0
  %v692 = vadd.f32 %v690, 1.0
  %v693 = vrcp.pop %v691
  %v694 = vmul.f32 %v691, %v693
  %v695 = vsub.f32 1.0, %v694
  %v696 = vmul.f32 %v693, %v695
  %v697 = vadd.f32 %v693, %v696
  %vm698 = vweird.f32 %v691
  %vm699 = vweird.f32 %v693
  %vm700 = vmor %vm698, %vm699
  %v701 = vsel %vm700, %v693, %v697
  %v702 = vand.u32 2147483647, %v691
  %vm703 = vcmp.eq.f32.partialorder %v702, 8.507059e+37
  %v704 = vand.u32 %v691, 2147483648
  %v705 = vor.u32 1.1754944e-38, %v704
  %v706 = vsel %vm703, %v705, %v701
  %v707 = vmul.f32 1.0, %v706
  %v708 = vrcp.pop %v692
  %v709 = vmul.f32 %v692, %v708
  %v710 = vsub.f32 1.0, %v709
  %v711 = vmul.f32 %v708, %v710
  %v712 = vadd.f32 %v708, %v711
  %vm713 = vweird.f32 %v692
  %vm714 = vweird.f32 %v708
  %vm715 = vmor %vm713, %vm714
  %v716 = vsel %vm715, %v708, %v712
  %v717 = vand.u32 2147483647, %v692
  %vm718 = vcmp.eq.f32.partialorder %v717, 8.507059e+37
  %v719 = vand.u32 %v692, 2147483648
  %v720 = vor.u32 1.1754944e-38, %v719
  %v721 = vsel %vm718, %v720, %v716
  %v722 = vmul.f32 1.0, %v721
  %v723 = vtanh.pop %v683
  %v724 = vtanh.pop %v684
  %727 = vrot.lane.b32.xlu0 %v635, 32
  %v728 = vpop.permute.xlu0 %727
  %729 = vrot.lane.b32.xlu0 %v636, 32
  %v730 = vpop.permute.xlu0 %729
  %v733 = vmul.f32 %v707, %v728
  %v734 = vmul.f32 %v722, %v730
  %737 = vrot.lane.b32.xlu0 %v723, 64
  %v738 = vpop.permute.xlu0 %737
  %739 = vrot.lane.b32.xlu0 %v724, 64
  %v740 = vpop.permute.xlu0 %739
  %v743 = vmul.f32 %v707, %v738
  %v744 = vmul.f32 %v722, %v740
  %747 = vrot.lane.b32.xlu0 %v743, 32
  %v748 = vpop.permute.xlu0 %747
  %749 = vrot.lane.b32.xlu0 %v744, 32
  %v750 = vpop.permute.xlu0 %749
  %v753 = vadd.f32 %v733, %v748
  %v754 = vadd.f32 %v734, %v750
  %v755 = vtanh.pop %v753
  %v756 = vtanh.pop %v754
  %759 = vrot.lane.b32.xlu0 %v755, 64
  %v760 = vpop.permute.xlu0 %759
  %761 = vrot.lane.b32.xlu0 %v756, 64
  %v762 = vpop.permute.xlu0 %761
  %v765 = vmul.f32 %v707, %v760
  %v766 = vmul.f32 %v722, %v762
  %vm767 = vcmp.gt.f32.partialorder %v631, 0.0
  %vm768 = vcmp.gt.f32.partialorder %v632, 0.0
  %v769 = vsel %vm767, 1, 0
  %v770 = vsel %vm768, 1, 0
  %771 = vset.pattern.permute.xlu0 0
  %772 = vperm.xlu0 %771, %v769
  %v773 = vpop.permute.xlu0 %772
  %774 = vset.pattern.permute.xlu0 0
  %775 = vperm.xlu0 %774, %v770
  %v776 = vpop.permute.xlu0 %775
  %vm777 = vcmp.eq.s32.totalorder %v773, 1
  %vm778 = vcmp.eq.s32.totalorder %v776, 1
  %v779 = vsel %vm777, %v753, %v728
  %v780 = vsel %vm778, %v754, %v730
  %783 = vrot.lane.b32.xlu0 %v779, 96
  %v784 = vpop.permute.xlu0 %783
  %785 = vrot.lane.b32.xlu0 %v780, 96
  %v786 = vpop.permute.xlu0 %785
  %789 = vst.msk [vmem:[#allocation3] sm:$0x3] %vm192, %v784
  %790 = vst.msk [vmem:[#allocation3 + $0x2] sm:$0x3] %vm192, %v786
  %791 = vrot.lane.b32.xlu0 %v633, 96
  %v792 = vpop.permute.xlu0 %791
  %793 = vrot.lane.b32.xlu0 %v634, 96
  %v794 = vpop.permute.xlu0 %793
  %v797 = vsel %vm777, %v765, %v792
  %v798 = vsel %vm778, %v766, %v794
  %801 = vrot.lane.b32.xlu0 %v797, 32
  %v802 = vpop.permute.xlu0 %801
  %803 = vrot.lane.b32.xlu0 %v798, 32
  %v804 = vpop.permute.xlu0 %803
  %807 = vst.msk [vmem:[#allocation2] sm:$0x3] %vm192, %v802
  %808 = vst.msk [vmem:[#allocation2 + $0x2] sm:$0x3] %vm192, %v804
  %v809 = vld [vmem:[#allocation2] sm:$0x3]
  %v810 = vld [vmem:[#allocation2 + $0x2] sm:$0x3]
  %812 = vset.pattern.permute.xlu0 0
  %813 = vperm.xlu0 %812, %v631
  %v814 = vpop.permute.xlu0 %813
  %817 = vset.pattern.permute.xlu0 0
  %818 = vperm.xlu0 %817, %v632
  %v819 = vpop.permute.xlu0 %818
  %v821 = vmul.f32 %v809, %v814
  %v822 = vmul.f32 %v810, %v819
  %s823 = scalar_lea.vmem %s3, 12
  %824 = vst.msk [vmem:[%s823] sm:$0x3] %vm192, %v821
  %825 = vst.msk [vmem:[%s823 + $0x2] sm:$0x3] %vm192, %v822
  %s826 = scalar_lea.vmem %s0, 16
  %v827 = vld [vmem:[%s826] sm:$0x3]
  %v828 = vld [vmem:[%s826 + $0x2] sm:$0x3]
  %s829 = scalar_lea.vmem %s1, 16
  %v830 = vld [vmem:[%s829] sm:$0x3]
  %v831 = vld [vmem:[%s829 + $0x2] sm:$0x3]
  %v832 = vld [vmem:[#allocation2] sm:$0x3]
  %v833 = vld [vmem:[#allocation2 + $0x2] sm:$0x3]
  %v834 = vld [vmem:[#allocation3] sm:$0x3]
  %v835 = vld [vmem:[#allocation3 + $0x2] sm:$0x3]
  %v837 = vsel %vm39, %v832, 0
  %839 = vmatpush.msra.mxu0 0.0
  %840 = vmatpush.msra.mxu0 0.0
  %841 = vmatpush.msra.mxu0 0.0
  %842 = vmatpush.msra.mxu0 0.0
  %843 = vmatpush.msra.mxu0 0.0
  %844 = vmatpush.msra.mxu0 0.0
  %845 = vmatpush.msra.mxu0 0.0
  %846 = vmatpush.msra.mxu0 0.0
  %847 = vmatpush.msra.mxu0 0.0
  %848 = vmatpush.msra.mxu0 0.0
  %849 = vmatpush.msra.mxu0 0.0
  %850 = vmatpush.msra.mxu0 0.0
  %851 = vmatpush.msra.mxu0 %v26
  %852 = vmatpush.msra.mxu0 %v25
  %853 = vmatpush.msra.mxu0 %v24
  %854 = vmatpush.msra.mxu0 %v23
  %855 = vmatmul.f32.gmra.mxu0 %v837
  %v856 = vpop.f32.mrf.mxu0
  %v857 = vadd.f32 0.0, %v856
  %858 = vdwg.mxu0
  %v860 = vsel %vm39, %v833, 0
  %862 = vmatpush.msra.mxu0 0.0
  %863 = vmatpush.msra.mxu0 0.0
  %864 = vmatpush.msra.mxu0 0.0
  %865 = vmatpush.msra.mxu0 0.0
  %866 = vmatpush.msra.mxu0 0.0
  %867 = vmatpush.msra.mxu0 0.0
  %868 = vmatpush.msra.mxu0 0.0
  %869 = vmatpush.msra.mxu0 0.0
  %870 = vmatpush.msra.mxu0 0.0
  %871 = vmatpush.msra.mxu0 0.0
  %872 = vmatpush.msra.mxu0 0.0
  %873 = vmatpush.msra.mxu0 0.0
  %874 = vmatpush.msra.mxu0 %v30
  %875 = vmatpush.msra.mxu0 %v29
  %876 = vmatpush.msra.mxu0 %v28
  %877 = vmatpush.msra.mxu0 %v27
  %878 = vmatmul.f32.gmra.mxu0 %v860
  %v879 = vpop.f32.mrf.mxu0
  %v880 = vadd.f32 0.0, %v879
  %881 = vdwg.mxu0
  %v882 = vadd.f32 %v827, %v857
  %v883 = vadd.f32 %v828, %v880
  %v884 = vxor.u32 %v882, 2147483648
  %v885 = vxor.u32 %v883, 2147483648
  %v886 = vmul.f32 %v884, 1.442695
  %v887 = vpow.pop %v886
  %v888 = vmul.f32 %v885, 1.442695
  %v889 = vpow.pop %v888
  %v890 = vadd.f32 %v887, 1.0
  %v891 = vadd.f32 %v889, 1.0
  %v892 = vrcp.pop %v890
  %v893 = vmul.f32 %v890, %v892
  %v894 = vsub.f32 1.0, %v893
  %v895 = vmul.f32 %v892, %v894
  %v896 = vadd.f32 %v892, %v895
  %vm897 = vweird.f32 %v890
  %vm898 = vweird.f32 %v892
  %vm899 = vmor %vm897, %vm898
  %v900 = vsel %vm899, %v892, %v896
  %v901 = vand.u32 2147483647, %v890
  %vm902 = vcmp.eq.f32.partialorder %v901, 8.507059e+37
  %v903 = vand.u32 %v890, 2147483648
  %v904 = vor.u32 1.1754944e-38, %v903
  %v905 = vsel %vm902, %v904, %v900
  %v906 = vmul.f32 1.0, %v905
  %v907 = vrcp.pop %v891
  %v908 = vmul.f32 %v891, %v907
  %v909 = vsub.f32 1.0, %v908
  %v910 = vmul.f32 %v907, %v909
  %v911 = vadd.f32 %v907, %v910
  %vm912 = vweird.f32 %v891
  %vm913 = vweird.f32 %v907
  %vm914 = vmor %vm912, %vm913
  %v915 = vsel %vm914, %v907, %v911
  %v916 = vand.u32 2147483647, %v891
  %vm917 = vcmp.eq.f32.partialorder %v916, 8.507059e+37
  %v918 = vand.u32 %v891, 2147483648
  %v919 = vor.u32 1.1754944e-38, %v918
  %v920 = vsel %vm917, %v919, %v915
  %v921 = vmul.f32 1.0, %v920
  %v922 = vtanh.pop %v882
  %v923 = vtanh.pop %v883
  %926 = vrot.lane.b32.xlu0 %v834, 32
  %v927 = vpop.permute.xlu0 %926
  %928 = vrot.lane.b32.xlu0 %v835, 32
  %v929 = vpop.permute.xlu0 %928
  %v932 = vmul.f32 %v906, %v927
  %v933 = vmul.f32 %v921, %v929
  %936 = vrot.lane.b32.xlu0 %v922, 64
  %v937 = vpop.permute.xlu0 %936
  %938 = vrot.lane.b32.xlu0 %v923, 64
  %v939 = vpop.permute.xlu0 %938
  %v942 = vmul.f32 %v906, %v937
  %v943 = vmul.f32 %v921, %v939
  %946 = vrot.lane.b32.xlu0 %v942, 32
  %v947 = vpop.permute.xlu0 %946
  %948 = vrot.lane.b32.xlu0 %v943, 32
  %v949 = vpop.permute.xlu0 %948
  %v952 = vadd.f32 %v932, %v947
  %v953 = vadd.f32 %v933, %v949
  %v954 = vtanh.pop %v952
  %v955 = vtanh.pop %v953
  %958 = vrot.lane.b32.xlu0 %v954, 64
  %v959 = vpop.permute.xlu0 %958
  %960 = vrot.lane.b32.xlu0 %v955, 64
  %v961 = vpop.permute.xlu0 %960
  %v964 = vmul.f32 %v906, %v959
  %v965 = vmul.f32 %v921, %v961
  %vm966 = vcmp.gt.f32.partialorder %v830, 0.0
  %vm967 = vcmp.gt.f32.partialorder %v831, 0.0
  %v968 = vsel %vm966, 1, 0
  %v969 = vsel %vm967, 1, 0
  %970 = vset.pattern.permute.xlu0 0
  %971 = vperm.xlu0 %970, %v968
  %v972 = vpop.permute.xlu0 %971
  %973 = vset.pattern.permute.xlu0 0
  %974 = vperm.xlu0 %973, %v969
  %v975 = vpop.permute.xlu0 %974
  %vm976 = vcmp.eq.s32.totalorder %v972, 1
  %vm977 = vcmp.eq.s32.totalorder %v975, 1
  %v978 = vsel %vm976, %v952, %v927
  %v979 = vsel %vm977, %v953, %v929
  %982 = vrot.lane.b32.xlu0 %v978, 96
  %v983 = vpop.permute.xlu0 %982
  %984 = vrot.lane.b32.xlu0 %v979, 96
  %v985 = vpop.permute.xlu0 %984
  %988 = vst.msk [vmem:[#allocation3] sm:$0x3] %vm192, %v983
  %989 = vst.msk [vmem:[#allocation3 + $0x2] sm:$0x3] %vm192, %v985
  %990 = vrot.lane.b32.xlu0 %v832, 96
  %v991 = vpop.permute.xlu0 %990
  %992 = vrot.lane.b32.xlu0 %v833, 96
  %v993 = vpop.permute.xlu0 %992
  %v996 = vsel %vm976, %v964, %v991
  %v997 = vsel %vm977, %v965, %v993
  %1000 = vrot.lane.b32.xlu0 %v996, 32
  %v1001 = vpop.permute.xlu0 %1000
  %1002 = vrot.lane.b32.xlu0 %v997, 32
  %v1003 = vpop.permute.xlu0 %1002
  %1006 = vst.msk [vmem:[#allocation2] sm:$0x3] %vm192, %v1001
  %1007 = vst.msk [vmem:[#allocation2 + $0x2] sm:$0x3] %vm192, %v1003
  %v1008 = vld [vmem:[#allocation2] sm:$0x3]
  %v1009 = vld [vmem:[#allocation2 + $0x2] sm:$0x3]
  %1011 = vset.pattern.permute.xlu0 0
  %1012 = vperm.xlu0 %1011, %v830
  %v1013 = vpop.permute.xlu0 %1012
  %1016 = vset.pattern.permute.xlu0 0
  %1017 = vperm.xlu0 %1016, %v831
  %v1018 = vpop.permute.xlu0 %1017
  %v1020 = vmul.f32 %v1008, %v1013
  %v1021 = vmul.f32 %v1009, %v1018
  %s1022 = scalar_lea.vmem %s3, 16
  %1023 = vst.msk [vmem:[%s1022] sm:$0x3] %vm192, %v1020
  %1024 = vst.msk [vmem:[%s1022 + $0x2] sm:$0x3] %vm192, %v1021
  %s1025 = scalar_lea.vmem %s0, 20
  %v1026 = vld [vmem:[%s1025] sm:$0x3]
  %v1027 = vld [vmem:[%s1025 + $0x2] sm:$0x3]
  %s1028 = scalar_lea.vmem %s1, 20
  %v1029 = vld [vmem:[%s1028] sm:$0x3]
  %v1030 = vld [vmem:[%s1028 + $0x2] sm:$0x3]
  %v1031 = vld [vmem:[#allocation2] sm:$0x3]
  %v1032 = vld [vmem:[#allocation2 + $0x2] sm:$0x3]
  %v1033 = vld [vmem:[#allocation3] sm:$0x3]
  %v1034 = vld [vmem:[#allocation3 + $0x2] sm:$0x3]
  %v1036 = vsel %vm39, %v1031, 0
  %1038 = vmatpush.msra.mxu0 0.0
  %1039 = vmatpush.msra.mxu0 0.0
  %1040 = vmatpush.msra.mxu0 0.0
  %1041 = vmatpush.msra.mxu0 0.0
  %1042 = vmatpush.msra.mxu0 0.0
  %1043 = vmatpush.msra.mxu0 0.0
  %1044 = vmatpush.msra.mxu0 0.0
  %1045 = vmatpush.msra.mxu0 0.0
  %1046 = vmatpush.msra.mxu0 0.0
  %1047 = vmatpush.msra.mxu0 0.0
  %1048 = vmatpush.msra.mxu0 0.0
  %1049 = vmatpush.msra.mxu0 0.0
  %1050 = vmatpush.msra.mxu0 %v26
  %1051 = vmatpush.msra.mxu0 %v25
  %1052 = vmatpush.msra.mxu0 %v24
  %1053 = vmatpush.msra.mxu0 %v23
  %1054 = vmatmul.f32.gmra.mxu0 %v1036
  %v1055 = vpop.f32.mrf.mxu0
  %v1056 = vadd.f32 0.0, %v1055
  %1057 = vdwg.mxu0
  %v1059 = vsel %vm39, %v1032, 0
  %1061 = vmatpush.msra.mxu0 0.0
  %1062 = vmatpush.msra.mxu0 0.0
  %1063 = vmatpush.msra.mxu0 0.0
  %1064 = vmatpush.msra.mxu0 0.0
  %1065 = vmatpush.msra.mxu0 0.0
  %1066 = vmatpush.msra.mxu0 0.0
  %1067 = vmatpush.msra.mxu0 0.0
  %1068 = vmatpush.msra.mxu0 0.0
  %1069 = vmatpush.msra.mxu0 0.0
  %1070 = vmatpush.msra.mxu0 0.0
  %1071 = vmatpush.msra.mxu0 0.0
  %1072 = vmatpush.msra.mxu0 0.0
  %1073 = vmatpush.msra.mxu0 %v30
  %1074 = vmatpush.msra.mxu0 %v29
  %1075 = vmatpush.msra.mxu0 %v28
  %1076 = vmatpush.msra.mxu0 %v27
  %1077 = vmatmul.f32.gmra.mxu0 %v1059
  %v1078 = vpop.f32.mrf.mxu0
  %v1079 = vadd.f32 0.0, %v1078
  %1080 = vdwg.mxu0
  %v1081 = vadd.f32 %v1026, %v1056
  %v1082 = vadd.f32 %v1027, %v1079
  %v1083 = vxor.u32 %v1081, 2147483648
  %v1084 = vxor.u32 %v1082, 2147483648
  %v1085 = vmul.f32 %v1083, 1.442695
  %v1086 = vpow.pop %v1085
  %v1087 = vmul.f32 %v1084, 1.442695
  %v1088 = vpow.pop %v1087
  %v1089 = vadd.f32 %v1086, 1.0
  %v1090 = vadd.f32 %v1088, 1.0
  %v1091 = vrcp.pop %v1089
  %v1092 = vmul.f32 %v1089, %v1091
  %v1093 = vsub.f32 1.0, %v1092
  %v1094 = vmul.f32 %v1091, %v1093
  %v1095 = vadd.f32 %v1091, %v1094
  %vm1096 = vweird.f32 %v1089
  %vm1097 = vweird.f32 %v1091
  %vm1098 = vmor %vm1096, %vm1097
  %v1099 = vsel %vm1098, %v1091, %v1095
  %v1100 = vand.u32 2147483647, %v1089
  %vm1101 = vcmp.eq.f32.partialorder %v1100, 8.507059e+37
  %v1102 = vand.u32 %v1089, 2147483648
  %v1103 = vor.u32 1.1754944e-38, %v1102
  %v1104 = vsel %vm1101, %v1103, %v1099
  %v1105 = vmul.f32 1.0, %v1104
  %v1106 = vrcp.pop %v1090
  %v1107 = vmul.f32 %v1090, %v1106
  %v1108 = vsub.f32 1.0, %v1107
  %v1109 = vmul.f32 %v1106, %v1108
  %v1110 = vadd.f32 %v1106, %v1109
  %vm1111 = vweird.f32 %v1090
  %vm1112 = vweird.f32 %v1106
  %vm1113 = vmor %vm1111, %vm1112
  %v1114 = vsel %vm1113, %v1106, %v1110
  %v1115 = vand.u32 2147483647, %v1090
  %vm1116 = vcmp.eq.f32.partialorder %v1115, 8.507059e+37
  %v1117 = vand.u32 %v1090, 2147483648
  %v1118 = vor.u32 1.1754944e-38, %v1117
  %v1119 = vsel %vm1116, %v1118, %v1114
  %v1120 = vmul.f32 1.0, %v1119
  %v1121 = vtanh.pop %v1081
  %v1122 = vtanh.pop %v1082
  %1125 = vrot.lane.b32.xlu0 %v1033, 32
  %v1126 = vpop.permute.xlu0 %1125
  %1127 = vrot.lane.b32.xlu0 %v1034, 32
  %v1128 = vpop.permute.xlu0 %1127
  %v1131 = vmul.f32 %v1105, %v1126
  %v1132 = vmul.f32 %v1120, %v1128
  %1135 = vrot.lane.b32.xlu0 %v1121, 64
  %v1136 = vpop.permute.xlu0 %1135
  %1137 = vrot.lane.b32.xlu0 %v1122, 64
  %v1138 = vpop.permute.xlu0 %1137
  %v1141 = vmul.f32 %v1105, %v1136
  %v1142 = vmul.f32 %v1120, %v1138
  %1145 = vrot.lane.b32.xlu0 %v1141, 32
  %v1146 = vpop.permute.xlu0 %1145
  %1147 = vrot.lane.b32.xlu0 %v1142, 32
  %v1148 = vpop.permute.xlu0 %1147
  %v1151 = vadd.f32 %v1131, %v1146
  %v1152 = vadd.f32 %v1132, %v1148
  %v1153 = vtanh.pop %v1151
  %v1154 = vtanh.pop %v1152
  %1157 = vrot.lane.b32.xlu0 %v1153, 64
  %v1158 = vpop.permute.xlu0 %1157
  %1159 = vrot.lane.b32.xlu0 %v1154, 64
  %v1160 = vpop.permute.xlu0 %1159
  %v1163 = vmul.f32 %v1105, %v1158
  %v1164 = vmul.f32 %v1120, %v1160
  %vm1165 = vcmp.gt.f32.partialorder %v1029, 0.0
  %vm1166 = vcmp.gt.f32.partialorder %v1030, 0.0
  %v1167 = vsel %vm1165, 1, 0
  %v1168 = vsel %vm1166, 1, 0
  %1169 = vset.pattern.permute.xlu0 0
  %1170 = vperm.xlu0 %1169, %v1167
  %v1171 = vpop.permute.xlu0 %1170
  %1172 = vset.pattern.permute.xlu0 0
  %1173 = vperm.xlu0 %1172, %v1168
  %v1174 = vpop.permute.xlu0 %1173
  %vm1175 = vcmp.eq.s32.totalorder %v1171, 1
  %vm1176 = vcmp.eq.s32.totalorder %v1174, 1
  %v1177 = vsel %vm1175, %v1151, %v1126
  %v1178 = vsel %vm1176, %v1152, %v1128
  %1181 = vrot.lane.b32.xlu0 %v1177, 96
  %v1182 = vpop.permute.xlu0 %1181
  %1183 = vrot.lane.b32.xlu0 %v1178, 96
  %v1184 = vpop.permute.xlu0 %1183
  %1187 = vst.msk [vmem:[#allocation3] sm:$0x3] %vm192, %v1182
  %1188 = vst.msk [vmem:[#allocation3 + $0x2] sm:$0x3] %vm192, %v1184
  %1189 = vrot.lane.b32.xlu0 %v1031, 96
  %v1190 = vpop.permute.xlu0 %1189
  %1191 = vrot.lane.b32.xlu0 %v1032, 96
  %v1192 = vpop.permute.xlu0 %1191
  %v1195 = vsel %vm1175, %v1163, %v1190
  %v1196 = vsel %vm1176, %v1164, %v1192
  %1199 = vrot.lane.b32.xlu0 %v1195, 32
  %v1200 = vpop.permute.xlu0 %1199
  %1201 = vrot.lane.b32.xlu0 %v1196, 32
  %v1202 = vpop.permute.xlu0 %1201
  %1205 = vst.msk [vmem:[#allocation2] sm:$0x3] %vm192, %v1200
  %1206 = vst.msk [vmem:[#allocation2 + $0x2] sm:$0x3] %vm192, %v1202
  %v1207 = vld [vmem:[#allocation2] sm:$0x3]
  %v1208 = vld [vmem:[#allocation2 + $0x2] sm:$0x3]
  %1210 = vset.pattern.permute.xlu0 0
  %1211 = vperm.xlu0 %1210, %v1029
  %v1212 = vpop.permute.xlu0 %1211
  %1215 = vset.pattern.permute.xlu0 0
  %1216 = vperm.xlu0 %1215, %v1030
  %v1217 = vpop.permute.xlu0 %1216
  %v1219 = vmul.f32 %v1207, %v1212
  %v1220 = vmul.f32 %v1208, %v1217
  %s1221 = scalar_lea.vmem %s3, 20
  %1222 = vst.msk [vmem:[%s1221] sm:$0x3] %vm192, %v1219
  %1223 = vst.msk [vmem:[%s1221 + $0x2] sm:$0x3] %vm192, %v1220
  %s1224 = scalar_lea.vmem %s0, 24
  %v1225 = vld [vmem:[%s1224] sm:$0x3]
  %v1226 = vld [vmem:[%s1224 + $0x2] sm:$0x3]
  %s1227 = scalar_lea.vmem %s1, 24
  %v1228 = vld [vmem:[%s1227] sm:$0x3]
  %v1229 = vld [vmem:[%s1227 + $0x2] sm:$0x3]
  %v1230 = vld [vmem:[#allocation2] sm:$0x3]
  %v1231 = vld [vmem:[#allocation2 + $0x2] sm:$0x3]
  %v1232 = vld [vmem:[#allocation3] sm:$0x3]
  %v1233 = vld [vmem:[#allocation3 + $0x2] sm:$0x3]
  %v1235 = vsel %vm39, %v1230, 0
  %1237 = vmatpush.msra.mxu0 0.0
  %1238 = vmatpush.msra.mxu0 0.0
  %1239 = vmatpush.msra.mxu0 0.0
  %1240 = vmatpush.msra.mxu0 0.0
  %1241 = vmatpush.msra.mxu0 0.0
  %1242 = vmatpush.msra.mxu0 0.0
  %1243 = vmatpush.msra.mxu0 0.0
  %1244 = vmatpush.msra.mxu0 0.0
  %1245 = vmatpush.msra.mxu0 0.0
  %1246 = vmatpush.msra.mxu0 0.0
  %1247 = vmatpush.msra.mxu0 0.0
  %1248 = vmatpush.msra.mxu0 0.0
  %1249 = vmatpush.msra.mxu0 %v26
  %1250 = vmatpush.msra.mxu0 %v25
  %1251 = vmatpush.msra.mxu0 %v24
  %1252 = vmatpush.msra.mxu0 %v23
  %1253 = vmatmul.f32.gmra.mxu0 %v1235
  %v1254 = vpop.f32.mrf.mxu0
  %v1255 = vadd.f32 0.0, %v1254
  %1256 = vdwg.mxu0
  %v1258 = vsel %vm39, %v1231, 0
  %1260 = vmatpush.msra.mxu0 0.0
  %1261 = vmatpush.msra.mxu0 0.0
  %1262 = vmatpush.msra.mxu0 0.0
  %1263 = vmatpush.msra.mxu0 0.0
  %1264 = vmatpush.msra.mxu0 0.0
  %1265 = vmatpush.msra.mxu0 0.0
  %1266 = vmatpush.msra.mxu0 0.0
  %1267 = vmatpush.msra.mxu0 0.0
  %1268 = vmatpush.msra.mxu0 0.0
  %1269 = vmatpush.msra.mxu0 0.0
  %1270 = vmatpush.msra.mxu0 0.0
  %1271 = vmatpush.msra.mxu0 0.0
  %1272 = vmatpush.msra.mxu0 %v30
  %1273 = vmatpush.msra.mxu0 %v29
  %1274 = vmatpush.msra.mxu0 %v28
  %1275 = vmatpush.msra.mxu0 %v27
  %1276 = vmatmul.f32.gmra.mxu0 %v1258
  %v1277 = vpop.f32.mrf.mxu0
  %v1278 = vadd.f32 0.0, %v1277
  %1279 = vdwg.mxu0
  %v1280 = vadd.f32 %v1225, %v1255
  %v1281 = vadd.f32 %v1226, %v1278
  %v1282 = vxor.u32 %v1280, 2147483648
  %v1283 = vxor.u32 %v1281, 2147483648
  %v1284 = vmul.f32 %v1282, 1.442695
  %v1285 = vpow.pop %v1284
  %v1286 = vmul.f32 %v1283, 1.442695
  %v1287 = vpow.pop %v1286
  %v1288 = vadd.f32 %v1285, 1.0
  %v1289 = vadd.f32 %v1287, 1.0
  %v1290 = vrcp.pop %v1288
  %v1291 = vmul.f32 %v1288, %v1290
  %v1292 = vsub.f32 1.0, %v1291
  %v1293 = vmul.f32 %v1290, %v1292
  %v1294 = vadd.f32 %v1290, %v1293
  %vm1295 = vweird.f32 %v1288
  %vm1296 = vweird.f32 %v1290
  %vm1297 = vmor %vm1295, %vm1296
  %v1298 = vsel %vm1297, %v1290, %v1294
  %v1299 = vand.u32 2147483647, %v1288
  %vm1300 = vcmp.eq.f32.partialorder %v1299, 8.507059e+37
  %v1301 = vand.u32 %v1288, 2147483648
  %v1302 = vor.u32 1.1754944e-38, %v1301
  %v1303 = vsel %vm1300, %v1302, %v1298
  %v1304 = vmul.f32 1.0, %v1303
  %v1305 = vrcp.pop %v1289
  %v1306 = vmul.f32 %v1289, %v1305
  %v1307 = vsub.f32 1.0, %v1306
  %v1308 = vmul.f32 %v1305, %v1307
  %v1309 = vadd.f32 %v1305, %v1308
  %vm1310 = vweird.f32 %v1289
  %vm1311 = vweird.f32 %v1305
  %vm1312 = vmor %vm1310, %vm1311
  %v1313 = vsel %vm1312, %v1305, %v1309
  %v1314 = vand.u32 2147483647, %v1289
  %vm1315 = vcmp.eq.f32.partialorder %v1314, 8.507059e+37
  %v1316 = vand.u32 %v1289, 2147483648
  %v1317 = vor.u32 1.1754944e-38, %v1316
  %v1318 = vsel %vm1315, %v1317, %v1313
  %v1319 = vmul.f32 1.0, %v1318
  %v1320 = vtanh.pop %v1280
  %v1321 = vtanh.pop %v1281
  %1324 = vrot.lane.b32.xlu0 %v1232, 32
  %v1325 = vpop.permute.xlu0 %1324
  %1326 = vrot.lane.b32.xlu0 %v1233, 32
  %v1327 = vpop.permute.xlu0 %1326
  %v1330 = vmul.f32 %v1304, %v1325
  %v1331 = vmul.f32 %v1319, %v1327
  %1334 = vrot.lane.b32.xlu0 %v1320, 64
  %v1335 = vpop.permute.xlu0 %1334
  %1336 = vrot.lane.b32.xlu0 %v1321, 64
  %v1337 = vpop.permute.xlu0 %1336
  %v1340 = vmul.f32 %v1304, %v1335
  %v1341 = vmul.f32 %v1319, %v1337
  %1344 = vrot.lane.b32.xlu0 %v1340, 32
  %v1345 = vpop.permute.xlu0 %1344
  %1346 = vrot.lane.b32.xlu0 %v1341, 32
  %v1347 = vpop.permute.xlu0 %1346
  %v1350 = vadd.f32 %v1330, %v1345
  %v1351 = vadd.f32 %v1331, %v1347
  %v1352 = vtanh.pop %v1350
  %v1353 = vtanh.pop %v1351
  %1356 = vrot.lane.b32.xlu0 %v1352, 64
  %v1357 = vpop.permute.xlu0 %1356
  %1358 = vrot.lane.b32.xlu0 %v1353, 64
  %v1359 = vpop.permute.xlu0 %1358
  %v1362 = vmul.f32 %v1304, %v1357
  %v1363 = vmul.f32 %v1319, %v1359
  %vm1364 = vcmp.gt.f32.partialorder %v1228, 0.0
  %vm1365 = vcmp.gt.f32.partialorder %v1229, 0.0
  %v1366 = vsel %vm1364, 1, 0
  %v1367 = vsel %vm1365, 1, 0
  %1368 = vset.pattern.permute.xlu0 0
  %1369 = vperm.xlu0 %1368, %v1366
  %v1370 = vpop.permute.xlu0 %1369
  %1371 = vset.pattern.permute.xlu0 0
  %1372 = vperm.xlu0 %1371, %v1367
  %v1373 = vpop.permute.xlu0 %1372
  %vm1374 = vcmp.eq.s32.totalorder %v1370, 1
  %vm1375 = vcmp.eq.s32.totalorder %v1373, 1
  %v1376 = vsel %vm1374, %v1350, %v1325
  %v1377 = vsel %vm1375, %v1351, %v1327
  %1380 = vrot.lane.b32.xlu0 %v1376, 96
  %v1381 = vpop.permute.xlu0 %1380
  %1382 = vrot.lane.b32.xlu0 %v1377, 96
  %v1383 = vpop.permute.xlu0 %1382
  %1386 = vst.msk [vmem:[#allocation3] sm:$0x3] %vm192, %v1381
  %1387 = vst.msk [vmem:[#allocation3 + $0x2] sm:$0x3] %vm192, %v1383
  %1388 = vrot.lane.b32.xlu0 %v1230, 96
  %v1389 = vpop.permute.xlu0 %1388
  %1390 = vrot.lane.b32.xlu0 %v1231, 96
  %v1391 = vpop.permute.xlu0 %1390
  %v1394 = vsel %vm1374, %v1362, %v1389
  %v1395 = vsel %vm1375, %v1363, %v1391
  %1398 = vrot.lane.b32.xlu0 %v1394, 32
  %v1399 = vpop.permute.xlu0 %1398
  %1400 = vrot.lane.b32.xlu0 %v1395, 32
  %v1401 = vpop.permute.xlu0 %1400
  %1404 = vst.msk [vmem:[#allocation2] sm:$0x3] %vm192, %v1399
  %1405 = vst.msk [vmem:[#allocation2 + $0x2] sm:$0x3] %vm192, %v1401
  %v1406 = vld [vmem:[#allocation2] sm:$0x3]
  %v1407 = vld [vmem:[#allocation2 + $0x2] sm:$0x3]
  %1409 = vset.pattern.permute.xlu0 0
  %1410 = vperm.xlu0 %1409, %v1228
  %v1411 = vpop.permute.xlu0 %1410
  %1414 = vset.pattern.permute.xlu0 0
  %1415 = vperm.xlu0 %1414, %v1229
  %v1416 = vpop.permute.xlu0 %1415
  %v1418 = vmul.f32 %v1406, %v1411
  %v1419 = vmul.f32 %v1407, %v1416
  %s1420 = scalar_lea.vmem %s3, 24
  %1421 = vst.msk [vmem:[%s1420] sm:$0x3] %vm192, %v1418
  %1422 = vst.msk [vmem:[%s1420 + $0x2] sm:$0x3] %vm192, %v1419
  %s1423 = scalar_lea.vmem %s0, 28
  %v1424 = vld [vmem:[%s1423] sm:$0x3]
  %v1425 = vld [vmem:[%s1423 + $0x2] sm:$0x3]
  %s1426 = scalar_lea.vmem %s1, 28
  %v1427 = vld [vmem:[%s1426] sm:$0x3]
  %v1428 = vld [vmem:[%s1426 + $0x2] sm:$0x3]
  %v1429 = vld [vmem:[#allocation2] sm:$0x3]
  %v1430 = vld [vmem:[#allocation2 + $0x2] sm:$0x3]
  %v1431 = vld [vmem:[#allocation3] sm:$0x3]
  %v1432 = vld [vmem:[#allocation3 + $0x2] sm:$0x3]
  %v1434 = vsel %vm39, %v1429, 0
  %1436 = vmatpush.msra.mxu0 0.0
  %1437 = vmatpush.msra.mxu0 0.0
  %1438 = vmatpush.msra.mxu0 0.0
  %1439 = vmatpush.msra.mxu0 0.0
  %1440 = vmatpush.msra.mxu0 0.0
  %1441 = vmatpush.msra.mxu0 0.0
  %1442 = vmatpush.msra.mxu0 0.0
  %1443 = vmatpush.msra.mxu0 0.0
  %1444 = vmatpush.msra.mxu0 0.0
  %1445 = vmatpush.msra.mxu0 0.0
  %1446 = vmatpush.msra.mxu0 0.0
  %1447 = vmatpush.msra.mxu0 0.0
  %1448 = vmatpush.msra.mxu0 %v26
  %1449 = vmatpush.msra.mxu0 %v25
  %1450 = vmatpush.msra.mxu0 %v24
  %1451 = vmatpush.msra.mxu0 %v23
  %1452 = vmatmul.f32.gmra.mxu0 %v1434
  %v1453 = vpop.f32.mrf.mxu0
  %v1454 = vadd.f32 0.0, %v1453
  %1455 = vdwg.mxu0
  %v1457 = vsel %vm39, %v1430, 0
  %1459 = vmatpush.msra.mxu0 0.0
  %1460 = vmatpush.msra.mxu0 0.0
  %1461 = vmatpush.msra.mxu0 0.0
  %1462 = vmatpush.msra.mxu0 0.0
  %1463 = vmatpush.msra.mxu0 0.0
  %1464 = vmatpush.msra.mxu0 0.0
  %1465 = vmatpush.msra.mxu0 0.0
  %1466 = vmatpush.msra.mxu0 0.0
  %1467 = vmatpush.msra.mxu0 0.0
  %1468 = vmatpush.msra.mxu0 0.0
  %1469 = vmatpush.msra.mxu0 0.0
  %1470 = vmatpush.msra.mxu0 0.0
  %1471 = vmatpush.msra.mxu0 %v30
  %1472 = vmatpush.msra.mxu0 %v29
  %1473 = vmatpush.msra.mxu0 %v28
  %1474 = vmatpush.msra.mxu0 %v27
  %1475 = vmatmul.f32.gmra.mxu0 %v1457
  %v1476 = vpop.f32.mrf.mxu0
  %v1477 = vadd.f32 0.0, %v1476
  %1478 = vdwg.mxu0
  %v1479 = vadd.f32 %v1424, %v1454
  %v1480 = vadd.f32 %v1425, %v1477
  %v1481 = vxor.u32 %v1479, 2147483648
  %v1482 = vxor.u32 %v1480, 2147483648
  %v1483 = vmul.f32 %v1481, 1.442695
  %v1484 = vpow.pop %v1483
  %v1485 = vmul.f32 %v1482, 1.442695
  %v1486 = vpow.pop %v1485
  %v1487 = vadd.f32 %v1484, 1.0
  %v1488 = vadd.f32 %v1486, 1.0
  %v1489 = vrcp.pop %v1487
  %v1490 = vmul.f32 %v1487, %v1489
  %v1491 = vsub.f32 1.0, %v1490
  %v1492 = vmul.f32 %v1489, %v1491
  %v1493 = vadd.f32 %v1489, %v1492
  %vm1494 = vweird.f32 %v1487
  %vm1495 = vweird.f32 %v1489
  %vm1496 = vmor %vm1494, %vm1495
  %v1497 = vsel %vm1496, %v1489, %v1493
  %v1498 = vand.u32 2147483647, %v1487
  %vm1499 = vcmp.eq.f32.partialorder %v1498, 8.507059e+37
  %v1500 = vand.u32 %v1487, 2147483648
  %v1501 = vor.u32 1.1754944e-38, %v1500
  %v1502 = vsel %vm1499, %v1501, %v1497
  %v1503 = vmul.f32 1.0, %v1502
  %v1504 = vrcp.pop %v1488
  %v1505 = vmul.f32 %v1488, %v1504
  %v1506 = vsub.f32 1.0, %v1505
  %v1507 = vmul.f32 %v1504, %v1506
  %v1508 = vadd.f32 %v1504, %v1507
  %vm1509 = vweird.f32 %v1488
  %vm1510 = vweird.f32 %v1504
  %vm1511 = vmor %vm1509, %vm1510
  %v1512 = vsel %vm1511, %v1504, %v1508
  %v1513 = vand.u32 2147483647, %v1488
  %vm1514 = vcmp.eq.f32.partialorder %v1513, 8.507059e+37
  %v1515 = vand.u32 %v1488, 2147483648
  %v1516 = vor.u32 1.1754944e-38, %v1515
  %v1517 = vsel %vm1514, %v1516, %v1512
  %v1518 = vmul.f32 1.0, %v1517
  %v1519 = vtanh.pop %v1479
  %v1520 = vtanh.pop %v1480
  %1523 = vrot.lane.b32.xlu0 %v1431, 32
  %v1524 = vpop.permute.xlu0 %1523
  %1525 = vrot.lane.b32.xlu0 %v1432, 32
  %v1526 = vpop.permute.xlu0 %1525
  %v1529 = vmul.f32 %v1503, %v1524
  %v1530 = vmul.f32 %v1518, %v1526
  %1533 = vrot.lane.b32.xlu0 %v1519, 64
  %v1534 = vpop.permute.xlu0 %1533
  %1535 = vrot.lane.b32.xlu0 %v1520, 64
  %v1536 = vpop.permute.xlu0 %1535
  %v1539 = vmul.f32 %v1503, %v1534
  %v1540 = vmul.f32 %v1518, %v1536
  %1543 = vrot.lane.b32.xlu0 %v1539, 32
  %v1544 = vpop.permute.xlu0 %1543
  %1545 = vrot.lane.b32.xlu0 %v1540, 32
  %v1546 = vpop.permute.xlu0 %1545
  %v1549 = vadd.f32 %v1529, %v1544
  %v1550 = vadd.f32 %v1530, %v1546
  %v1551 = vtanh.pop %v1549
  %v1552 = vtanh.pop %v1550
  %1555 = vrot.lane.b32.xlu0 %v1551, 64
  %v1556 = vpop.permute.xlu0 %1555
  %1557 = vrot.lane.b32.xlu0 %v1552, 64
  %v1558 = vpop.permute.xlu0 %1557
  %v1561 = vmul.f32 %v1503, %v1556
  %v1562 = vmul.f32 %v1518, %v1558
  %vm1563 = vcmp.gt.f32.partialorder %v1427, 0.0
  %vm1564 = vcmp.gt.f32.partialorder %v1428, 0.0
  %v1565 = vsel %vm1563, 1, 0
  %v1566 = vsel %vm1564, 1, 0
  %1567 = vset.pattern.permute.xlu0 0
  %1568 = vperm.xlu0 %1567, %v1565
  %v1569 = vpop.permute.xlu0 %1568
  %1570 = vset.pattern.permute.xlu0 0
  %1571 = vperm.xlu0 %1570, %v1566
  %v1572 = vpop.permute.xlu0 %1571
  %vm1573 = vcmp.eq.s32.totalorder %v1569, 1
  %vm1574 = vcmp.eq.s32.totalorder %v1572, 1
  %v1575 = vsel %vm1573, %v1549, %v1524
  %v1576 = vsel %vm1574, %v1550, %v1526
  %1579 = vrot.lane.b32.xlu0 %v1575, 96
  %v1580 = vpop.permute.xlu0 %1579
  %1581 = vrot.lane.b32.xlu0 %v1576, 96
  %v1582 = vpop.permute.xlu0 %1581
  %1585 = vst.msk [vmem:[#allocation3] sm:$0x3] %vm192, %v1580
  %1586 = vst.msk [vmem:[#allocation3 + $0x2] sm:$0x3] %vm192, %v1582
  %1587 = vrot.lane.b32.xlu0 %v1429, 96
  %v1588 = vpop.permute.xlu0 %1587
  %1589 = vrot.lane.b32.xlu0 %v1430, 96
  %v1590 = vpop.permute.xlu0 %1589
  %v1593 = vsel %vm1573, %v1561, %v1588
  %v1594 = vsel %vm1574, %v1562, %v1590
  %1597 = vrot.lane.b32.xlu0 %v1593, 32
  %v1598 = vpop.permute.xlu0 %1597
  %1599 = vrot.lane.b32.xlu0 %v1594, 32
  %v1600 = vpop.permute.xlu0 %1599
  %1603 = vst.msk [vmem:[#allocation2] sm:$0x3] %vm192, %v1598
  %1604 = vst.msk [vmem:[#allocation2 + $0x2] sm:$0x3] %vm192, %v1600
  %v1605 = vld [vmem:[#allocation2] sm:$0x3]
  %v1606 = vld [vmem:[#allocation2 + $0x2] sm:$0x3]
  %1608 = vset.pattern.permute.xlu0 0
  %1609 = vperm.xlu0 %1608, %v1427
  %v1610 = vpop.permute.xlu0 %1609
  %1613 = vset.pattern.permute.xlu0 0
  %1614 = vperm.xlu0 %1613, %v1428
  %v1615 = vpop.permute.xlu0 %1614
  %v1617 = vmul.f32 %v1605, %v1610
  %v1618 = vmul.f32 %v1606, %v1615
  %s1619 = scalar_lea.vmem %s3, 28
  %1620 = vst.msk [vmem:[%s1619] sm:$0x3] %vm192, %v1617
  %1621 = vst.msk [vmem:[%s1619 + $0x2] sm:$0x3] %vm192, %v1618
  // Predicated region
  $region18: #{run.6} parent=0 // pred_check
    _
  $region19: #{run.6} parent=0 // pred_check_branch
    %1623 = sbr.rel (0) target = $region21
  $region20: #{run.6} parent=0 // pred_region
    _
  $region21: #{run.6} parent=0 // pred_fallthru
    _
  // Predicated region
  $region22: #{run.6} parent=0 // pred_check
    _
  $region23: #{run.6} parent=0 // pred_check_branch
    %1625 = sbr.rel (0) target = $region25
  $region24: #{run.6} parent=0 // pred_region
    _
  $region25: #{run.6} parent=0 // pred_fallthru
    _

// kernel: run.4
$region0: #{run.4}
  #allocation0 [shape = 'u32[]', space=smem, size = 0x4, offset = 0x4, fixed_abs, tag = 'smem constant byte address 0x4 - core index']
  #allocation1 [shape = 'u32[72,128]{1,0:T(1,128)}', space=vmem, size = 0x9000, scoped, tag = 'internal scratch']
  %s0 = inlined_call_operand.vmem [shape: f32[16,15,48], index: 0, kind: input, shape index: {}]
  %s1 = inlined_call_operand.vmem [shape: f32[16,15,1], index: 1, kind: input, shape index: {}]
  %s2 = inlined_call_operand.vmem [shape: f32[48,16], index: 2, kind: input, shape index: {}]
  %s3 = inlined_call_operand.vmem [shape: f32[1,16], index: 3, kind: input, shape index: {}]
  %s4 = inlined_call_operand.vmem [shape: f32[16,16], index: 4, kind: output, shape index: {}]
  %s5 = sld [smem:[#allocation0]]
  $region26: #{run.4} parent=0
    _
  %s7 = ssub.s32 1, %s5
  %s8 = scalar_select 0, %s7, %s5
  // Predicated region
  $region2: #{run.4} parent=0 // pred_check
    _
  $region3: #{run.4} parent=0 // pred_check_branch
    %10 = sbr.rel (0) target = $region5
  $region4: #{run.4} parent=0 // pred_region
    _
  $region5: #{run.4} parent=0 // pred_fallthru
    _
  // Predicated region
  $region6: #{run.4} parent=0 // pred_check
    _
  $region7: #{run.4} parent=0 // pred_check_branch
    %12 = sbr.rel (0) target = $region9
  $region8: #{run.4} parent=0 // pred_region
    _
  $region9: #{run.4} parent=0 // pred_fallthru
    _
  // Predicated region
  $region10: #{run.4} parent=0 // pred_check
    _
  $region11: #{run.4} parent=0 // pred_check_branch
    %14 = sbr.rel (0) target = $region13
  $region12: #{run.4} parent=0 // pred_region
    _
  $region13: #{run.4} parent=0 // pred_fallthru
    _
  // Predicated region
  $region14: #{run.4} parent=0 // pred_check
    _
  $region15: #{run.4} parent=0 // pred_check_branch
    %16 = sbr.rel (0) target = $region17
  $region16: #{run.4} parent=0 // pred_region
    _
  $region17: #{run.4} parent=0 // pred_fallthru
    _
  %v17 = vld [vmem:[%s0] sm:$0xff]
  %v18 = vld [vmem:[%s0 + $0x8] sm:$0x7f]
  %v19 = vld [vmem:[%s0 + $0x10] sm:$0xff]
  %v20 = vld [vmem:[%s0 + $0x18] sm:$0x7f]
  %v21 = vld [vmem:[%s0 + $0x20] sm:$0xff]
  %v22 = vld [vmem:[%s0 + $0x28] sm:$0x7f]
  %v23 = vld [vmem:[%s0 + $0x30] sm:$0xff]
  %v24 = vld [vmem:[%s0 + $0x38] sm:$0x7f]
  %v25 = vld [vmem:[%s0 + $0x40] sm:$0xff]
  %v26 = vld [vmem:[%s0 + $0x48] sm:$0x7f]
  %v27 = vld [vmem:[%s0 + $0x50] sm:$0xff]
  %v28 = vld [vmem:[%s0 + $0x58] sm:$0x7f]
  %v29 = vld [vmem:[%s0 + $0x60] sm:$0xff]
  %v30 = vld [vmem:[%s0 + $0x68] sm:$0x7f]
  %v31 = vld [vmem:[%s0 + $0x70] sm:$0xff]
  %v32 = vld [vmem:[%s0 + $0x78] sm:$0x7f]
  %v33 = vld [vmem:[%s0 + $0x80] sm:$0xff]
  %v34 = vld [vmem:[%s0 + $0x88] sm:$0x7f]
  %v35 = vld [vmem:[%s0 + $0x90] sm:$0xff]
  %v36 = vld [vmem:[%s0 + $0x98] sm:$0x7f]
  %v37 = vld [vmem:[%s0 + $0xa0] sm:$0xff]
  %v38 = vld [vmem:[%s0 + $0xa8] sm:$0x7f]
  %v39 = vld [vmem:[%s0 + $0xb0] sm:$0xff]
  %v40 = vld [vmem:[%s0 + $0xb8] sm:$0x7f]
  %v41 = vld [vmem:[%s0 + $0xc0] sm:$0xff]
  %v42 = vld [vmem:[%s0 + $0xc8] sm:$0x7f]
  %v43 = vld [vmem:[%s0 + $0xd0] sm:$0xff]
  %v44 = vld [vmem:[%s0 + $0xd8] sm:$0x7f]
  %v45 = vld [vmem:[%s0 + $0xe0] sm:$0xff]
  %v46 = vld [vmem:[%s0 + $0xe8] sm:$0x7f]
  %v47 = vld [vmem:[%s0 + $0xf0] sm:$0xff]
  %v48 = vld [vmem:[%s0 + $0xf8] sm:$0x7f]
  %v49 = vld [vmem:[%s2] sm:$0xff]
  %v50 = vld [vmem:[%s2 + $0x8] sm:$0xff]
  %v51 = vld [vmem:[%s2 + $0x10] sm:$0xff]
  %v52 = vld [vmem:[%s2 + $0x18] sm:$0xff]
  %v53 = vld [vmem:[%s2 + $0x20] sm:$0xff]
  %v54 = vld [vmem:[%s2 + $0x28] sm:$0xff]
  %v55 = vld [vmem:[%s3] sm:$0x1]
  %v57 = vperm.slane %v55, 0
  %v90 = vrot.slane %v17, 1
  %v91 = vrot.slane %v17, 2
  %v92 = vrot.slane %v17, 3
  %v93 = vrot.slane %v17, 4
  %v94 = vrot.slane %v17, 5
  %v95 = vrot.slane %v17, 6
  %v96 = vrot.slane %v17, 7
  %v97 = vrot.slane %v18, 1
  %v98 = vrot.slane %v18, 2
  %v99 = vrot.slane %v18, 3
  %v100 = vrot.slane %v18, 4
  %v101 = vrot.slane %v18, 5
  %v102 = vrot.slane %v18, 6
  %v103 = vrot.slane %v19, 1
  %v104 = vrot.slane %v19, 2
  %v105 = vrot.slane %v19, 3
  %v106 = vrot.slane %v19, 4
  %v107 = vrot.slane %v19, 5
  %v108 = vrot.slane %v19, 6
  %v109 = vrot.slane %v19, 7
  %v110 = vrot.slane %v20, 1
  %v111 = vrot.slane %v20, 2
  %v112 = vrot.slane %v20, 3
  %v113 = vrot.slane %v20, 4
  %v114 = vrot.slane %v20, 5
  %v115 = vrot.slane %v20, 6
  %v116 = vrot.slane %v21, 1
  %v117 = vrot.slane %v21, 2
  %v118 = vrot.slane %v21, 3
  %v119 = vrot.slane %v21, 4
  %v120 = vrot.slane %v21, 5
  %v121 = vrot.slane %v21, 6
  %v122 = vrot.slane %v21, 7
  %v123 = vrot.slane %v22, 1
  %v124 = vrot.slane %v22, 2
  %v125 = vrot.slane %v22, 3
  %v126 = vrot.slane %v22, 4
  %v127 = vrot.slane %v22, 5
  %v128 = vrot.slane %v22, 6
  %v129 = vrot.slane %v23, 1
  %v130 = vrot.slane %v23, 2
  %v131 = vrot.slane %v23, 3
  %v132 = vrot.slane %v23, 4
  %v133 = vrot.slane %v23, 5
  %v134 = vrot.slane %v23, 6
  %v135 = vrot.slane %v23, 7
  %v136 = vrot.slane %v24, 1
  %v137 = vrot.slane %v24, 2
  %v138 = vrot.slane %v24, 3
  %v139 = vrot.slane %v24, 4
  %v140 = vrot.slane %v24, 5
  %v141 = vrot.slane %v24, 6
  %v142 = vrot.slane %v25, 1
  %v143 = vrot.slane %v25, 2
  %v144 = vrot.slane %v25, 3
  %v145 = vrot.slane %v25, 4
  %v146 = vrot.slane %v25, 5
  %v147 = vrot.slane %v25, 6
  %v148 = vrot.slane %v25, 7
  %v149 = vrot.slane %v26, 1
  %v150 = vrot.slane %v26, 2
  %v151 = vrot.slane %v26, 3
  %v152 = vrot.slane %v26, 4
  %v153 = vrot.slane %v26, 5
  %v154 = vrot.slane %v26, 6
  %v155 = vrot.slane %v27, 1
  %v156 = vrot.slane %v27, 2
  %v157 = vrot.slane %v27, 3
  %v158 = vrot.slane %v27, 4
  %v159 = vrot.slane %v27, 5
  %v160 = vrot.slane %v27, 6
  %v161 = vrot.slane %v27, 7
  %v162 = vrot.slane %v28, 1
  %v163 = vrot.slane %v28, 2
  %v164 = vrot.slane %v28, 3
  %v165 = vrot.slane %v28, 4
  %v166 = vrot.slane %v28, 5
  %v167 = vrot.slane %v28, 6
  %v168 = vrot.slane %v29, 1
  %v169 = vrot.slane %v29, 2
  %v170 = vrot.slane %v29, 3
  %v171 = vrot.slane %v29, 4
  %v172 = vrot.slane %v29, 5
  %v173 = vrot.slane %v29, 6
  %v174 = vrot.slane %v29, 7
  %v175 = vrot.slane %v30, 1
  %v176 = vrot.slane %v30, 2
  %v177 = vrot.slane %v30, 3
  %v178 = vrot.slane %v30, 4
  %v179 = vrot.slane %v30, 5
  %v180 = vrot.slane %v30, 6
  %v181 = vrot.slane %v31, 1
  %v182 = vrot.slane %v31, 2
  %v183 = vrot.slane %v31, 3
  %v184 = vrot.slane %v31, 4
  %v185 = vrot.slane %v31, 5
  %v186 = vrot.slane %v31, 6
  %v187 = vrot.slane %v31, 7
  %v188 = vrot.slane %v32, 1
  %v189 = vrot.slane %v32, 2
  %v190 = vrot.slane %v32, 3
  %v191 = vrot.slane %v32, 4
  %v192 = vrot.slane %v32, 5
  %v193 = vrot.slane %v32, 6
  %v194 = vrot.slane %v33, 1
  %v195 = vrot.slane %v33, 2
  %v196 = vrot.slane %v33, 3
  %v197 = vrot.slane %v33, 4
  %v198 = vrot.slane %v33, 5
  %v199 = vrot.slane %v33, 6
  %v200 = vrot.slane %v33, 7
  %v201 = vrot.slane %v34, 1
  %v202 = vrot.slane %v34, 2
  %v203 = vrot.slane %v34, 3
  %v204 = vrot.slane %v34, 4
  %v205 = vrot.slane %v34, 5
  %v206 = vrot.slane %v34, 6
  %v207 = vrot.slane %v35, 1
  %v208 = vrot.slane %v35, 2
  %v209 = vrot.slane %v35, 3
  %v210 = vrot.slane %v35, 4
  %v211 = vrot.slane %v35, 5
  %v212 = vrot.slane %v35, 6
  %v213 = vrot.slane %v35, 7
  %v214 = vrot.slane %v36, 1
  %v215 = vrot.slane %v36, 2
  %v216 = vrot.slane %v36, 3
  %v217 = vrot.slane %v36, 4
  %v218 = vrot.slane %v36, 5
  %v219 = vrot.slane %v36, 6
  %v220 = vrot.slane %v37, 1
  %v221 = vrot.slane %v37, 2
  %v222 = vrot.slane %v37, 3
  %v223 = vrot.slane %v37, 4
  %v224 = vrot.slane %v37, 5
  %v225 = vrot.slane %v37, 6
  %v226 = vrot.slane %v37, 7
  %v227 = vrot.slane %v38, 1
  %v228 = vrot.slane %v38, 2
  %v229 = vrot.slane %v38, 3
  %v230 = vrot.slane %v38, 4
  %v231 = vrot.slane %v38, 5
  %v232 = vrot.slane %v38, 6
  %v233 = vrot.slane %v39, 1
  %v234 = vrot.slane %v39, 2
  %v235 = vrot.slane %v39, 3
  %v236 = vrot.slane %v39, 4
  %v237 = vrot.slane %v39, 5
  %v238 = vrot.slane %v39, 6
  %v239 = vrot.slane %v39, 7
  %v240 = vrot.slane %v40, 1
  %v241 = vrot.slane %v40, 2
  %v242 = vrot.slane %v40, 3
  %v243 = vrot.slane %v40, 4
  %v244 = vrot.slane %v40, 5
  %v245 = vrot.slane %v40, 6
  %v246 = vrot.slane %v41, 1
  %v247 = vrot.slane %v41, 2
  %v248 = vrot.slane %v41, 3
  %v249 = vrot.slane %v41, 4
  %v250 = vrot.slane %v41, 5
  %v251 = vrot.slane %v41, 6
  %v252 = vrot.slane %v41, 7
  %v253 = vrot.slane %v42, 1
  %v254 = vrot.slane %v42, 2
  %v255 = vrot.slane %v42, 3
  %v256 = vrot.slane %v42, 4
  %v257 = vrot.slane %v42, 5
  %v258 = vrot.slane %v42, 6
  %v259 = vrot.slane %v43, 1
  %v260 = vrot.slane %v43, 2
  %v261 = vrot.slane %v43, 3
  %v262 = vrot.slane %v43, 4
  %v263 = vrot.slane %v43, 5
  %v264 = vrot.slane %v43, 6
  %v265 = vrot.slane %v43, 7
  %v266 = vrot.slane %v44, 1
  %v267 = vrot.slane %v44, 2
  %v268 = vrot.slane %v44, 3
  %v269 = vrot.slane %v44, 4
  %v270 = vrot.slane %v44, 5
  %v271 = vrot.slane %v44, 6
  %v272 = vrot.slane %v45, 1
  %v273 = vrot.slane %v45, 2
  %v274 = vrot.slane %v45, 3
  %v275 = vrot.slane %v45, 4
  %v276 = vrot.slane %v45, 5
  %v277 = vrot.slane %v45, 6
  %v278 = vrot.slane %v45, 7
  %v279 = vrot.slane %v46, 1
  %v280 = vrot.slane %v46, 2
  %v281 = vrot.slane %v46, 3
  %v282 = vrot.slane %v46, 4
  %v283 = vrot.slane %v46, 5
  %v284 = vrot.slane %v46, 6
  %v285 = vrot.slane %v47, 1
  %v286 = vrot.slane %v47, 2
  %v287 = vrot.slane %v47, 3
  %v288 = vrot.slane %v47, 4
  %v289 = vrot.slane %v47, 5
  %v290 = vrot.slane %v47, 6
  %v291 = vrot.slane %v47, 7
  %v292 = vrot.slane %v48, 1
  %v293 = vrot.slane %v48, 2
  %v294 = vrot.slane %v48, 3
  %v295 = vrot.slane %v48, 4
  %v296 = vrot.slane %v48, 5
  %v297 = vrot.slane %v48, 6
  %v298 = vrot.slane %v57, 1
  %v299 = vrot.slane %v57, 2
  %v300 = vrot.slane %v57, 3
  %v301 = vrot.slane %v57, 4
  %v302 = vrot.slane %v57, 5
  %v303 = vrot.slane %v57, 6
  %v304 = vrot.slane %v57, 7
  %305 = vst [vmem:[#allocation1] ss:$9 sm:$0xff] %v17
  %s306 = scalar_lea.vmem [#allocation1], 1
  %307 = vst [vmem:[%s306] ss:$9 sm:$0xff] %v90
  %s308 = scalar_lea.vmem [#allocation1], 2
  %309 = vst [vmem:[%s308] ss:$9 sm:$0xff] %v91
  %s310 = scalar_lea.vmem [#allocation1], 3
  %311 = vst [vmem:[%s310] ss:$9 sm:$0xff] %v92
  %s312 = scalar_lea.vmem [#allocation1], 4
  %313 = vst [vmem:[%s312] ss:$9 sm:$0xff] %v93
  %s314 = scalar_lea.vmem [#allocation1], 5
  %315 = vst [vmem:[%s314] ss:$9 sm:$0xff] %v94
  %s316 = scalar_lea.vmem [#allocation1], 6
  %317 = vst [vmem:[%s316] ss:$9 sm:$0xff] %v95
  %s318 = scalar_lea.vmem [#allocation1], 7
  %319 = vst [vmem:[%s318] ss:$9 sm:$0xff] %v96
  %v320 = vld [vmem:[#allocation1] sm:$0xff]
  %321 = vst [vmem:[#allocation1] ss:$9 sm:$0xff] %v18
  %322 = vst [vmem:[%s306] ss:$9 sm:$0xff] %v97
  %323 = vst [vmem:[%s308] ss:$9 sm:$0xff] %v98
  %324 = vst [vmem:[%s310] ss:$9 sm:$0xff] %v99
  %325 = vst [vmem:[%s312] ss:$9 sm:$0xff] %v100
  %326 = vst [vmem:[%s314] ss:$9 sm:$0xff] %v101
  %327 = vst [vmem:[%s316] ss:$9 sm:$0xff] %v102
  %328 = vst [vmem:[%s318] ss:$9 sm:$0xff] %v19
  %v329 = vld [vmem:[#allocation1] sm:$0xff]
  %330 = vst [vmem:[#allocation1] ss:$9 sm:$0xff] %v103
  %331 = vst [vmem:[%s306] ss:$9 sm:$0xff] %v104
  %332 = vst [vmem:[%s308] ss:$9 sm:$0xff] %v105
  %333 = vst [vmem:[%s310] ss:$9 sm:$0xff] %v106
  %334 = vst [vmem:[%s312] ss:$9 sm:$0xff] %v107
  %335 = vst [vmem:[%s314] ss:$9 sm:$0xff] %v108
  %336 = vst [vmem:[%s316] ss:$9 sm:$0xff] %v109
  %337 = vst [vmem:[%s318] ss:$9 sm:$0xff] %v20
  %v338 = vld [vmem:[#allocation1] sm:$0xff]
  %339 = vst [vmem:[#allocation1] ss:$9 sm:$0xff] %v110
  %340 = vst [vmem:[%s306] ss:$9 sm:$0xff] %v111
  %341 = vst [vmem:[%s308] ss:$9 sm:$0xff] %v112
  %342 = vst [vmem:[%s310] ss:$9 sm:$0xff] %v113
  %343 = vst [vmem:[%s312] ss:$9 sm:$0xff] %v114
  %344 = vst [vmem:[%s314] ss:$9 sm:$0xff] %v115
  %345 = vst [vmem:[%s316] ss:$9 sm:$0xff] %v21
  %346 = vst [vmem:[%s318] ss:$9 sm:$0xff] %v116
  %v347 = vld [vmem:[#allocation1] sm:$0xff]
  %348 = vst [vmem:[#allocation1] ss:$9 sm:$0xff] %v117
  %349 = vst [vmem:[%s306] ss:$9 sm:$0xff] %v118
  %350 = vst [vmem:[%s308] ss:$9 sm:$0xff] %v119
  %351 = vst [vmem:[%s310] ss:$9 sm:$0xff] %v120
  %352 = vst [vmem:[%s312] ss:$9 sm:$0xff] %v121
  %353 = vst [vmem:[%s314] ss:$9 sm:$0xff] %v122
  %354 = vst [vmem:[%s316] ss:$9 sm:$0xff] %v22
  %355 = vst [vmem:[%s318] ss:$9 sm:$0xff] %v123
  %v356 = vld [vmem:[#allocation1] sm:$0xff]
  %357 = vst [vmem:[#allocation1] ss:$9 sm:$0xff] %v124
  %358 = vst [vmem:[%s306] ss:$9 sm:$0xff] %v125
  %359 = vst [vmem:[%s308] ss:$9 sm:$0xff] %v126
  %360 = vst [vmem:[%s310] ss:$9 sm:$0xff] %v127
  %361 = vst [vmem:[%s312] ss:$9 sm:$0xff] %v128
  %362 = vst [vmem:[%s314] ss:$9 sm:$0xff] %v23
  %363 = vst [vmem:[%s316] ss:$9 sm:$0xff] %v129
  %364 = vst [vmem:[%s318] ss:$9 sm:$0xff] %v130
  %v365 = vld [vmem:[#allocation1] sm:$0xff]
  %366 = vst [vmem:[#allocation1] ss:$9 sm:$0xff] %v131
  %367 = vst [vmem:[%s306] ss:$9 sm:$0xff] %v132
  %368 = vst [vmem:[%s308] ss:$9 sm:$0xff] %v133
  %369 = vst [vmem:[%s310] ss:$9 sm:$0xff] %v134
  %370 = vst [vmem:[%s312] ss:$9 sm:$0xff] %v135
  %371 = vst [vmem:[%s314] ss:$9 sm:$0xff] %v24
  %372 = vst [vmem:[%s316] ss:$9 sm:$0xff] %v136
  %373 = vst [vmem:[%s318] ss:$9 sm:$0xff] %v137
  %v374 = vld [vmem:[#allocation1] sm:$0xff]
  %375 = vst [vmem:[#allocation1] ss:$9 sm:$0xff] %v138
  %376 = vst [vmem:[%s306] ss:$9 sm:$0xff] %v139
  %377 = vst [vmem:[%s308] ss:$9 sm:$0xff] %v140
  %378 = vst [vmem:[%s310] ss:$9 sm:$0xff] %v141
  %379 = vst [vmem:[%s312] ss:$9 sm:$0xff] %v25
  %380 = vst [vmem:[%s314] ss:$9 sm:$0xff] %v142
  %381 = vst [vmem:[%s316] ss:$9 sm:$0xff] %v143
  %382 = vst [vmem:[%s318] ss:$9 sm:$0xff] %v144
  %v383 = vld [vmem:[#allocation1] sm:$0xff]
  %384 = vst [vmem:[#allocation1] ss:$9 sm:$0xff] %v145
  %385 = vst [vmem:[%s306] ss:$9 sm:$0xff] %v146
  %386 = vst [vmem:[%s308] ss:$9 sm:$0xff] %v147
  %387 = vst [vmem:[%s310] ss:$9 sm:$0xff] %v148
  %388 = vst [vmem:[%s312] ss:$9 sm:$0xff] %v26
  %389 = vst [vmem:[%s314] ss:$9 sm:$0xff] %v149
  %390 = vst [vmem:[%s316] ss:$9 sm:$0xff] %v150
  %391 = vst [vmem:[%s318] ss:$9 sm:$0xff] %v151
  %v392 = vld [vmem:[#allocation1] sm:$0xff]
  %393 = vst [vmem:[#allocation1] ss:$9 sm:$0xff] %v152
  %394 = vst [vmem:[%s306] ss:$9 sm:$0xff] %v153
  %395 = vst [vmem:[%s308] ss:$9 sm:$0xff] %v154
  %396 = vst [vmem:[%s310] ss:$9 sm:$0xff] %v27
  %397 = vst [vmem:[%s312] ss:$9 sm:$0xff] %v155
  %398 = vst [vmem:[%s314] ss:$9 sm:$0xff] %v156
  %399 = vst [vmem:[%s316] ss:$9 sm:$0xff] %v157
  %400 = vst [vmem:[%s318] ss:$9 sm:$0xff] %v158
  %v401 = vld [vmem:[#allocation1] sm:$0xff]
  %402 = vst [vmem:[#allocation1] ss:$9 sm:$0xff] %v159
  %403 = vst [vmem:[%s306] ss:$9 sm:$0xff] %v160
  %404 = vst [vmem:[%s308] ss:$9 sm:$0xff] %v161
  %405 = vst [vmem:[%s310] ss:$9 sm:$0xff] %v28
  %406 = vst [vmem:[%s312] ss:$9 sm:$0xff] %v162
  %407 = vst [vmem:[%s314] ss:$9 sm:$0xff] %v163
  %408 = vst [vmem:[%s316] ss:$9 sm:$0xff] %v164
  %409 = vst [vmem:[%s318] ss:$9 sm:$0xff] %v165
  %v410 = vld [vmem:[#allocation1] sm:$0xff]
  %411 = vst [vmem:[#allocation1] ss:$9 sm:$0xff] %v166
  %412 = vst [vmem:[%s306] ss:$9 sm:$0xff] %v167
  %413 = vst [vmem:[%s308] ss:$9 sm:$0xff] %v29
  %414 = vst [vmem:[%s310] ss:$9 sm:$0xff] %v168
  %415 = vst [vmem:[%s312] ss:$9 sm:$0xff] %v169
  %416 = vst [vmem:[%s314] ss:$9 sm:$0xff] %v170
  %417 = vst [vmem:[%s316] ss:$9 sm:$0xff] %v171
  %418 = vst [vmem:[%s318] ss:$9 sm:$0xff] %v172
  %v419 = vld [vmem:[#allocation1] sm:$0xff]
  %420 = vst [vmem:[#allocation1] ss:$9 sm:$0xff] %v173
  %421 = vst [vmem:[%s306] ss:$9 sm:$0xff] %v174
  %422 = vst [vmem:[%s308] ss:$9 sm:$0xff] %v30
  %423 = vst [vmem:[%s310] ss:$9 sm:$0xff] %v175
  %424 = vst [vmem:[%s312] ss:$9 sm:$0xff] %v176
  %425 = vst [vmem:[%s314] ss:$9 sm:$0xff] %v177
  %426 = vst [vmem:[%s316] ss:$9 sm:$0xff] %v178
  %427 = vst [vmem:[%s318] ss:$9 sm:$0xff] %v179
  %v428 = vld [vmem:[#allocation1] sm:$0xff]
  %429 = vst [vmem:[#allocation1] ss:$9 sm:$0xff] %v180
  %430 = vst [vmem:[%s306] ss:$9 sm:$0xff] %v31
  %431 = vst [vmem:[%s308] ss:$9 sm:$0xff] %v181
  %432 = vst [vmem:[%s310] ss:$9 sm:$0xff] %v182
  %433 = vst [vmem:[%s312] ss:$9 sm:$0xff] %v183
  %434 = vst [vmem:[%s314] ss:$9 sm:$0xff] %v184
  %435 = vst [vmem:[%s316] ss:$9 sm:$0xff] %v185
  %436 = vst [vmem:[%s318] ss:$9 sm:$0xff] %v186
  %v437 = vld [vmem:[#allocation1] sm:$0xff]
  %438 = vst [vmem:[#allocation1] ss:$9 sm:$0xff] %v187
  %439 = vst [vmem:[%s306] ss:$9 sm:$0xff] %v32
  %440 = vst [vmem:[%s308] ss:$9 sm:$0xff] %v188
  %441 = vst [vmem:[%s310] ss:$9 sm:$0xff] %v189
  %442 = vst [vmem:[%s312] ss:$9 sm:$0xff] %v190
  %443 = vst [vmem:[%s314] ss:$9 sm:$0xff] %v191
  %444 = vst [vmem:[%s316] ss:$9 sm:$0xff] %v192
  %445 = vst [vmem:[%s318] ss:$9 sm:$0xff] %v193
  %v446 = vld [vmem:[#allocation1] sm:$0xff]
  %447 = vst [vmem:[#allocation1] ss:$9 sm:$0xff] %v33
  %448 = vst [vmem:[%s306] ss:$9 sm:$0xff] %v194
  %449 = vst [vmem:[%s308] ss:$9 sm:$0xff] %v195
  %450 = vst [vmem:[%s310] ss:$9 sm:$0xff] %v196
  %451 = vst [vmem:[%s312] ss:$9 sm:$0xff] %v197
  %452 = vst [vmem:[%s314] ss:$9 sm:$0xff] %v198
  %453 = vst [vmem:[%s316] ss:$9 sm:$0xff] %v199
  %454 = vst [vmem:[%s318] ss:$9 sm:$0xff] %v200
  %v455 = vld [vmem:[#allocation1] sm:$0xff]
  %456 = vst [vmem:[#allocation1] ss:$9 sm:$0xff] %v34
  %457 = vst [vmem:[%s306] ss:$9 sm:$0xff] %v201
  %458 = vst [vmem:[%s308] ss:$9 sm:$0xff] %v202
  %459 = vst [vmem:[%s310] ss:$9 sm:$0xff] %v203
  %460 = vst [vmem:[%s312] ss:$9 sm:$0xff] %v204
  %461 = vst [vmem:[%s314] ss:$9 sm:$0xff] %v205
  %462 = vst [vmem:[%s316] ss:$9 sm:$0xff] %v206
  %463 = vst [vmem:[%s318] ss:$9 sm:$0xff] %v35
  %v464 = vld [vmem:[#allocation1] sm:$0xff]
  %465 = vst [vmem:[#allocation1] ss:$9 sm:$0xff] %v207
  %466 = vst [vmem:[%s306] ss:$9 sm:$0xff] %v208
  %467 = vst [vmem:[%s308] ss:$9 sm:$0xff] %v209
  %468 = vst [vmem:[%s310] ss:$9 sm:$0xff] %v210
  %469 = vst [vmem:[%s312] ss:$9 sm:$0xff] %v211
  %470 = vst [vmem:[%s314] ss:$9 sm:$0xff] %v212
  %471 = vst [vmem:[%s316] ss:$9 sm:$0xff] %v213
  %472 = vst [vmem:[%s318] ss:$9 sm:$0xff] %v36
  %v473 = vld [vmem:[#allocation1] sm:$0xff]
  %474 = vst [vmem:[#allocation1] ss:$9 sm:$0xff] %v214
  %475 = vst [vmem:[%s306] ss:$9 sm:$0xff] %v215
  %476 = vst [vmem:[%s308] ss:$9 sm:$0xff] %v216
  %477 = vst [vmem:[%s310] ss:$9 sm:$0xff] %v217
  %478 = vst [vmem:[%s312] ss:$9 sm:$0xff] %v218
  %479 = vst [vmem:[%s314] ss:$9 sm:$0xff] %v219
  %480 = vst [vmem:[%s316] ss:$9 sm:$0xff] %v37
  %481 = vst [vmem:[%s318] ss:$9 sm:$0xff] %v220
  %v482 = vld [vmem:[#allocation1] sm:$0xff]
  %483 = vst [vmem:[#allocation1] ss:$9 sm:$0xff] %v221
  %484 = vst [vmem:[%s306] ss:$9 sm:$0xff] %v222
  %485 = vst [vmem:[%s308] ss:$9 sm:$0xff] %v223
  %486 = vst [vmem:[%s310] ss:$9 sm:$0xff] %v224
  %487 = vst [vmem:[%s312] ss:$9 sm:$0xff] %v225
  %488 = vst [vmem:[%s314] ss:$9 sm:$0xff] %v226
  %489 = vst [vmem:[%s316] ss:$9 sm:$0xff] %v38
  %490 = vst [vmem:[%s318] ss:$9 sm:$0xff] %v227
  %v491 = vld [vmem:[#allocation1] sm:$0xff]
  %492 = vst [vmem:[#allocation1] ss:$9 sm:$0xff] %v228
  %493 = vst [vmem:[%s306] ss:$9 sm:$0xff] %v229
  %494 = vst [vmem:[%s308] ss:$9 sm:$0xff] %v230
  %495 = vst [vmem:[%s310] ss:$9 sm:$0xff] %v231
  %496 = vst [vmem:[%s312] ss:$9 sm:$0xff] %v232
  %497 = vst [vmem:[%s314] ss:$9 sm:$0xff] %v39
  %498 = vst [vmem:[%s316] ss:$9 sm:$0xff] %v233
  %499 = vst [vmem:[%s318] ss:$9 sm:$0xff] %v234
  %v500 = vld [vmem:[#allocation1] sm:$0xff]
  %501 = vst [vmem:[#allocation1] ss:$9 sm:$0xff] %v235
  %502 = vst [vmem:[%s306] ss:$9 sm:$0xff] %v236
  %503 = vst [vmem:[%s308] ss:$9 sm:$0xff] %v237
  %504 = vst [vmem:[%s310] ss:$9 sm:$0xff] %v238
  %505 = vst [vmem:[%s312] ss:$9 sm:$0xff] %v239
  %506 = vst [vmem:[%s314] ss:$9 sm:$0xff] %v40
  %507 = vst [vmem:[%s316] ss:$9 sm:$0xff] %v240
  %508 = vst [vmem:[%s318] ss:$9 sm:$0xff] %v241
  %v509 = vld [vmem:[#allocation1] sm:$0xff]
  %510 = vst [vmem:[#allocation1] ss:$9 sm:$0xff] %v242
  %511 = vst [vmem:[%s306] ss:$9 sm:$0xff] %v243
  %512 = vst [vmem:[%s308] ss:$9 sm:$0xff] %v244
  %513 = vst [vmem:[%s310] ss:$9 sm:$0xff] %v245
  %514 = vst [vmem:[%s312] ss:$9 sm:$0xff] %v41
  %515 = vst [vmem:[%s314] ss:$9 sm:$0xff] %v246
  %516 = vst [vmem:[%s316] ss:$9 sm:$0xff] %v247
  %517 = vst [vmem:[%s318] ss:$9 sm:$0xff] %v248
  %v518 = vld [vmem:[#allocation1] sm:$0xff]
  %519 = vst [vmem:[#allocation1] ss:$9 sm:$0xff] %v249
  %520 = vst [vmem:[%s306] ss:$9 sm:$0xff] %v250
  %521 = vst [vmem:[%s308] ss:$9 sm:$0xff] %v251
  %522 = vst [vmem:[%s310] ss:$9 sm:$0xff] %v252
  %523 = vst [vmem:[%s312] ss:$9 sm:$0xff] %v42
  %524 = vst [vmem:[%s314] ss:$9 sm:$0xff] %v253
  %525 = vst [vmem:[%s316] ss:$9 sm:$0xff] %v254
  %526 = vst [vmem:[%s318] ss:$9 sm:$0xff] %v255
  %v527 = vld [vmem:[#allocation1] sm:$0xff]
  %528 = vst [vmem:[#allocation1] ss:$9 sm:$0xff] %v256
  %529 = vst [vmem:[%s306] ss:$9 sm:$0xff] %v257
  %530 = vst [vmem:[%s308] ss:$9 sm:$0xff] %v258
  %531 = vst [vmem:[%s310] ss:$9 sm:$0xff] %v43
  %532 = vst [vmem:[%s312] ss:$9 sm:$0xff] %v259
  %533 = vst [vmem:[%s314] ss:$9 sm:$0xff] %v260
  %534 = vst [vmem:[%s316] ss:$9 sm:$0xff] %v261
  %535 = vst [vmem:[%s318] ss:$9 sm:$0xff] %v262
  %v536 = vld [vmem:[#allocation1] sm:$0xff]
  %537 = vst [vmem:[#allocation1] ss:$9 sm:$0xff] %v263
  %538 = vst [vmem:[%s306] ss:$9 sm:$0xff] %v264
  %539 = vst [vmem:[%s308] ss:$9 sm:$0xff] %v265
  %540 = vst [vmem:[%s310] ss:$9 sm:$0xff] %v44
  %541 = vst [vmem:[%s312] ss:$9 sm:$0xff] %v266
  %542 = vst [vmem:[%s314] ss:$9 sm:$0xff] %v267
  %543 = vst [vmem:[%s316] ss:$9 sm:$0xff] %v268
  %544 = vst [vmem:[%s318] ss:$9 sm:$0xff] %v269
  %v545 = vld [vmem:[#allocation1] sm:$0xff]
  %546 = vst [vmem:[#allocation1] ss:$9 sm:$0xff] %v270
  %547 = vst [vmem:[%s306] ss:$9 sm:$0xff] %v271
  %548 = vst [vmem:[%s308] ss:$9 sm:$0xff] %v45
  %549 = vst [vmem:[%s310] ss:$9 sm:$0xff] %v272
  %550 = vst [vmem:[%s312] ss:$9 sm:$0xff] %v273
  %551 = vst [vmem:[%s314] ss:$9 sm:$0xff] %v274
  %552 = vst [vmem:[%s316] ss:$9 sm:$0xff] %v275
  %553 = vst [vmem:[%s318] ss:$9 sm:$0xff] %v276
  %v554 = vld [vmem:[#allocation1] sm:$0xff]
  %555 = vst [vmem:[#allocation1] ss:$9 sm:$0xff] %v277
  %556 = vst [vmem:[%s306] ss:$9 sm:$0xff] %v278
  %557 = vst [vmem:[%s308] ss:$9 sm:$0xff] %v46
  %558 = vst [vmem:[%s310] ss:$9 sm:$0xff] %v279
  %559 = vst [vmem:[%s312] ss:$9 sm:$0xff] %v280
  %560 = vst [vmem:[%s314] ss:$9 sm:$0xff] %v281
  %561 = vst [vmem:[%s316] ss:$9 sm:$0xff] %v282
  %562 = vst [vmem:[%s318] ss:$9 sm:$0xff] %v283
  %v563 = vld [vmem:[#allocation1] sm:$0xff]
  %564 = vst [vmem:[#allocation1] ss:$9 sm:$0xff] %v284
  %565 = vst [vmem:[%s306] ss:$9 sm:$0xff] %v47
  %566 = vst [vmem:[%s308] ss:$9 sm:$0xff] %v285
  %567 = vst [vmem:[%s310] ss:$9 sm:$0xff] %v286
  %568 = vst [vmem:[%s312] ss:$9 sm:$0xff] %v287
  %569 = vst [vmem:[%s314] ss:$9 sm:$0xff] %v288
  %570 = vst [vmem:[%s316] ss:$9 sm:$0xff] %v289
  %571 = vst [vmem:[%s318] ss:$9 sm:$0xff] %v290
  %v572 = vld [vmem:[#allocation1] sm:$0xff]
  %573 = vst [vmem:[#allocation1] ss:$9 sm:$0xff] %v291
  %574 = vst [vmem:[%s306] ss:$9 sm:$0xff] %v48
  %575 = vst [vmem:[%s308] ss:$9 sm:$0xff] %v292
  %576 = vst [vmem:[%s310] ss:$9 sm:$0xff] %v293
  %577 = vst [vmem:[%s312] ss:$9 sm:$0xff] %v294
  %578 = vst [vmem:[%s314] ss:$9 sm:$0xff] %v295
  %579 = vst [vmem:[%s316] ss:$9 sm:$0xff] %v296
  %580 = vst [vmem:[%s318] ss:$9 sm:$0xff] %v297
  %v581 = vld [vmem:[#allocation1] sm:$0xff]
  %582 = vst [vmem:[#allocation1] ss:$9 sm:$0xff] %v57
  %s583 = scalar_lea.vmem [#allocation1], 1
  %584 = vst [vmem:[%s583] ss:$9 sm:$0xff] %v298
  %s585 = scalar_lea.vmem [#allocation1], 2
  %586 = vst [vmem:[%s585] ss:$9 sm:$0xff] %v299
  %s587 = scalar_lea.vmem [#allocation1], 3
  %588 = vst [vmem:[%s587] ss:$9 sm:$0xff] %v300
  %s589 = scalar_lea.vmem [#allocation1], 4
  %590 = vst [vmem:[%s589] ss:$9 sm:$0xff] %v301
  %s591 = scalar_lea.vmem [#allocation1], 5
  %592 = vst [vmem:[%s591] ss:$9 sm:$0xff] %v302
  %s593 = scalar_lea.vmem [#allocation1], 6
  %594 = vst [vmem:[%s593] ss:$9 sm:$0xff] %v303
  %s595 = scalar_lea.vmem [#allocation1], 7
  %596 = vst [vmem:[%s595] ss:$9 sm:$0xff] %v304
  %v597 = vld [vmem:[#allocation1] sm:$0xff]
  %598 = vst [vmem:[#allocation1] ss:$9 sm:$0xff] %v57
  %599 = vst [vmem:[%s583] ss:$9 sm:$0xff] %v298
  %600 = vst [vmem:[%s585] ss:$9 sm:$0xff] %v299
  %601 = vst [vmem:[%s587] ss:$9 sm:$0xff] %v300
  %602 = vst [vmem:[%s589] ss:$9 sm:$0xff] %v301
  %603 = vst [vmem:[%s591] ss:$9 sm:$0xff] %v302
  %604 = vst [vmem:[%s593] ss:$9 sm:$0xff] %v303
  %605 = vst [vmem:[%s595] ss:$9 sm:$0xff] %v57
  %v606 = vld [vmem:[#allocation1] sm:$0xff]
  %607 = vst [vmem:[#allocation1] ss:$9 sm:$0xff] %v298
  %608 = vst [vmem:[%s583] ss:$9 sm:$0xff] %v299
  %609 = vst [vmem:[%s585] ss:$9 sm:$0xff] %v300
  %610 = vst [vmem:[%s587] ss:$9 sm:$0xff] %v301
  %611 = vst [vmem:[%s589] ss:$9 sm:$0xff] %v302
  %612 = vst [vmem:[%s591] ss:$9 sm:$0xff] %v303
  %613 = vst [vmem:[%s593] ss:$9 sm:$0xff] %v304
  %614 = vst [vmem:[%s595] ss:$9 sm:$0xff] %v57
  %v615 = vld [vmem:[#allocation1] sm:$0xff]
  %616 = vst [vmem:[#allocation1] ss:$9 sm:$0xff] %v298
  %617 = vst [vmem:[%s583] ss:$9 sm:$0xff] %v299
  %618 = vst [vmem:[%s585] ss:$9 sm:$0xff] %v300
  %619 = vst [vmem:[%s587] ss:$9 sm:$0xff] %v301
  %620 = vst [vmem:[%s589] ss:$9 sm:$0xff] %v302
  %621 = vst [vmem:[%s591] ss:$9 sm:$0xff] %v303
  %622 = vst [vmem:[%s593] ss:$9 sm:$0xff] %v57
  %623 = vst [vmem:[%s595] ss:$9 sm:$0xff] %v298
  %v624 = vld [vmem:[#allocation1] sm:$0xff]
  %625 = vst [vmem:[#allocation1] ss:$9 sm:$0xff] %v299
  %626 = vst [vmem:[%s583] ss:$9 sm:$0xff] %v300
  %627 = vst [vmem:[%s585] ss:$9 sm:$0xff] %v301
  %628 = vst [vmem:[%s587] ss:$9 sm:$0xff] %v302
  %629 = vst [vmem:[%s589] ss:$9 sm:$0xff] %v303
  %630 = vst [vmem:[%s591] ss:$9 sm:$0xff] %v304
  %631 = vst [vmem:[%s593] ss:$9 sm:$0xff] %v57
  %632 = vst [vmem:[%s595] ss:$9 sm:$0xff] %v298
  %v633 = vld [vmem:[#allocation1] sm:$0xff]
  %634 = vst [vmem:[#allocation1] ss:$9 sm:$0xff] %v299
  %635 = vst [vmem:[%s583] ss:$9 sm:$0xff] %v300
  %636 = vst [vmem:[%s585] ss:$9 sm:$0xff] %v301
  %637 = vst [vmem:[%s587] ss:$9 sm:$0xff] %v302
  %638 = vst [vmem:[%s589] ss:$9 sm:$0xff] %v303
  %639 = vst [vmem:[%s591] ss:$9 sm:$0xff] %v57
  %640 = vst [vmem:[%s593] ss:$9 sm:$0xff] %v298
  %641 = vst [vmem:[%s595] ss:$9 sm:$0xff] %v299
  %v642 = vld [vmem:[#allocation1] sm:$0xff]
  %643 = vst [vmem:[#allocation1] ss:$9 sm:$0xff] %v300
  %644 = vst [vmem:[%s583] ss:$9 sm:$0xff] %v301
  %645 = vst [vmem:[%s585] ss:$9 sm:$0xff] %v302
  %646 = vst [vmem:[%s587] ss:$9 sm:$0xff] %v303
  %647 = vst [vmem:[%s589] ss:$9 sm:$0xff] %v304
  %648 = vst [vmem:[%s591] ss:$9 sm:$0xff] %v57
  %649 = vst [vmem:[%s593] ss:$9 sm:$0xff] %v298
  %650 = vst [vmem:[%s595] ss:$9 sm:$0xff] %v299
  %v651 = vld [vmem:[#allocation1] sm:$0xff]
  %652 = vst [vmem:[#allocation1] ss:$9 sm:$0xff] %v300
  %653 = vst [vmem:[%s583] ss:$9 sm:$0xff] %v301
  %654 = vst [vmem:[%s585] ss:$9 sm:$0xff] %v302
  %655 = vst [vmem:[%s587] ss:$9 sm:$0xff] %v303
  %656 = vst [vmem:[%s589] ss:$9 sm:$0xff] %v57
  %657 = vst [vmem:[%s591] ss:$9 sm:$0xff] %v298
  %658 = vst [vmem:[%s593] ss:$9 sm:$0xff] %v299
  %659 = vst [vmem:[%s595] ss:$9 sm:$0xff] %v300
  %v660 = vld [vmem:[#allocation1] sm:$0xff]
  %661 = vst [vmem:[#allocation1] ss:$9 sm:$0xff] %v301
  %662 = vst [vmem:[%s583] ss:$9 sm:$0xff] %v302
  %663 = vst [vmem:[%s585] ss:$9 sm:$0xff] %v303
  %664 = vst [vmem:[%s587] ss:$9 sm:$0xff] %v304
  %665 = vst [vmem:[%s589] ss:$9 sm:$0xff] %v57
  %666 = vst [vmem:[%s591] ss:$9 sm:$0xff] %v298
  %667 = vst [vmem:[%s593] ss:$9 sm:$0xff] %v299
  %668 = vst [vmem:[%s595] ss:$9 sm:$0xff] %v300
  %v669 = vld [vmem:[#allocation1] sm:$0xff]
  %670 = vst [vmem:[#allocation1] ss:$9 sm:$0xff] %v301
  %671 = vst [vmem:[%s583] ss:$9 sm:$0xff] %v302
  %672 = vst [vmem:[%s585] ss:$9 sm:$0xff] %v303
  %673 = vst [vmem:[%s587] ss:$9 sm:$0xff] %v57
  %674 = vst [vmem:[%s589] ss:$9 sm:$0xff] %v298
  %675 = vst [vmem:[%s591] ss:$9 sm:$0xff] %v299
  %676 = vst [vmem:[%s593] ss:$9 sm:$0xff] %v300
  %677 = vst [vmem:[%s595] ss:$9 sm:$0xff] %v301
  %v678 = vld [vmem:[#allocation1] sm:$0xff]
  %679 = vst [vmem:[#allocation1] ss:$9 sm:$0xff] %v302
  %680 = vst [vmem:[%s583] ss:$9 sm:$0xff] %v303
  %681 = vst [vmem:[%s585] ss:$9 sm:$0xff] %v304
  %682 = vst [vmem:[%s587] ss:$9 sm:$0xff] %v57
  %683 = vst [vmem:[%s589] ss:$9 sm:$0xff] %v298
  %684 = vst [vmem:[%s591] ss:$9 sm:$0xff] %v299
  %685 = vst [vmem:[%s593] ss:$9 sm:$0xff] %v300
  %686 = vst [vmem:[%s595] ss:$9 sm:$0xff] %v301
  %v687 = vld [vmem:[#allocation1] sm:$0xff]
  %688 = vst [vmem:[#allocation1] ss:$9 sm:$0xff] %v302
  %689 = vst [vmem:[%s583] ss:$9 sm:$0xff] %v303
  %690 = vst [vmem:[%s585] ss:$9 sm:$0xff] %v57
  %691 = vst [vmem:[%s587] ss:$9 sm:$0xff] %v298
  %692 = vst [vmem:[%s589] ss:$9 sm:$0xff] %v299
  %693 = vst [vmem:[%s591] ss:$9 sm:$0xff] %v300
  %694 = vst [vmem:[%s593] ss:$9 sm:$0xff] %v301
  %695 = vst [vmem:[%s595] ss:$9 sm:$0xff] %v302
  %v696 = vld [vmem:[#allocation1] sm:$0xff]
  %697 = vst [vmem:[#allocation1] ss:$9 sm:$0xff] %v303
  %698 = vst [vmem:[%s583] ss:$9 sm:$0xff] %v304
  %699 = vst [vmem:[%s585] ss:$9 sm:$0xff] %v57
  %700 = vst [vmem:[%s587] ss:$9 sm:$0xff] %v298
  %701 = vst [vmem:[%s589] ss:$9 sm:$0xff] %v299
  %702 = vst [vmem:[%s591] ss:$9 sm:$0xff] %v300
  %703 = vst [vmem:[%s593] ss:$9 sm:$0xff] %v301
  %704 = vst [vmem:[%s595] ss:$9 sm:$0xff] %v302
  %v705 = vld [vmem:[#allocation1] sm:$0xff]
  %706 = vst [vmem:[#allocation1] ss:$9 sm:$0xff] %v303
  %707 = vst [vmem:[%s583] ss:$9 sm:$0xff] %v57
  %708 = vst [vmem:[%s585] ss:$9 sm:$0xff] %v298
  %709 = vst [vmem:[%s587] ss:$9 sm:$0xff] %v299
  %710 = vst [vmem:[%s589] ss:$9 sm:$0xff] %v300
  %711 = vst [vmem:[%s591] ss:$9 sm:$0xff] %v301
  %712 = vst [vmem:[%s593] ss:$9 sm:$0xff] %v302
  %713 = vst [vmem:[%s595] ss:$9 sm:$0xff] %v303
  %v714 = vld [vmem:[#allocation1] sm:$0xff]
  %715 = vst [vmem:[#allocation1] ss:$9 sm:$0xff] %v304
  %716 = vst [vmem:[%s583] ss:$9 sm:$0xff] %v57
  %717 = vst [vmem:[%s585] ss:$9 sm:$0xff] %v298
  %718 = vst [vmem:[%s587] ss:$9 sm:$0xff] %v299
  %719 = vst [vmem:[%s589] ss:$9 sm:$0xff] %v300
  %720 = vst [vmem:[%s591] ss:$9 sm:$0xff] %v301
  %721 = vst [vmem:[%s593] ss:$9 sm:$0xff] %v302
  %722 = vst [vmem:[%s595] ss:$9 sm:$0xff] %v303
  %v723 = vld [vmem:[#allocation1] sm:$0xff]
  %724 = vst [vmem:[#allocation1] ss:$9 sm:$0xff] %v57
  %725 = vst [vmem:[%s583] ss:$9 sm:$0xff] %v298
  %726 = vst [vmem:[%s585] ss:$9 sm:$0xff] %v299
  %727 = vst [vmem:[%s587] ss:$9 sm:$0xff] %v300
  %728 = vst [vmem:[%s589] ss:$9 sm:$0xff] %v301
  %729 = vst [vmem:[%s591] ss:$9 sm:$0xff] %v302
  %730 = vst [vmem:[%s593] ss:$9 sm:$0xff] %v303
  %731 = vst [vmem:[%s595] ss:$9 sm:$0xff] %v304
  %v732 = vld [vmem:[#allocation1] sm:$0xff]
  %733 = vst [vmem:[#allocation1] ss:$9 sm:$0xff] %v57
  %734 = vst [vmem:[%s583] ss:$9 sm:$0xff] %v298
  %735 = vst [vmem:[%s585] ss:$9 sm:$0xff] %v299
  %736 = vst [vmem:[%s587] ss:$9 sm:$0xff] %v300
  %737 = vst [vmem:[%s589] ss:$9 sm:$0xff] %v301
  %738 = vst [vmem:[%s591] ss:$9 sm:$0xff] %v302
  %739 = vst [vmem:[%s593] ss:$9 sm:$0xff] %v303
  %740 = vst [vmem:[%s595] ss:$9 sm:$0xff] %v57
  %v741 = vld [vmem:[#allocation1] sm:$0xff]
  %742 = vst [vmem:[#allocation1] ss:$9 sm:$0xff] %v298
  %743 = vst [vmem:[%s583] ss:$9 sm:$0xff] %v299
  %744 = vst [vmem:[%s585] ss:$9 sm:$0xff] %v300
  %745 = vst [vmem:[%s587] ss:$9 sm:$0xff] %v301
  %746 = vst [vmem:[%s589] ss:$9 sm:$0xff] %v302
  %747 = vst [vmem:[%s591] ss:$9 sm:$0xff] %v303
  %748 = vst [vmem:[%s593] ss:$9 sm:$0xff] %v304
  %749 = vst [vmem:[%s595] ss:$9 sm:$0xff] %v57
  %v750 = vld [vmem:[#allocation1] sm:$0xff]
  %751 = vst [vmem:[#allocation1] ss:$9 sm:$0xff] %v298
  %752 = vst [vmem:[%s583] ss:$9 sm:$0xff] %v299
  %753 = vst [vmem:[%s585] ss:$9 sm:$0xff] %v300
  %754 = vst [vmem:[%s587] ss:$9 sm:$0xff] %v301
  %755 = vst [vmem:[%s589] ss:$9 sm:$0xff] %v302
  %756 = vst [vmem:[%s591] ss:$9 sm:$0xff] %v303
  %757 = vst [vmem:[%s593] ss:$9 sm:$0xff] %v57
  %758 = vst [vmem:[%s595] ss:$9 sm:$0xff] %v298
  %v759 = vld [vmem:[#allocation1] sm:$0xff]
  %760 = vst [vmem:[#allocation1] ss:$9 sm:$0xff] %v299
  %761 = vst [vmem:[%s583] ss:$9 sm:$0xff] %v300
  %762 = vst [vmem:[%s585] ss:$9 sm:$0xff] %v301
  %763 = vst [vmem:[%s587] ss:$9 sm:$0xff] %v302
  %764 = vst [vmem:[%s589] ss:$9 sm:$0xff] %v303
  %765 = vst [vmem:[%s591] ss:$9 sm:$0xff] %v304
  %766 = vst [vmem:[%s593] ss:$9 sm:$0xff] %v57
  %767 = vst [vmem:[%s595] ss:$9 sm:$0xff] %v298
  %v768 = vld [vmem:[#allocation1] sm:$0xff]
  %769 = vst [vmem:[#allocation1] ss:$9 sm:$0xff] %v299
  %770 = vst [vmem:[%s583] ss:$9 sm:$0xff] %v300
  %771 = vst [vmem:[%s585] ss:$9 sm:$0xff] %v301
  %772 = vst [vmem:[%s587] ss:$9 sm:$0xff] %v302
  %773 = vst [vmem:[%s589] ss:$9 sm:$0xff] %v303
  %774 = vst [vmem:[%s591] ss:$9 sm:$0xff] %v57
  %775 = vst [vmem:[%s593] ss:$9 sm:$0xff] %v298
  %776 = vst [vmem:[%s595] ss:$9 sm:$0xff] %v299
  %v777 = vld [vmem:[#allocation1] sm:$0xff]
  %778 = vst [vmem:[#allocation1] ss:$9 sm:$0xff] %v300
  %779 = vst [vmem:[%s583] ss:$9 sm:$0xff] %v301
  %780 = vst [vmem:[%s585] ss:$9 sm:$0xff] %v302
  %781 = vst [vmem:[%s587] ss:$9 sm:$0xff] %v303
  %782 = vst [vmem:[%s589] ss:$9 sm:$0xff] %v304
  %783 = vst [vmem:[%s591] ss:$9 sm:$0xff] %v57
  %784 = vst [vmem:[%s593] ss:$9 sm:$0xff] %v298
  %785 = vst [vmem:[%s595] ss:$9 sm:$0xff] %v299
  %v786 = vld [vmem:[#allocation1] sm:$0xff]
  %787 = vst [vmem:[#allocation1] ss:$9 sm:$0xff] %v300
  %788 = vst [vmem:[%s583] ss:$9 sm:$0xff] %v301
  %789 = vst [vmem:[%s585] ss:$9 sm:$0xff] %v302
  %790 = vst [vmem:[%s587] ss:$9 sm:$0xff] %v303
  %791 = vst [vmem:[%s589] ss:$9 sm:$0xff] %v57
  %792 = vst [vmem:[%s591] ss:$9 sm:$0xff] %v298
  %793 = vst [vmem:[%s593] ss:$9 sm:$0xff] %v299
  %794 = vst [vmem:[%s595] ss:$9 sm:$0xff] %v300
  %v795 = vld [vmem:[#allocation1] sm:$0xff]
  %796 = vst [vmem:[#allocation1] ss:$9 sm:$0xff] %v301
  %797 = vst [vmem:[%s583] ss:$9 sm:$0xff] %v302
  %798 = vst [vmem:[%s585] ss:$9 sm:$0xff] %v303
  %799 = vst [vmem:[%s587] ss:$9 sm:$0xff] %v304
  %800 = vst [vmem:[%s589] ss:$9 sm:$0xff] %v57
  %801 = vst [vmem:[%s591] ss:$9 sm:$0xff] %v298
  %802 = vst [vmem:[%s593] ss:$9 sm:$0xff] %v299
  %803 = vst [vmem:[%s595] ss:$9 sm:$0xff] %v300
  %v804 = vld [vmem:[#allocation1] sm:$0xff]
  %805 = vst [vmem:[#allocation1] ss:$9 sm:$0xff] %v301
  %806 = vst [vmem:[%s583] ss:$9 sm:$0xff] %v302
  %807 = vst [vmem:[%s585] ss:$9 sm:$0xff] %v303
  %808 = vst [vmem:[%s587] ss:$9 sm:$0xff] %v57
  %809 = vst [vmem:[%s589] ss:$9 sm:$0xff] %v298
  %810 = vst [vmem:[%s591] ss:$9 sm:$0xff] %v299
  %811 = vst [vmem:[%s593] ss:$9 sm:$0xff] %v300
  %812 = vst [vmem:[%s595] ss:$9 sm:$0xff] %v301
  %v813 = vld [vmem:[#allocation1] sm:$0xff]
  %814 = vst [vmem:[#allocation1] ss:$9 sm:$0xff] %v302
  %815 = vst [vmem:[%s583] ss:$9 sm:$0xff] %v303
  %816 = vst [vmem:[%s585] ss:$9 sm:$0xff] %v304
  %817 = vst [vmem:[%s587] ss:$9 sm:$0xff] %v57
  %818 = vst [vmem:[%s589] ss:$9 sm:$0xff] %v298
  %819 = vst [vmem:[%s591] ss:$9 sm:$0xff] %v299
  %820 = vst [vmem:[%s593] ss:$9 sm:$0xff] %v300
  %821 = vst [vmem:[%s595] ss:$9 sm:$0xff] %v301
  %v822 = vld [vmem:[#allocation1] sm:$0xff]
  %823 = vst [vmem:[#allocation1] ss:$9 sm:$0xff] %v302
  %824 = vst [vmem:[%s583] ss:$9 sm:$0xff] %v303
  %825 = vst [vmem:[%s585] ss:$9 sm:$0xff] %v57
  %826 = vst [vmem:[%s587] ss:$9 sm:$0xff] %v298
  %827 = vst [vmem:[%s589] ss:$9 sm:$0xff] %v299
  %828 = vst [vmem:[%s591] ss:$9 sm:$0xff] %v300
  %829 = vst [vmem:[%s593] ss:$9 sm:$0xff] %v301
  %830 = vst [vmem:[%s595] ss:$9 sm:$0xff] %v302
  %v831 = vld [vmem:[#allocation1] sm:$0xff]
  %832 = vst [vmem:[#allocation1] ss:$9 sm:$0xff] %v303
  %833 = vst [vmem:[%s583] ss:$9 sm:$0xff] %v304
  %834 = vst [vmem:[%s585] ss:$9 sm:$0xff] %v57
  %835 = vst [vmem:[%s587] ss:$9 sm:$0xff] %v298
  %836 = vst [vmem:[%s589] ss:$9 sm:$0xff] %v299
  %837 = vst [vmem:[%s591] ss:$9 sm:$0xff] %v300
  %838 = vst [vmem:[%s593] ss:$9 sm:$0xff] %v301
  %839 = vst [vmem:[%s595] ss:$9 sm:$0xff] %v302
  %v840 = vld [vmem:[#allocation1] sm:$0xff]
  %841 = vst [vmem:[#allocation1] ss:$9 sm:$0xff] %v303
  %842 = vst [vmem:[%s583] ss:$9 sm:$0xff] %v57
  %843 = vst [vmem:[%s585] ss:$9 sm:$0xff] %v298
  %844 = vst [vmem:[%s587] ss:$9 sm:$0xff] %v299
  %845 = vst [vmem:[%s589] ss:$9 sm:$0xff] %v300
  %846 = vst [vmem:[%s591] ss:$9 sm:$0xff] %v301
  %847 = vst [vmem:[%s593] ss:$9 sm:$0xff] %v302
  %848 = vst [vmem:[%s595] ss:$9 sm:$0xff] %v303
  %v849 = vld [vmem:[#allocation1] sm:$0xff]
  %850 = vst [vmem:[#allocation1] ss:$9 sm:$0xff] %v304
  %851 = vst [vmem:[%s583] ss:$9 sm:$0xff] %v57
  %852 = vst [vmem:[%s585] ss:$9 sm:$0xff] %v298
  %853 = vst [vmem:[%s587] ss:$9 sm:$0xff] %v299
  %854 = vst [vmem:[%s589] ss:$9 sm:$0xff] %v300
  %855 = vst [vmem:[%s591] ss:$9 sm:$0xff] %v301
  %856 = vst [vmem:[%s593] ss:$9 sm:$0xff] %v302
  %857 = vst [vmem:[%s595] ss:$9 sm:$0xff] %v303
  %v858 = vld [vmem:[#allocation1] sm:$0xff]
  %vm889 = vcmask 392192
  %v890 = vsel %vm889, %v320, 0
  %v892 = vsel %vm889, %v329, 0
  %v894 = vsel %vm889, %v338, 0
  %v896 = vsel %vm889, %v347, 0
  %v898 = vsel %vm889, %v356, 0
  %v900 = vsel %vm889, %v365, 0
  %v902 = vsel %vm889, %v374, 0
  %v904 = vsel %vm889, %v383, 0
  %v906 = vsel %vm889, %v392, 0
  %v908 = vsel %vm889, %v401, 0
  %v910 = vsel %vm889, %v410, 0
  %v912 = vsel %vm889, %v419, 0
  %v914 = vsel %vm889, %v428, 0
  %v916 = vsel %vm889, %v437, 0
  %v918 = vsel %vm889, %v446, 0
  %v920 = vsel %vm889, %v455, 0
  %v922 = vsel %vm889, %v464, 0
  %v924 = vsel %vm889, %v473, 0
  %v926 = vsel %vm889, %v482, 0
  %v928 = vsel %vm889, %v491, 0
  %v930 = vsel %vm889, %v500, 0
  %v932 = vsel %vm889, %v509, 0
  %v934 = vsel %vm889, %v518, 0
  %v936 = vsel %vm889, %v527, 0
  %v938 = vsel %vm889, %v536, 0
  %v940 = vsel %vm889, %v545, 0
  %v942 = vsel %vm889, %v554, 0
  %v944 = vsel %vm889, %v563, 0
  %v946 = vsel %vm889, %v572, 0
  %v948 = vsel %vm889, %v581, 0
  %950 = vmatpush.msra.mxu0 0.0
  %951 = vmatpush.msra.mxu0 0.0
  %952 = vmatpush.msra.mxu0 0.0
  %953 = vmatpush.msra.mxu0 0.0
  %954 = vmatpush.msra.mxu0 0.0
  %955 = vmatpush.msra.mxu0 0.0
  %956 = vmatpush.msra.mxu0 0.0
  %957 = vmatpush.msra.mxu0 0.0
  %958 = vmatpush.msra.mxu0 0.0
  %959 = vmatpush.msra.mxu0 0.0
  %960 = vmatpush.msra.mxu0 %v54
  %961 = vmatpush.msra.mxu0 %v53
  %962 = vmatpush.msra.mxu0 %v52
  %963 = vmatpush.msra.mxu0 %v51
  %964 = vmatpush.msra.mxu0 %v50
  %965 = vmatpush.msra.mxu0 %v49
  %966 = vmatmul.f32.gmra.mxu0 %v890
  %v967 = vpop.f32.mrf.mxu0
  %v968 = vadd.f32 %v597, %v967
  %969 = vmatmul.f32.gmra.mxu0 %v892
  %v970 = vpop.f32.mrf.mxu0
  %v971 = vadd.f32 %v606, %v970
  %972 = vmatmul.f32.gmra.mxu0 %v894
  %v973 = vpop.f32.mrf.mxu0
  %v974 = vadd.f32 %v615, %v973
  %975 = vmatmul.f32.gmra.mxu0 %v896
  %v976 = vpop.f32.mrf.mxu0
  %v977 = vadd.f32 %v624, %v976
  %978 = vmatmul.f32.gmra.mxu0 %v898
  %v979 = vpop.f32.mrf.mxu0
  %v980 = vadd.f32 %v633, %v979
  %981 = vmatmul.f32.gmra.mxu0 %v900
  %v982 = vpop.f32.mrf.mxu0
  %v983 = vadd.f32 %v642, %v982
  %984 = vmatmul.f32.gmra.mxu0 %v902
  %v985 = vpop.f32.mrf.mxu0
  %v986 = vadd.f32 %v651, %v985
  %987 = vmatmul.f32.gmra.mxu0 %v904
  %v988 = vpop.f32.mrf.mxu0
  %v989 = vadd.f32 %v660, %v988
  %990 = vmatmul.f32.gmra.mxu0 %v906
  %v991 = vpop.f32.mrf.mxu0
  %v992 = vadd.f32 %v669, %v991
  %993 = vmatmul.f32.gmra.mxu0 %v908
  %v994 = vpop.f32.mrf.mxu0
  %v995 = vadd.f32 %v678, %v994
  %996 = vmatmul.f32.gmra.mxu0 %v910
  %v997 = vpop.f32.mrf.mxu0
  %v998 = vadd.f32 %v687, %v997
  %999 = vmatmul.f32.gmra.mxu0 %v912
  %v1000 = vpop.f32.mrf.mxu0
  %v1001 = vadd.f32 %v696, %v1000
  %1002 = vmatmul.f32.gmra.mxu0 %v914
  %v1003 = vpop.f32.mrf.mxu0
  %v1004 = vadd.f32 %v705, %v1003
  %1005 = vmatmul.f32.gmra.mxu0 %v916
  %v1006 = vpop.f32.mrf.mxu0
  %v1007 = vadd.f32 %v714, %v1006
  %1008 = vmatmul.f32.gmra.mxu0 %v918
  %v1009 = vpop.f32.mrf.mxu0
  %v1010 = vadd.f32 %v723, %v1009
  %1011 = vmatmul.f32.gmra.mxu0 %v920
  %v1012 = vpop.f32.mrf.mxu0
  %v1013 = vadd.f32 %v732, %v1012
  %1014 = vmatmul.f32.gmra.mxu0 %v922
  %v1015 = vpop.f32.mrf.mxu0
  %v1016 = vadd.f32 %v741, %v1015
  %1017 = vmatmul.f32.gmra.mxu0 %v924
  %v1018 = vpop.f32.mrf.mxu0
  %v1019 = vadd.f32 %v750, %v1018
  %1020 = vmatmul.f32.gmra.mxu0 %v926
  %v1021 = vpop.f32.mrf.mxu0
  %v1022 = vadd.f32 %v759, %v1021
  %1023 = vmatmul.f32.gmra.mxu0 %v928
  %v1024 = vpop.f32.mrf.mxu0
  %v1025 = vadd.f32 %v768, %v1024
  %1026 = vmatmul.f32.gmra.mxu0 %v930
  %v1027 = vpop.f32.mrf.mxu0
  %v1028 = vadd.f32 %v777, %v1027
  %1029 = vmatmul.f32.gmra.mxu0 %v932
  %v1030 = vpop.f32.mrf.mxu0
  %v1031 = vadd.f32 %v786, %v1030
  %1032 = vmatmul.f32.gmra.mxu0 %v934
  %v1033 = vpop.f32.mrf.mxu0
  %v1034 = vadd.f32 %v795, %v1033
  %1035 = vmatmul.f32.gmra.mxu0 %v936
  %v1036 = vpop.f32.mrf.mxu0
  %v1037 = vadd.f32 %v804, %v1036
  %1038 = vmatmul.f32.gmra.mxu0 %v938
  %v1039 = vpop.f32.mrf.mxu0
  %v1040 = vadd.f32 %v813, %v1039
  %1041 = vmatmul.f32.gmra.mxu0 %v940
  %v1042 = vpop.f32.mrf.mxu0
  %v1043 = vadd.f32 %v822, %v1042
  %1044 = vmatmul.f32.gmra.mxu0 %v942
  %v1045 = vpop.f32.mrf.mxu0
  %v1046 = vadd.f32 %v831, %v1045
  %1047 = vmatmul.f32.gmra.mxu0 %v944
  %v1048 = vpop.f32.mrf.mxu0
  %v1049 = vadd.f32 %v840, %v1048
  %1050 = vmatmul.f32.gmra.mxu0 %v946
  %v1051 = vpop.f32.mrf.mxu0
  %v1052 = vadd.f32 %v849, %v1051
  %1053 = vmatmul.f32.gmra.mxu0 %v948
  %v1054 = vpop.f32.mrf.mxu0
  %v1055 = vadd.f32 %v858, %v1054
  %1056 = vdwg.mxu0
  %v1087 = vrot.slane %v968, 1
  %v1088 = vrot.slane %v968, 2
  %v1089 = vrot.slane %v968, 3
  %v1090 = vrot.slane %v968, 4
  %v1091 = vrot.slane %v968, 5
  %v1092 = vrot.slane %v968, 6
  %v1093 = vrot.slane %v968, 7
  %v1094 = vrot.slane %v971, 1
  %v1095 = vrot.slane %v971, 2
  %v1096 = vrot.slane %v971, 3
  %v1097 = vrot.slane %v971, 4
  %v1098 = vrot.slane %v971, 5
  %v1099 = vrot.slane %v971, 6
  %v1100 = vrot.slane %v971, 7
  %v1101 = vrot.slane %v974, 1
  %v1102 = vrot.slane %v974, 2
  %v1103 = vrot.slane %v974, 3
  %v1104 = vrot.slane %v974, 4
  %v1105 = vrot.slane %v974, 5
  %v1106 = vrot.slane %v974, 6
  %v1107 = vrot.slane %v974, 7
  %v1108 = vrot.slane %v977, 1
  %v1109 = vrot.slane %v977, 2
  %v1110 = vrot.slane %v977, 3
  %v1111 = vrot.slane %v977, 4
  %v1112 = vrot.slane %v977, 5
  %v1113 = vrot.slane %v977, 6
  %v1114 = vrot.slane %v977, 7
  %v1115 = vrot.slane %v980, 1
  %v1116 = vrot.slane %v980, 2
  %v1117 = vrot.slane %v980, 3
  %v1118 = vrot.slane %v980, 4
  %v1119 = vrot.slane %v980, 5
  %v1120 = vrot.slane %v980, 6
  %v1121 = vrot.slane %v980, 7
  %v1122 = vrot.slane %v983, 1
  %v1123 = vrot.slane %v983, 2
  %v1124 = vrot.slane %v983, 3
  %v1125 = vrot.slane %v983, 4
  %v1126 = vrot.slane %v983, 5
  %v1127 = vrot.slane %v983, 6
  %v1128 = vrot.slane %v983, 7
  %v1129 = vrot.slane %v986, 1
  %v1130 = vrot.slane %v986, 2
  %v1131 = vrot.slane %v986, 3
  %v1132 = vrot.slane %v986, 4
  %v1133 = vrot.slane %v986, 5
  %v1134 = vrot.slane %v986, 6
  %v1135 = vrot.slane %v986, 7
  %v1136 = vrot.slane %v989, 1
  %v1137 = vrot.slane %v989, 2
  %v1138 = vrot.slane %v989, 3
  %v1139 = vrot.slane %v989, 4
  %v1140 = vrot.slane %v989, 5
  %v1141 = vrot.slane %v989, 6
  %v1142 = vrot.slane %v989, 7
  %v1143 = vrot.slane %v992, 1
  %v1144 = vrot.slane %v992, 2
  %v1145 = vrot.slane %v992, 3
  %v1146 = vrot.slane %v992, 4
  %v1147 = vrot.slane %v992, 5
  %v1148 = vrot.slane %v992, 6
  %v1149 = vrot.slane %v992, 7
  %v1150 = vrot.slane %v995, 1
  %v1151 = vrot.slane %v995, 2
  %v1152 = vrot.slane %v995, 3
  %v1153 = vrot.slane %v995, 4
  %v1154 = vrot.slane %v995, 5
  %v1155 = vrot.slane %v995, 6
  %v1156 = vrot.slane %v995, 7
  %v1157 = vrot.slane %v998, 1
  %v1158 = vrot.slane %v998, 2
  %v1159 = vrot.slane %v998, 3
  %v1160 = vrot.slane %v998, 4
  %v1161 = vrot.slane %v998, 5
  %v1162 = vrot.slane %v998, 6
  %v1163 = vrot.slane %v998, 7
  %v1164 = vrot.slane %v1001, 1
  %v1165 = vrot.slane %v1001, 2
  %v1166 = vrot.slane %v1001, 3
  %v1167 = vrot.slane %v1001, 4
  %v1168 = vrot.slane %v1001, 5
  %v1169 = vrot.slane %v1001, 6
  %v1170 = vrot.slane %v1001, 7
  %v1171 = vrot.slane %v1004, 1
  %v1172 = vrot.slane %v1004, 2
  %v1173 = vrot.slane %v1004, 3
  %v1174 = vrot.slane %v1004, 4
  %v1175 = vrot.slane %v1004, 5
  %v1176 = vrot.slane %v1004, 6
  %v1177 = vrot.slane %v1004, 7
  %v1178 = vrot.slane %v1007, 1
  %v1179 = vrot.slane %v1007, 2
  %v1180 = vrot.slane %v1007, 3
  %v1181 = vrot.slane %v1007, 4
  %v1182 = vrot.slane %v1007, 5
  %v1183 = vrot.slane %v1007, 6
  %v1184 = vrot.slane %v1007, 7
  %v1185 = vrot.slane %v1010, 1
  %v1186 = vrot.slane %v1010, 2
  %v1187 = vrot.slane %v1010, 3
  %v1188 = vrot.slane %v1010, 4
  %v1189 = vrot.slane %v1010, 5
  %v1190 = vrot.slane %v1010, 6
  %v1191 = vrot.slane %v1010, 7
  %v1192 = vrot.slane %v1013, 1
  %v1193 = vrot.slane %v1013, 2
  %v1194 = vrot.slane %v1013, 3
  %v1195 = vrot.slane %v1013, 4
  %v1196 = vrot.slane %v1013, 5
  %v1197 = vrot.slane %v1013, 6
  %v1198 = vrot.slane %v1013, 7
  %v1199 = vrot.slane %v1016, 1
  %v1200 = vrot.slane %v1016, 2
  %v1201 = vrot.slane %v1016, 3
  %v1202 = vrot.slane %v1016, 4
  %v1203 = vrot.slane %v1016, 5
  %v1204 = vrot.slane %v1016, 6
  %v1205 = vrot.slane %v1016, 7
  %v1206 = vrot.slane %v1019, 1
  %v1207 = vrot.slane %v1019, 2
  %v1208 = vrot.slane %v1019, 3
  %v1209 = vrot.slane %v1019, 4
  %v1210 = vrot.slane %v1019, 5
  %v1211 = vrot.slane %v1019, 6
  %v1212 = vrot.slane %v1019, 7
  %v1213 = vrot.slane %v1022, 1
  %v1214 = vrot.slane %v1022, 2
  %v1215 = vrot.slane %v1022, 3
  %v1216 = vrot.slane %v1022, 4
  %v1217 = vrot.slane %v1022, 5
  %v1218 = vrot.slane %v1022, 6
  %v1219 = vrot.slane %v1022, 7
  %v1220 = vrot.slane %v1025, 1
  %v1221 = vrot.slane %v1025, 2
  %v1222 = vrot.slane %v1025, 3
  %v1223 = vrot.slane %v1025, 4
  %v1224 = vrot.slane %v1025, 5
  %v1225 = vrot.slane %v1025, 6
  %v1226 = vrot.slane %v1025, 7
  %v1227 = vrot.slane %v1028, 1
  %v1228 = vrot.slane %v1028, 2
  %v1229 = vrot.slane %v1028, 3
  %v1230 = vrot.slane %v1028, 4
  %v1231 = vrot.slane %v1028, 5
  %v1232 = vrot.slane %v1028, 6
  %v1233 = vrot.slane %v1028, 7
  %v1234 = vrot.slane %v1031, 1
  %v1235 = vrot.slane %v1031, 2
  %v1236 = vrot.slane %v1031, 3
  %v1237 = vrot.slane %v1031, 4
  %v1238 = vrot.slane %v1031, 5
  %v1239 = vrot.slane %v1031, 6
  %v1240 = vrot.slane %v1031, 7
  %v1241 = vrot.slane %v1034, 1
  %v1242 = vrot.slane %v1034, 2
  %v1243 = vrot.slane %v1034, 3
  %v1244 = vrot.slane %v1034, 4
  %v1245 = vrot.slane %v1034, 5
  %v1246 = vrot.slane %v1034, 6
  %v1247 = vrot.slane %v1034, 7
  %v1248 = vrot.slane %v1037, 1
  %v1249 = vrot.slane %v1037, 2
  %v1250 = vrot.slane %v1037, 3
  %v1251 = vrot.slane %v1037, 4
  %v1252 = vrot.slane %v1037, 5
  %v1253 = vrot.slane %v1037, 6
  %v1254 = vrot.slane %v1037, 7
  %v1255 = vrot.slane %v1040, 1
  %v1256 = vrot.slane %v1040, 2
  %v1257 = vrot.slane %v1040, 3
  %v1258 = vrot.slane %v1040, 4
  %v1259 = vrot.slane %v1040, 5
  %v1260 = vrot.slane %v1040, 6
  %v1261 = vrot.slane %v1040, 7
  %v1262 = vrot.slane %v1043, 1
  %v1263 = vrot.slane %v1043, 2
  %v1264 = vrot.slane %v1043, 3
  %v1265 = vrot.slane %v1043, 4
  %v1266 = vrot.slane %v1043, 5
  %v1267 = vrot.slane %v1043, 6
  %v1268 = vrot.slane %v1043, 7
  %v1269 = vrot.slane %v1046, 1
  %v1270 = vrot.slane %v1046, 2
  %v1271 = vrot.slane %v1046, 3
  %v1272 = vrot.slane %v1046, 4
  %v1273 = vrot.slane %v1046, 5
  %v1274 = vrot.slane %v1046, 6
  %v1275 = vrot.slane %v1046, 7
  %v1276 = vrot.slane %v1049, 1
  %v1277 = vrot.slane %v1049, 2
  %v1278 = vrot.slane %v1049, 3
  %v1279 = vrot.slane %v1049, 4
  %v1280 = vrot.slane %v1049, 5
  %v1281 = vrot.slane %v1049, 6
  %v1282 = vrot.slane %v1049, 7
  %v1283 = vrot.slane %v1052, 1
  %v1284 = vrot.slane %v1052, 2
  %v1285 = vrot.slane %v1052, 3
  %v1286 = vrot.slane %v1052, 4
  %v1287 = vrot.slane %v1052, 5
  %v1288 = vrot.slane %v1052, 6
  %v1289 = vrot.slane %v1052, 7
  %v1290 = vrot.slane %v1055, 1
  %v1291 = vrot.slane %v1055, 2
  %v1292 = vrot.slane %v1055, 3
  %v1293 = vrot.slane %v1055, 4
  %v1294 = vrot.slane %v1055, 5
  %v1295 = vrot.slane %v1055, 6
  %v1296 = vrot.slane %v1055, 7
  %v1507 = vmax.f32 %v968, 0.0
  %v1508 = vmax.f32 %v1087, 0.0
  %v1509 = vmax.f32 %v1088, 0.0
  %v1510 = vmax.f32 %v1089, 0.0
  %v1511 = vmax.f32 %v1090, 0.0
  %v1512 = vmax.f32 %v1091, 0.0
  %v1513 = vmax.f32 %v1092, 0.0
  %v1514 = vmax.f32 %v1093, 0.0
  %v1515 = vmax.f32 %v971, 0.0
  %v1516 = vmax.f32 %v1094, 0.0
  %v1517 = vmax.f32 %v1095, 0.0
  %v1518 = vmax.f32 %v1096, 0.0
  %v1519 = vmax.f32 %v1097, 0.0
  %v1520 = vmax.f32 %v1098, 0.0
  %v1521 = vmax.f32 %v1099, 0.0
  %v1522 = vmax.f32 %v1100, 0.0
  %v1523 = vmax.f32 %v974, 0.0
  %v1524 = vmax.f32 %v1101, 0.0
  %v1525 = vmax.f32 %v1102, 0.0
  %v1526 = vmax.f32 %v1103, 0.0
  %v1527 = vmax.f32 %v1104, 0.0
  %v1528 = vmax.f32 %v1105, 0.0
  %v1529 = vmax.f32 %v1106, 0.0
  %v1530 = vmax.f32 %v1107, 0.0
  %v1531 = vmax.f32 %v977, 0.0
  %v1532 = vmax.f32 %v1108, 0.0
  %v1533 = vmax.f32 %v1109, 0.0
  %v1534 = vmax.f32 %v1110, 0.0
  %v1535 = vmax.f32 %v1111, 0.0
  %v1536 = vmax.f32 %v1112, 0.0
  %v1537 = vmax.f32 %v1113, 0.0
  %v1538 = vmax.f32 %v1114, 0.0
  %v1539 = vmax.f32 %v980, 0.0
  %v1540 = vmax.f32 %v1115, 0.0
  %v1541 = vmax.f32 %v1116, 0.0
  %v1542 = vmax.f32 %v1117, 0.0
  %v1543 = vmax.f32 %v1118, 0.0
  %v1544 = vmax.f32 %v1119, 0.0
  %v1545 = vmax.f32 %v1120, 0.0
  %v1546 = vmax.f32 %v1121, 0.0
  %v1547 = vmax.f32 %v983, 0.0
  %v1548 = vmax.f32 %v1122, 0.0
  %v1549 = vmax.f32 %v1123, 0.0
  %v1550 = vmax.f32 %v1124, 0.0
  %v1551 = vmax.f32 %v1125, 0.0
  %v1552 = vmax.f32 %v1126, 0.0
  %v1553 = vmax.f32 %v1127, 0.0
  %v1554 = vmax.f32 %v1128, 0.0
  %v1555 = vmax.f32 %v986, 0.0
  %v1556 = vmax.f32 %v1129, 0.0
  %v1557 = vmax.f32 %v1130, 0.0
  %v1558 = vmax.f32 %v1131, 0.0
  %v1559 = vmax.f32 %v1132, 0.0
  %v1560 = vmax.f32 %v1133, 0.0
  %v1561 = vmax.f32 %v1134, 0.0
  %v1562 = vmax.f32 %v1135, 0.0
  %v1563 = vmax.f32 %v989, 0.0
  %v1564 = vmax.f32 %v1136, 0.0
  %v1565 = vmax.f32 %v1137, 0.0
  %v1566 = vmax.f32 %v1138, 0.0
  %v1567 = vmax.f32 %v1139, 0.0
  %v1568 = vmax.f32 %v1140, 0.0
  %v1569 = vmax.f32 %v1141, 0.0
  %v1570 = vmax.f32 %v1142, 0.0
  %v1571 = vmax.f32 %v992, 0.0
  %v1572 = vmax.f32 %v1143, 0.0
  %v1573 = vmax.f32 %v1144, 0.0
  %v1574 = vmax.f32 %v1145, 0.0
  %v1575 = vmax.f32 %v1146, 0.0
  %v1576 = vmax.f32 %v1147, 0.0
  %v1577 = vmax.f32 %v1148, 0.0
  %v1578 = vmax.f32 %v1149, 0.0
  %v1579 = vmax.f32 %v995, 0.0
  %v1580 = vmax.f32 %v1150, 0.0
  %v1581 = vmax.f32 %v1151, 0.0
  %v1582 = vmax.f32 %v1152, 0.0
  %v1583 = vmax.f32 %v1153, 0.0
  %v1584 = vmax.f32 %v1154, 0.0
  %v1585 = vmax.f32 %v1155, 0.0
  %v1586 = vmax.f32 %v1156, 0.0
  %v1587 = vmax.f32 %v998, 0.0
  %v1588 = vmax.f32 %v1157, 0.0
  %v1589 = vmax.f32 %v1158, 0.0
  %v1590 = vmax.f32 %v1159, 0.0
  %v1591 = vmax.f32 %v1160, 0.0
  %v1592 = vmax.f32 %v1161, 0.0
  %v1593 = vmax.f32 %v1162, 0.0
  %v1594 = vmax.f32 %v1163, 0.0
  %v1595 = vmax.f32 %v1001, 0.0
  %v1596 = vmax.f32 %v1164, 0.0
  %v1597 = vmax.f32 %v1165, 0.0
  %v1598 = vmax.f32 %v1166, 0.0
  %v1599 = vmax.f32 %v1167, 0.0
  %v1600 = vmax.f32 %v1168, 0.0
  %v1601 = vmax.f32 %v1169, 0.0
  %v1602 = vmax.f32 %v1170, 0.0
  %v1603 = vmax.f32 %v1004, 0.0
  %v1604 = vmax.f32 %v1171, 0.0
  %v1605 = vmax.f32 %v1172, 0.0
  %v1606 = vmax.f32 %v1173, 0.0
  %v1607 = vmax.f32 %v1174, 0.0
  %v1608 = vmax.f32 %v1175, 0.0
  %v1609 = vmax.f32 %v1176, 0.0
  %v1610 = vmax.f32 %v1177, 0.0
  %v1611 = vmax.f32 %v1007, 0.0
  %v1612 = vmax.f32 %v1178, 0.0
  %v1613 = vmax.f32 %v1179, 0.0
  %v1614 = vmax.f32 %v1180, 0.0
  %v1615 = vmax.f32 %v1181, 0.0
  %v1616 = vmax.f32 %v1182, 0.0
  %v1617 = vmax.f32 %v1183, 0.0
  %v1618 = vmax.f32 %v1184, 0.0
  %v1619 = vmax.f32 %v1010, 0.0
  %v1620 = vmax.f32 %v1185, 0.0
  %v1621 = vmax.f32 %v1186, 0.0
  %v1622 = vmax.f32 %v1187, 0.0
  %v1623 = vmax.f32 %v1188, 0.0
  %v1624 = vmax.f32 %v1189, 0.0
  %v1625 = vmax.f32 %v1190, 0.0
  %v1626 = vmax.f32 %v1191, 0.0
  %v1627 = vmax.f32 %v1013, 0.0
  %v1628 = vmax.f32 %v1192, 0.0
  %v1629 = vmax.f32 %v1193, 0.0
  %v1630 = vmax.f32 %v1194, 0.0
  %v1631 = vmax.f32 %v1195, 0.0
  %v1632 = vmax.f32 %v1196, 0.0
  %v1633 = vmax.f32 %v1197, 0.0
  %v1634 = vmax.f32 %v1198, 0.0
  %v1635 = vmax.f32 %v1016, 0.0
  %v1636 = vmax.f32 %v1199, 0.0
  %v1637 = vmax.f32 %v1200, 0.0
  %v1638 = vmax.f32 %v1201, 0.0
  %v1639 = vmax.f32 %v1202, 0.0
  %v1640 = vmax.f32 %v1203, 0.0
  %v1641 = vmax.f32 %v1204, 0.0
  %v1642 = vmax.f32 %v1205, 0.0
  %v1643 = vmax.f32 %v1019, 0.0
  %v1644 = vmax.f32 %v1206, 0.0
  %v1645 = vmax.f32 %v1207, 0.0
  %v1646 = vmax.f32 %v1208, 0.0
  %v1647 = vmax.f32 %v1209, 0.0
  %v1648 = vmax.f32 %v1210, 0.0
  %v1649 = vmax.f32 %v1211, 0.0
  %v1650 = vmax.f32 %v1212, 0.0
  %v1651 = vmax.f32 %v1022, 0.0
  %v1652 = vmax.f32 %v1213, 0.0
  %v1653 = vmax.f32 %v1214, 0.0
  %v1654 = vmax.f32 %v1215, 0.0
  %v1655 = vmax.f32 %v1216, 0.0
  %v1656 = vmax.f32 %v1217, 0.0
  %v1657 = vmax.f32 %v1218, 0.0
  %v1658 = vmax.f32 %v1219, 0.0
  %v1659 = vmax.f32 %v1025, 0.0
  %v1660 = vmax.f32 %v1220, 0.0
  %v1661 = vmax.f32 %v1221, 0.0
  %v1662 = vmax.f32 %v1222, 0.0
  %v1663 = vmax.f32 %v1223, 0.0
  %v1664 = vmax.f32 %v1224, 0.0
  %v1665 = vmax.f32 %v1225, 0.0
  %v1666 = vmax.f32 %v1226, 0.0
  %v1667 = vmax.f32 %v1028, 0.0
  %v1668 = vmax.f32 %v1227, 0.0
  %v1669 = vmax.f32 %v1228, 0.0
  %v1670 = vmax.f32 %v1229, 0.0
  %v1671 = vmax.f32 %v1230, 0.0
  %v1672 = vmax.f32 %v1231, 0.0
  %v1673 = vmax.f32 %v1232, 0.0
  %v1674 = vmax.f32 %v1233, 0.0
  %v1675 = vmax.f32 %v1031, 0.0
  %v1676 = vmax.f32 %v1234, 0.0
  %v1677 = vmax.f32 %v1235, 0.0
  %v1678 = vmax.f32 %v1236, 0.0
  %v1679 = vmax.f32 %v1237, 0.0
  %v1680 = vmax.f32 %v1238, 0.0
  %v1681 = vmax.f32 %v1239, 0.0
  %v1682 = vmax.f32 %v1240, 0.0
  %v1683 = vmax.f32 %v1034, 0.0
  %v1684 = vmax.f32 %v1241, 0.0
  %v1685 = vmax.f32 %v1242, 0.0
  %v1686 = vmax.f32 %v1243, 0.0
  %v1687 = vmax.f32 %v1244, 0.0
  %v1688 = vmax.f32 %v1245, 0.0
  %v1689 = vmax.f32 %v1246, 0.0
  %v1690 = vmax.f32 %v1247, 0.0
  %v1691 = vmax.f32 %v1037, 0.0
  %v1692 = vmax.f32 %v1248, 0.0
  %v1693 = vmax.f32 %v1249, 0.0
  %v1694 = vmax.f32 %v1250, 0.0
  %v1695 = vmax.f32 %v1251, 0.0
  %v1696 = vmax.f32 %v1252, 0.0
  %v1697 = vmax.f32 %v1253, 0.0
  %v1698 = vmax.f32 %v1254, 0.0
  %v1699 = vmax.f32 %v1040, 0.0
  %v1700 = vmax.f32 %v1255, 0.0
  %v1701 = vmax.f32 %v1256, 0.0
  %v1702 = vmax.f32 %v1257, 0.0
  %v1703 = vmax.f32 %v1258, 0.0
  %v1704 = vmax.f32 %v1259, 0.0
  %v1705 = vmax.f32 %v1260, 0.0
  %v1706 = vmax.f32 %v1261, 0.0
  %v1707 = vmax.f32 %v1043, 0.0
  %v1708 = vmax.f32 %v1262, 0.0
  %v1709 = vmax.f32 %v1263, 0.0
  %v1710 = vmax.f32 %v1264, 0.0
  %v1711 = vmax.f32 %v1265, 0.0
  %v1712 = vmax.f32 %v1266, 0.0
  %v1713 = vmax.f32 %v1267, 0.0
  %v1714 = vmax.f32 %v1268, 0.0
  %v1715 = vmax.f32 %v1046, 0.0
  %v1716 = vmax.f32 %v1269, 0.0
  %v1717 = vmax.f32 %v1270, 0.0
  %v1718 = vmax.f32 %v1271, 0.0
  %v1719 = vmax.f32 %v1272, 0.0
  %v1720 = vmax.f32 %v1273, 0.0
  %v1721 = vmax.f32 %v1274, 0.0
  %v1722 = vmax.f32 %v1275, 0.0
  %v1723 = vmax.f32 %v1049, 0.0
  %v1724 = vmax.f32 %v1276, 0.0
  %v1725 = vmax.f32 %v1277, 0.0
  %v1726 = vmax.f32 %v1278, 0.0
  %v1727 = vmax.f32 %v1279, 0.0
  %v1728 = vmax.f32 %v1280, 0.0
  %v1729 = vmax.f32 %v1281, 0.0
  %v1730 = vmax.f32 %v1282, 0.0
  %v1731 = vmax.f32 %v1052, 0.0
  %v1732 = vmax.f32 %v1283, 0.0
  %v1733 = vmax.f32 %v1284, 0.0
  %v1734 = vmax.f32 %v1285, 0.0
  %v1735 = vmax.f32 %v1286, 0.0
  %v1736 = vmax.f32 %v1287, 0.0
  %v1737 = vmax.f32 %v1288, 0.0
  %v1738 = vmax.f32 %v1289, 0.0
  %v1739 = vmax.f32 %v1055, 0.0
  %v1740 = vmax.f32 %v1290, 0.0
  %v1741 = vmax.f32 %v1291, 0.0
  %v1742 = vmax.f32 %v1292, 0.0
  %v1743 = vmax.f32 %v1293, 0.0
  %v1744 = vmax.f32 %v1294, 0.0
  %v1745 = vmax.f32 %v1295, 0.0
  %v1746 = vmax.f32 %v1296, 0.0
  %v1747 = vld [vmem:[%s1] sm:$0xff]
  %v1748 = vld [vmem:[%s1 + $0x8] sm:$0x7f]
  %v1749 = vld [vmem:[%s1 + $0x10] sm:$0xff]
  %v1750 = vld [vmem:[%s1 + $0x18] sm:$0x7f]
  %v1751 = vld [vmem:[%s1 + $0x20] sm:$0xff]
  %v1752 = vld [vmem:[%s1 + $0x28] sm:$0x7f]
  %v1753 = vld [vmem:[%s1 + $0x30] sm:$0xff]
  %v1754 = vld [vmem:[%s1 + $0x38] sm:$0x7f]
  %v1755 = vld [vmem:[%s1 + $0x40] sm:$0xff]
  %v1756 = vld [vmem:[%s1 + $0x48] sm:$0x7f]
  %v1757 = vld [vmem:[%s1 + $0x50] sm:$0xff]
  %v1758 = vld [vmem:[%s1 + $0x58] sm:$0x7f]
  %v1759 = vld [vmem:[%s1 + $0x60] sm:$0xff]
  %v1760 = vld [vmem:[%s1 + $0x68] sm:$0x7f]
  %v1761 = vld [vmem:[%s1 + $0x70] sm:$0xff]
  %v1762 = vld [vmem:[%s1 + $0x78] sm:$0x7f]
  %v1763 = vld [vmem:[%s1 + $0x80] sm:$0xff]
  %v1764 = vld [vmem:[%s1 + $0x88] sm:$0x7f]
  %v1765 = vld [vmem:[%s1 + $0x90] sm:$0xff]
  %v1766 = vld [vmem:[%s1 + $0x98] sm:$0x7f]
  %v1767 = vld [vmem:[%s1 + $0xa0] sm:$0xff]
  %v1768 = vld [vmem:[%s1 + $0xa8] sm:$0x7f]
  %v1769 = vld [vmem:[%s1 + $0xb0] sm:$0xff]
  %v1770 = vld [vmem:[%s1 + $0xb8] sm:$0x7f]
  %v1771 = vld [vmem:[%s1 + $0xc0] sm:$0xff]
  %v1772 = vld [vmem:[%s1 + $0xc8] sm:$0x7f]
  %v1773 = vld [vmem:[%s1 + $0xd0] sm:$0xff]
  %v1774 = vld [vmem:[%s1 + $0xd8] sm:$0x7f]
  %v1775 = vld [vmem:[%s1 + $0xe0] sm:$0xff]
  %v1776 = vld [vmem:[%s1 + $0xe8] sm:$0x7f]
  %v1777 = vld [vmem:[%s1 + $0xf0] sm:$0xff]
  %v1778 = vld [vmem:[%s1 + $0xf8] sm:$0x7f]
  %v1779 = vsub.f32 1.0, %v1747
  %v1780 = vsub.f32 1.0, %v1748
  %v1781 = vsub.f32 1.0, %v1749
  %v1782 = vsub.f32 1.0, %v1750
  %v1783 = vsub.f32 1.0, %v1751
  %v1784 = vsub.f32 1.0, %v1752
  %v1785 = vsub.f32 1.0, %v1753
  %v1786 = vsub.f32 1.0, %v1754
  %v1787 = vsub.f32 1.0, %v1755
  %v1788 = vsub.f32 1.0, %v1756
  %v1789 = vsub.f32 1.0, %v1757
  %v1790 = vsub.f32 1.0, %v1758
  %v1791 = vsub.f32 1.0, %v1759
  %v1792 = vsub.f32 1.0, %v1760
  %v1793 = vsub.f32 1.0, %v1761
  %v1794 = vsub.f32 1.0, %v1762
  %v1795 = vsub.f32 1.0, %v1763
  %v1796 = vsub.f32 1.0, %v1764
  %v1797 = vsub.f32 1.0, %v1765
  %v1798 = vsub.f32 1.0, %v1766
  %v1799 = vsub.f32 1.0, %v1767
  %v1800 = vsub.f32 1.0, %v1768
  %v1801 = vsub.f32 1.0, %v1769
  %v1802 = vsub.f32 1.0, %v1770
  %v1803 = vsub.f32 1.0, %v1771
  %v1804 = vsub.f32 1.0, %v1772
  %v1805 = vsub.f32 1.0, %v1773
  %v1806 = vsub.f32 1.0, %v1774
  %v1807 = vsub.f32 1.0, %v1775
  %v1808 = vsub.f32 1.0, %v1776
  %v1809 = vsub.f32 1.0, %v1777
  %v1810 = vsub.f32 1.0, %v1778
  %v1811 = vmul.f32 %v1779, 1e+10
  %v1812 = vmul.f32 %v1780, 1e+10
  %v1813 = vmul.f32 %v1781, 1e+10
  %v1814 = vmul.f32 %v1782, 1e+10
  %v1815 = vmul.f32 %v1783, 1e+10
  %v1816 = vmul.f32 %v1784, 1e+10
  %v1817 = vmul.f32 %v1785, 1e+10
  %v1818 = vmul.f32 %v1786, 1e+10
  %v1819 = vmul.f32 %v1787, 1e+10
  %v1820 = vmul.f32 %v1788, 1e+10
  %v1821 = vmul.f32 %v1789, 1e+10
  %v1822 = vmul.f32 %v1790, 1e+10
  %v1823 = vmul.f32 %v1791, 1e+10
  %v1824 = vmul.f32 %v1792, 1e+10
  %v1825 = vmul.f32 %v1793, 1e+10
  %v1826 = vmul.f32 %v1794, 1e+10
  %v1827 = vmul.f32 %v1795, 1e+10
  %v1828 = vmul.f32 %v1796, 1e+10
  %v1829 = vmul.f32 %v1797, 1e+10
  %v1830 = vmul.f32 %v1798, 1e+10
  %v1831 = vmul.f32 %v1799, 1e+10
  %v1832 = vmul.f32 %v1800, 1e+10
  %v1833 = vmul.f32 %v1801, 1e+10
  %v1834 = vmul.f32 %v1802, 1e+10
  %v1835 = vmul.f32 %v1803, 1e+10
  %v1836 = vmul.f32 %v1804, 1e+10
  %v1837 = vmul.f32 %v1805, 1e+10
  %v1838 = vmul.f32 %v1806, 1e+10
  %v1839 = vmul.f32 %v1807, 1e+10
  %v1840 = vmul.f32 %v1808, 1e+10
  %v1841 = vmul.f32 %v1809, 1e+10
  %v1842 = vmul.f32 %v1810, 1e+10
  %1844 = vset.pattern.permute.xlu0 0
  %1845 = vperm.xlu0 %1844, %v1811
  %v1846 = vpop.permute.xlu0 %1845
  %1848 = vset.pattern.permute.xlu0 0
  %1849 = vperm.xlu0 %1848, %v1812
  %v1850 = vpop.permute.xlu0 %1849
  %1852 = vset.pattern.permute.xlu0 0
  %1853 = vperm.xlu0 %1852, %v1813
  %v1854 = vpop.permute.xlu0 %1853
  %1856 = vset.pattern.permute.xlu0 0
  %1857 = vperm.xlu0 %1856, %v1814
  %v1858 = vpop.permute.xlu0 %1857
  %1860 = vset.pattern.permute.xlu0 0
  %1861 = vperm.xlu0 %1860, %v1815
  %v1862 = vpop.permute.xlu0 %1861
  %1864 = vset.pattern.permute.xlu0 0
  %1865 = vperm.xlu0 %1864, %v1816
  %v1866 = vpop.permute.xlu0 %1865
  %1868 = vset.pattern.permute.xlu0 0
  %1869 = vperm.xlu0 %1868, %v1817
  %v1870 = vpop.permute.xlu0 %1869
  %1872 = vset.pattern.permute.xlu0 0
  %1873 = vperm.xlu0 %1872, %v1818
  %v1874 = vpop.permute.xlu0 %1873
  %1876 = vset.pattern.permute.xlu0 0
  %1877 = vperm.xlu0 %1876, %v1819
  %v1878 = vpop.permute.xlu0 %1877
  %1880 = vset.pattern.permute.xlu0 0
  %1881 = vperm.xlu0 %1880, %v1820
  %v1882 = vpop.permute.xlu0 %1881
  %1884 = vset.pattern.permute.xlu0 0
  %1885 = vperm.xlu0 %1884, %v1821
  %v1886 = vpop.permute.xlu0 %1885
  %1888 = vset.pattern.permute.xlu0 0
  %1889 = vperm.xlu0 %1888, %v1822
  %v1890 = vpop.permute.xlu0 %1889
  %1892 = vset.pattern.permute.xlu0 0
  %1893 = vperm.xlu0 %1892, %v1823
  %v1894 = vpop.permute.xlu0 %1893
  %1896 = vset.pattern.permute.xlu0 0
  %1897 = vperm.xlu0 %1896, %v1824
  %v1898 = vpop.permute.xlu0 %1897
  %1900 = vset.pattern.permute.xlu0 0
  %1901 = vperm.xlu0 %1900, %v1825
  %v1902 = vpop.permute.xlu0 %1901
  %1904 = vset.pattern.permute.xlu0 0
  %1905 = vperm.xlu0 %1904, %v1826
  %v1906 = vpop.permute.xlu0 %1905
  %1908 = vset.pattern.permute.xlu0 0
  %1909 = vperm.xlu0 %1908, %v1827
  %v1910 = vpop.permute.xlu0 %1909
  %1912 = vset.pattern.permute.xlu0 0
  %1913 = vperm.xlu0 %1912, %v1828
  %v1914 = vpop.permute.xlu0 %1913
  %1916 = vset.pattern.permute.xlu0 0
  %1917 = vperm.xlu0 %1916, %v1829
  %v1918 = vpop.permute.xlu0 %1917
  %1920 = vset.pattern.permute.xlu0 0
  %1921 = vperm.xlu0 %1920, %v1830
  %v1922 = vpop.permute.xlu0 %1921
  %1924 = vset.pattern.permute.xlu0 0
  %1925 = vperm.xlu0 %1924, %v1831
  %v1926 = vpop.permute.xlu0 %1925
  %1928 = vset.pattern.permute.xlu0 0
  %1929 = vperm.xlu0 %1928, %v1832
  %v1930 = vpop.permute.xlu0 %1929
  %1932 = vset.pattern.permute.xlu0 0
  %1933 = vperm.xlu0 %1932, %v1833
  %v1934 = vpop.permute.xlu0 %1933
  %1936 = vset.pattern.permute.xlu0 0
  %1937 = vperm.xlu0 %1936, %v1834
  %v1938 = vpop.permute.xlu0 %1937
  %1940 = vset.pattern.permute.xlu0 0
  %1941 = vperm.xlu0 %1940, %v1835
  %v1942 = vpop.permute.xlu0 %1941
  %1944 = vset.pattern.permute.xlu0 0
  %1945 = vperm.xlu0 %1944, %v1836
  %v1946 = vpop.permute.xlu0 %1945
  %1948 = vset.pattern.permute.xlu0 0
  %1949 = vperm.xlu0 %1948, %v1837
  %v1950 = vpop.permute.xlu0 %1949
  %1952 = vset.pattern.permute.xlu0 0
  %1953 = vperm.xlu0 %1952, %v1838
  %v1954 = vpop.permute.xlu0 %1953
  %1956 = vset.pattern.permute.xlu0 0
  %1957 = vperm.xlu0 %1956, %v1839
  %v1958 = vpop.permute.xlu0 %1957
  %1960 = vset.pattern.permute.xlu0 0
  %1961 = vperm.xlu0 %1960, %v1840
  %v1962 = vpop.permute.xlu0 %1961
  %1964 = vset.pattern.permute.xlu0 0
  %1965 = vperm.xlu0 %1964, %v1841
  %v1966 = vpop.permute.xlu0 %1965
  %1968 = vset.pattern.permute.xlu0 0
  %1969 = vperm.xlu0 %1968, %v1842
  %v1970 = vpop.permute.xlu0 %1969
  %v1971 = vperm.slane %v1846, 0
  %v1972 = vperm.slane %v1846, 1
  %v1973 = vperm.slane %v1846, 2
  %v1974 = vperm.slane %v1846, 3
  %v1975 = vperm.slane %v1846, 4
  %v1976 = vperm.slane %v1846, 5
  %v1977 = vperm.slane %v1846, 6
  %v1978 = vperm.slane %v1846, 7
  %v1979 = vperm.slane %v1850, 0
  %v1980 = vperm.slane %v1850, 1
  %v1981 = vperm.slane %v1850, 2
  %v1982 = vperm.slane %v1850, 3
  %v1983 = vperm.slane %v1850, 4
  %v1984 = vperm.slane %v1850, 5
  %v1985 = vperm.slane %v1850, 6
  %v1986 = vperm.slane %v1854, 0
  %v1987 = vperm.slane %v1854, 1
  %v1988 = vperm.slane %v1854, 2
  %v1989 = vperm.slane %v1854, 3
  %v1990 = vperm.slane %v1854, 4
  %v1991 = vperm.slane %v1854, 5
  %v1992 = vperm.slane %v1854, 6
  %v1993 = vperm.slane %v1854, 7
  %v1994 = vperm.slane %v1858, 0
  %v1995 = vperm.slane %v1858, 1
  %v1996 = vperm.slane %v1858, 2
  %v1997 = vperm.slane %v1858, 3
  %v1998 = vperm.slane %v1858, 4
  %v1999 = vperm.slane %v1858, 5
  %v2000 = vperm.slane %v1858, 6
  %v2001 = vperm.slane %v1862, 0
  %v2002 = vperm.slane %v1862, 1
  %v2003 = vperm.slane %v1862, 2
  %v2004 = vperm.slane %v1862, 3
  %v2005 = vperm.slane %v1862, 4
  %v2006 = vperm.slane %v1862, 5
  %v2007 = vperm.slane %v1862, 6
  %v2008 = vperm.slane %v1862, 7
  %v2009 = vperm.slane %v1866, 0
  %v2010 = vperm.slane %v1866, 1
  %v2011 = vperm.slane %v1866, 2
  %v2012 = vperm.slane %v1866, 3
  %v2013 = vperm.slane %v1866, 4
  %v2014 = vperm.slane %v1866, 5
  %v2015 = vperm.slane %v1866, 6
  %v2016 = vperm.slane %v1870, 0
  %v2017 = vperm.slane %v1870, 1
  %v2018 = vperm.slane %v1870, 2
  %v2019 = vperm.slane %v1870, 3
  %v2020 = vperm.slane %v1870, 4
  %v2021 = vperm.slane %v1870, 5
  %v2022 = vperm.slane %v1870, 6
  %v2023 = vperm.slane %v1870, 7
  %v2024 = vperm.slane %v1874, 0
  %v2025 = vperm.slane %v1874, 1
  %v2026 = vperm.slane %v1874, 2
  %v2027 = vperm.slane %v1874, 3
  %v2028 = vperm.slane %v1874, 4
  %v2029 = vperm.slane %v1874, 5
  %v2030 = vperm.slane %v1874, 6
  %v2031 = vperm.slane %v1878, 0
  %v2032 = vperm.slane %v1878, 1
  %v2033 = vperm.slane %v1878, 2
  %v2034 = vperm.slane %v1878, 3
  %v2035 = vperm.slane %v1878, 4
  %v2036 = vperm.slane %v1878, 5
  %v2037 = vperm.slane %v1878, 6
  %v2038 = vperm.slane %v1878, 7
  %v2039 = vperm.slane %v1882, 0
  %v2040 = vperm.slane %v1882, 1
  %v2041 = vperm.slane %v1882, 2
  %v2042 = vperm.slane %v1882, 3
  %v2043 = vperm.slane %v1882, 4
  %v2044 = vperm.slane %v1882, 5
  %v2045 = vperm.slane %v1882, 6
  %v2046 = vperm.slane %v1886, 0
  %v2047 = vperm.slane %v1886, 1
  %v2048 = vperm.slane %v1886, 2
  %v2049 = vperm.slane %v1886, 3
  %v2050 = vperm.slane %v1886, 4
  %v2051 = vperm.slane %v1886, 5
  %v2052 = vperm.slane %v1886, 6
  %v2053 = vperm.slane %v1886, 7
  %v2054 = vperm.slane %v1890, 0
  %v2055 = vperm.slane %v1890, 1
  %v2056 = vperm.slane %v1890, 2
  %v2057 = vperm.slane %v1890, 3
  %v2058 = vperm.slane %v1890, 4
  %v2059 = vperm.slane %v1890, 5
  %v2060 = vperm.slane %v1890, 6
  %v2061 = vperm.slane %v1894, 0
  %v2062 = vperm.slane %v1894, 1
  %v2063 = vperm.slane %v1894, 2
  %v2064 = vperm.slane %v1894, 3
  %v2065 = vperm.slane %v1894, 4
  %v2066 = vperm.slane %v1894, 5
  %v2067 = vperm.slane %v1894, 6
  %v2068 = vperm.slane %v1894, 7
  %v2069 = vperm.slane %v1898, 0
  %v2070 = vperm.slane %v1898, 1
  %v2071 = vperm.slane %v1898, 2
  %v2072 = vperm.slane %v1898, 3
  %v2073 = vperm.slane %v1898, 4
  %v2074 = vperm.slane %v1898, 5
  %v2075 = vperm.slane %v1898, 6
  %v2076 = vperm.slane %v1902, 0
  %v2077 = vperm.slane %v1902, 1
  %v2078 = vperm.slane %v1902, 2
  %v2079 = vperm.slane %v1902, 3
  %v2080 = vperm.slane %v1902, 4
  %v2081 = vperm.slane %v1902, 5
  %v2082 = vperm.slane %v1902, 6
  %v2083 = vperm.slane %v1902, 7
  %v2084 = vperm.slane %v1906, 0
  %v2085 = vperm.slane %v1906, 1
  %v2086 = vperm.slane %v1906, 2
  %v2087 = vperm.slane %v1906, 3
  %v2088 = vperm.slane %v1906, 4
  %v2089 = vperm.slane %v1906, 5
  %v2090 = vperm.slane %v1906, 6
  %v2091 = vperm.slane %v1910, 0
  %v2092 = vperm.slane %v1910, 1
  %v2093 = vperm.slane %v1910, 2
  %v2094 = vperm.slane %v1910, 3
  %v2095 = vperm.slane %v1910, 4
  %v2096 = vperm.slane %v1910, 5
  %v2097 = vperm.slane %v1910, 6
  %v2098 = vperm.slane %v1910, 7
  %v2099 = vperm.slane %v1914, 0
  %v2100 = vperm.slane %v1914, 1
  %v2101 = vperm.slane %v1914, 2
  %v2102 = vperm.slane %v1914, 3
  %v2103 = vperm.slane %v1914, 4
  %v2104 = vperm.slane %v1914, 5
  %v2105 = vperm.slane %v1914, 6
  %v2106 = vperm.slane %v1918, 0
  %v2107 = vperm.slane %v1918, 1
  %v2108 = vperm.slane %v1918, 2
  %v2109 = vperm.slane %v1918, 3
  %v2110 = vperm.slane %v1918, 4
  %v2111 = vperm.slane %v1918, 5
  %v2112 = vperm.slane %v1918, 6
  %v2113 = vperm.slane %v1918, 7
  %v2114 = vperm.slane %v1922, 0
  %v2115 = vperm.slane %v1922, 1
  %v2116 = vperm.slane %v1922, 2
  %v2117 = vperm.slane %v1922, 3
  %v2118 = vperm.slane %v1922, 4
  %v2119 = vperm.slane %v1922, 5
  %v2120 = vperm.slane %v1922, 6
  %v2121 = vperm.slane %v1926, 0
  %v2122 = vperm.slane %v1926, 1
  %v2123 = vperm.slane %v1926, 2
  %v2124 = vperm.slane %v1926, 3
  %v2125 = vperm.slane %v1926, 4
  %v2126 = vperm.slane %v1926, 5
  %v2127 = vperm.slane %v1926, 6
  %v2128 = vperm.slane %v1926, 7
  %v2129 = vperm.slane %v1930, 0
  %v2130 = vperm.slane %v1930, 1
  %v2131 = vperm.slane %v1930, 2
  %v2132 = vperm.slane %v1930, 3
  %v2133 = vperm.slane %v1930, 4
  %v2134 = vperm.slane %v1930, 5
  %v2135 = vperm.slane %v1930, 6
  %v2136 = vperm.slane %v1934, 0
  %v2137 = vperm.slane %v1934, 1
  %v2138 = vperm.slane %v1934, 2
  %v2139 = vperm.slane %v1934, 3
  %v2140 = vperm.slane %v1934, 4
  %v2141 = vperm.slane %v1934, 5
  %v2142 = vperm.slane %v1934, 6
  %v2143 = vperm.slane %v1934, 7
  %v2144 = vperm.slane %v1938, 0
  %v2145 = vperm.slane %v1938, 1
  %v2146 = vperm.slane %v1938, 2
  %v2147 = vperm.slane %v1938, 3
  %v2148 = vperm.slane %v1938, 4
  %v2149 = vperm.slane %v1938, 5
  %v2150 = vperm.slane %v1938, 6
  %v2151 = vperm.slane %v1942, 0
  %v2152 = vperm.slane %v1942, 1
  %v2153 = vperm.slane %v1942, 2
  %v2154 = vperm.slane %v1942, 3
  %v2155 = vperm.slane %v1942, 4
  %v2156 = vperm.slane %v1942, 5
  %v2157 = vperm.slane %v1942, 6
  %v2158 = vperm.slane %v1942, 7
  %v2159 = vperm.slane %v1946, 0
  %v2160 = vperm.slane %v1946, 1
  %v2161 = vperm.slane %v1946, 2
  %v2162 = vperm.slane %v1946, 3
  %v2163 = vperm.slane %v1946, 4
  %v2164 = vperm.slane %v1946, 5
  %v2165 = vperm.slane %v1946, 6
  %v2166 = vperm.slane %v1950, 0
  %v2167 = vperm.slane %v1950, 1
  %v2168 = vperm.slane %v1950, 2
  %v2169 = vperm.slane %v1950, 3
  %v2170 = vperm.slane %v1950, 4
  %v2171 = vperm.slane %v1950, 5
  %v2172 = vperm.slane %v1950, 6
  %v2173 = vperm.slane %v1950, 7
  %v2174 = vperm.slane %v1954, 0
  %v2175 = vperm.slane %v1954, 1
  %v2176 = vperm.slane %v1954, 2
  %v2177 = vperm.slane %v1954, 3
  %v2178 = vperm.slane %v1954, 4
  %v2179 = vperm.slane %v1954, 5
  %v2180 = vperm.slane %v1954, 6
  %v2181 = vperm.slane %v1958, 0
  %v2182 = vperm.slane %v1958, 1
  %v2183 = vperm.slane %v1958, 2
  %v2184 = vperm.slane %v1958, 3
  %v2185 = vperm.slane %v1958, 4
  %v2186 = vperm.slane %v1958, 5
  %v2187 = vperm.slane %v1958, 6
  %v2188 = vperm.slane %v1958, 7
  %v2189 = vperm.slane %v1962, 0
  %v2190 = vperm.slane %v1962, 1
  %v2191 = vperm.slane %v1962, 2
  %v2192 = vperm.slane %v1962, 3
  %v2193 = vperm.slane %v1962, 4
  %v2194 = vperm.slane %v1962, 5
  %v2195 = vperm.slane %v1962, 6
  %v2196 = vperm.slane %v1966, 0
  %v2197 = vperm.slane %v1966, 1
  %v2198 = vperm.slane %v1966, 2
  %v2199 = vperm.slane %v1966, 3
  %v2200 = vperm.slane %v1966, 4
  %v2201 = vperm.slane %v1966, 5
  %v2202 = vperm.slane %v1966, 6
  %v2203 = vperm.slane %v1966, 7
  %v2204 = vperm.slane %v1970, 0
  %v2205 = vperm.slane %v1970, 1
  %v2206 = vperm.slane %v1970, 2
  %v2207 = vperm.slane %v1970, 3
  %v2208 = vperm.slane %v1970, 4
  %v2209 = vperm.slane %v1970, 5
  %v2210 = vperm.slane %v1970, 6
  %v2451 = vsub.f32 %v1507, %v1971
  %v2452 = vsub.f32 %v1508, %v1972
  %v2453 = vsub.f32 %v1509, %v1973
  %v2454 = vsub.f32 %v1510, %v1974
  %v2455 = vsub.f32 %v1511, %v1975
  %v2456 = vsub.f32 %v1512, %v1976
  %v2457 = vsub.f32 %v1513, %v1977
  %v2458 = vsub.f32 %v1514, %v1978
  %v2459 = vsub.f32 %v1515, %v1979
  %v2460 = vsub.f32 %v1516, %v1980
  %v2461 = vsub.f32 %v1517, %v1981
  %v2462 = vsub.f32 %v1518, %v1982
  %v2463 = vsub.f32 %v1519, %v1983
  %v2464 = vsub.f32 %v1520, %v1984
  %v2465 = vsub.f32 %v1521, %v1985
  %v2466 = vsub.f32 %v1522, %v1986
  %v2467 = vsub.f32 %v1523, %v1987
  %v2468 = vsub.f32 %v1524, %v1988
  %v2469 = vsub.f32 %v1525, %v1989
  %v2470 = vsub.f32 %v1526, %v1990
  %v2471 = vsub.f32 %v1527, %v1991
  %v2472 = vsub.f32 %v1528, %v1992
  %v2473 = vsub.f32 %v1529, %v1993
  %v2474 = vsub.f32 %v1530, %v1994
  %v2475 = vsub.f32 %v1531, %v1995
  %v2476 = vsub.f32 %v1532, %v1996
  %v2477 = vsub.f32 %v1533, %v1997
  %v2478 = vsub.f32 %v1534, %v1998
  %v2479 = vsub.f32 %v1535, %v1999
  %v2480 = vsub.f32 %v1536, %v2000
  %v2481 = vsub.f32 %v1537, %v2001
  %v2482 = vsub.f32 %v1538, %v2002
  %v2483 = vsub.f32 %v1539, %v2003
  %v2484 = vsub.f32 %v1540, %v2004
  %v2485 = vsub.f32 %v1541, %v2005
  %v2486 = vsub.f32 %v1542, %v2006
  %v2487 = vsub.f32 %v1543, %v2007
  %v2488 = vsub.f32 %v1544, %v2008
  %v2489 = vsub.f32 %v1545, %v2009
  %v2490 = vsub.f32 %v1546, %v2010
  %v2491 = vsub.f32 %v1547, %v2011
  %v2492 = vsub.f32 %v1548, %v2012
  %v2493 = vsub.f32 %v1549, %v2013
  %v2494 = vsub.f32 %v1550, %v2014
  %v2495 = vsub.f32 %v1551, %v2015
  %v2496 = vsub.f32 %v1552, %v2016
  %v2497 = vsub.f32 %v1553, %v2017
  %v2498 = vsub.f32 %v1554, %v2018
  %v2499 = vsub.f32 %v1555, %v2019
  %v2500 = vsub.f32 %v1556, %v2020
  %v2501 = vsub.f32 %v1557, %v2021
  %v2502 = vsub.f32 %v1558, %v2022
  %v2503 = vsub.f32 %v1559, %v2023
  %v2504 = vsub.f32 %v1560, %v2024
  %v2505 = vsub.f32 %v1561, %v2025
  %v2506 = vsub.f32 %v1562, %v2026
  %v2507 = vsub.f32 %v1563, %v2027
  %v2508 = vsub.f32 %v1564, %v2028
  %v2509 = vsub.f32 %v1565, %v2029
  %v2510 = vsub.f32 %v1566, %v2030
  %v2511 = vsub.f32 %v1567, %v2031
  %v2512 = vsub.f32 %v1568, %v2032
  %v2513 = vsub.f32 %v1569, %v2033
  %v2514 = vsub.f32 %v1570, %v2034
  %v2515 = vsub.f32 %v1571, %v2035
  %v2516 = vsub.f32 %v1572, %v2036
  %v2517 = vsub.f32 %v1573, %v2037
  %v2518 = vsub.f32 %v1574, %v2038
  %v2519 = vsub.f32 %v1575, %v2039
  %v2520 = vsub.f32 %v1576, %v2040
  %v2521 = vsub.f32 %v1577, %v2041
  %v2522 = vsub.f32 %v1578, %v2042
  %v2523 = vsub.f32 %v1579, %v2043
  %v2524 = vsub.f32 %v1580, %v2044
  %v2525 = vsub.f32 %v1581, %v2045
  %v2526 = vsub.f32 %v1582, %v2046
  %v2527 = vsub.f32 %v1583, %v2047
  %v2528 = vsub.f32 %v1584, %v2048
  %v2529 = vsub.f32 %v1585, %v2049
  %v2530 = vsub.f32 %v1586, %v2050
  %v2531 = vsub.f32 %v1587, %v2051
  %v2532 = vsub.f32 %v1588, %v2052
  %v2533 = vsub.f32 %v1589, %v2053
  %v2534 = vsub.f32 %v1590, %v2054
  %v2535 = vsub.f32 %v1591, %v2055
  %v2536 = vsub.f32 %v1592, %v2056
  %v2537 = vsub.f32 %v1593, %v2057
  %v2538 = vsub.f32 %v1594, %v2058
  %v2539 = vsub.f32 %v1595, %v2059
  %v2540 = vsub.f32 %v1596, %v2060
  %v2541 = vsub.f32 %v1597, %v2061
  %v2542 = vsub.f32 %v1598, %v2062
  %v2543 = vsub.f32 %v1599, %v2063
  %v2544 = vsub.f32 %v1600, %v2064
  %v2545 = vsub.f32 %v1601, %v2065
  %v2546 = vsub.f32 %v1602, %v2066
  %v2547 = vsub.f32 %v1603, %v2067
  %v2548 = vsub.f32 %v1604, %v2068
  %v2549 = vsub.f32 %v1605, %v2069
  %v2550 = vsub.f32 %v1606, %v2070
  %v2551 = vsub.f32 %v1607, %v2071
  %v2552 = vsub.f32 %v1608, %v2072
  %v2553 = vsub.f32 %v1609, %v2073
  %v2554 = vsub.f32 %v1610, %v2074
  %v2555 = vsub.f32 %v1611, %v2075
  %v2556 = vsub.f32 %v1612, %v2076
  %v2557 = vsub.f32 %v1613, %v2077
  %v2558 = vsub.f32 %v1614, %v2078
  %v2559 = vsub.f32 %v1615, %v2079
  %v2560 = vsub.f32 %v1616, %v2080
  %v2561 = vsub.f32 %v1617, %v2081
  %v2562 = vsub.f32 %v1618, %v2082
  %v2563 = vsub.f32 %v1619, %v2083
  %v2564 = vsub.f32 %v1620, %v2084
  %v2565 = vsub.f32 %v1621, %v2085
  %v2566 = vsub.f32 %v1622, %v2086
  %v2567 = vsub.f32 %v1623, %v2087
  %v2568 = vsub.f32 %v1624, %v2088
  %v2569 = vsub.f32 %v1625, %v2089
  %v2570 = vsub.f32 %v1626, %v2090
  %v2571 = vsub.f32 %v1627, %v2091
  %v2572 = vsub.f32 %v1628, %v2092
  %v2573 = vsub.f32 %v1629, %v2093
  %v2574 = vsub.f32 %v1630, %v2094
  %v2575 = vsub.f32 %v1631, %v2095
  %v2576 = vsub.f32 %v1632, %v2096
  %v2577 = vsub.f32 %v1633, %v2097
  %v2578 = vsub.f32 %v1634, %v2098
  %v2579 = vsub.f32 %v1635, %v2099
  %v2580 = vsub.f32 %v1636, %v2100
  %v2581 = vsub.f32 %v1637, %v2101
  %v2582 = vsub.f32 %v1638, %v2102
  %v2583 = vsub.f32 %v1639, %v2103
  %v2584 = vsub.f32 %v1640, %v2104
  %v2585 = vsub.f32 %v1641, %v2105
  %v2586 = vsub.f32 %v1642, %v2106
  %v2587 = vsub.f32 %v1643, %v2107
  %v2588 = vsub.f32 %v1644, %v2108
  %v2589 = vsub.f32 %v1645, %v2109
  %v2590 = vsub.f32 %v1646, %v2110
  %v2591 = vsub.f32 %v1647, %v2111
  %v2592 = vsub.f32 %v1648, %v2112
  %v2593 = vsub.f32 %v1649, %v2113
  %v2594 = vsub.f32 %v1650, %v2114
  %v2595 = vsub.f32 %v1651, %v2115
  %v2596 = vsub.f32 %v1652, %v2116
  %v2597 = vsub.f32 %v1653, %v2117
  %v2598 = vsub.f32 %v1654, %v2118
  %v2599 = vsub.f32 %v1655, %v2119
  %v2600 = vsub.f32 %v1656, %v2120
  %v2601 = vsub.f32 %v1657, %v2121
  %v2602 = vsub.f32 %v1658, %v2122
  %v2603 = vsub.f32 %v1659, %v2123
  %v2604 = vsub.f32 %v1660, %v2124
  %v2605 = vsub.f32 %v1661, %v2125
  %v2606 = vsub.f32 %v1662, %v2126
  %v2607 = vsub.f32 %v1663, %v2127
  %v2608 = vsub.f32 %v1664, %v2128
  %v2609 = vsub.f32 %v1665, %v2129
  %v2610 = vsub.f32 %v1666, %v2130
  %v2611 = vsub.f32 %v1667, %v2131
  %v2612 = vsub.f32 %v1668, %v2132
  %v2613 = vsub.f32 %v1669, %v2133
  %v2614 = vsub.f32 %v1670, %v2134
  %v2615 = vsub.f32 %v1671, %v2135
  %v2616 = vsub.f32 %v1672, %v2136
  %v2617 = vsub.f32 %v1673, %v2137
  %v2618 = vsub.f32 %v1674, %v2138
  %v2619 = vsub.f32 %v1675, %v2139
  %v2620 = vsub.f32 %v1676, %v2140
  %v2621 = vsub.f32 %v1677, %v2141
  %v2622 = vsub.f32 %v1678, %v2142
  %v2623 = vsub.f32 %v1679, %v2143
  %v2624 = vsub.f32 %v1680, %v2144
  %v2625 = vsub.f32 %v1681, %v2145
  %v2626 = vsub.f32 %v1682, %v2146
  %v2627 = vsub.f32 %v1683, %v2147
  %v2628 = vsub.f32 %v1684, %v2148
  %v2629 = vsub.f32 %v1685, %v2149
  %v2630 = vsub.f32 %v1686, %v2150
  %v2631 = vsub.f32 %v1687, %v2151
  %v2632 = vsub.f32 %v1688, %v2152
  %v2633 = vsub.f32 %v1689, %v2153
  %v2634 = vsub.f32 %v1690, %v2154
  %v2635 = vsub.f32 %v1691, %v2155
  %v2636 = vsub.f32 %v1692, %v2156
  %v2637 = vsub.f32 %v1693, %v2157
  %v2638 = vsub.f32 %v1694, %v2158
  %v2639 = vsub.f32 %v1695, %v2159
  %v2640 = vsub.f32 %v1696, %v2160
  %v2641 = vsub.f32 %v1697, %v2161
  %v2642 = vsub.f32 %v1698, %v2162
  %v2643 = vsub.f32 %v1699, %v2163
  %v2644 = vsub.f32 %v1700, %v2164
  %v2645 = vsub.f32 %v1701, %v2165
  %v2646 = vsub.f32 %v1702, %v2166
  %v2647 = vsub.f32 %v1703, %v2167
  %v2648 = vsub.f32 %v1704, %v2168
  %v2649 = vsub.f32 %v1705, %v2169
  %v2650 = vsub.f32 %v1706, %v2170
  %v2651 = vsub.f32 %v1707, %v2171
  %v2652 = vsub.f32 %v1708, %v2172
  %v2653 = vsub.f32 %v1709, %v2173
  %v2654 = vsub.f32 %v1710, %v2174
  %v2655 = vsub.f32 %v1711, %v2175
  %v2656 = vsub.f32 %v1712, %v2176
  %v2657 = vsub.f32 %v1713, %v2177
  %v2658 = vsub.f32 %v1714, %v2178
  %v2659 = vsub.f32 %v1715, %v2179
  %v2660 = vsub.f32 %v1716, %v2180
  %v2661 = vsub.f32 %v1717, %v2181
  %v2662 = vsub.f32 %v1718, %v2182
  %v2663 = vsub.f32 %v1719, %v2183
  %v2664 = vsub.f32 %v1720, %v2184
  %v2665 = vsub.f32 %v1721, %v2185
  %v2666 = vsub.f32 %v1722, %v2186
  %v2667 = vsub.f32 %v1723, %v2187
  %v2668 = vsub.f32 %v1724, %v2188
  %v2669 = vsub.f32 %v1725, %v2189
  %v2670 = vsub.f32 %v1726, %v2190
  %v2671 = vsub.f32 %v1727, %v2191
  %v2672 = vsub.f32 %v1728, %v2192
  %v2673 = vsub.f32 %v1729, %v2193
  %v2674 = vsub.f32 %v1730, %v2194
  %v2675 = vsub.f32 %v1731, %v2195
  %v2676 = vsub.f32 %v1732, %v2196
  %v2677 = vsub.f32 %v1733, %v2197
  %v2678 = vsub.f32 %v1734, %v2198
  %v2679 = vsub.f32 %v1735, %v2199
  %v2680 = vsub.f32 %v1736, %v2200
  %v2681 = vsub.f32 %v1737, %v2201
  %v2682 = vsub.f32 %v1738, %v2202
  %v2683 = vsub.f32 %v1739, %v2203
  %v2684 = vsub.f32 %v1740, %v2204
  %v2685 = vsub.f32 %v1741, %v2205
  %v2686 = vsub.f32 %v1742, %v2206
  %v2687 = vsub.f32 %v1743, %v2207
  %v2688 = vsub.f32 %v1744, %v2208
  %v2689 = vsub.f32 %v1745, %v2209
  %v2690 = vsub.f32 %v1746, %v2210
  %2931 = vst [vmem:[#allocation1] ss:$9 sm:$0xff] %v2451
  %s2932 = scalar_lea.vmem [#allocation1], 1
  %2933 = vst [vmem:[%s2932] ss:$9 sm:$0xff] %v2452
  %s2934 = scalar_lea.vmem [#allocation1], 2
  %2935 = vst [vmem:[%s2934] ss:$9 sm:$0xff] %v2453
  %s2936 = scalar_lea.vmem [#allocation1], 3
  %2937 = vst [vmem:[%s2936] ss:$9 sm:$0xff] %v2454
  %s2938 = scalar_lea.vmem [#allocation1], 4
  %2939 = vst [vmem:[%s2938] ss:$9 sm:$0xff] %v2455
  %s2940 = scalar_lea.vmem [#allocation1], 5
  %2941 = vst [vmem:[%s2940] ss:$9 sm:$0xff] %v2456
  %s2942 = scalar_lea.vmem [#allocation1], 6
  %2943 = vst [vmem:[%s2942] ss:$9 sm:$0xff] %v2457
  %s2944 = scalar_lea.vmem [#allocation1], 7
  %2945 = vst [vmem:[%s2944] ss:$9 sm:$0xff] %v2458
  %v2946 = vld [vmem:[#allocation1] sm:$0xff]
  %2947 = vst [vmem:[#allocation1] ss:$9 sm:$0xff] %v2459
  %2948 = vst [vmem:[%s2932] ss:$9 sm:$0xff] %v2460
  %2949 = vst [vmem:[%s2934] ss:$9 sm:$0xff] %v2461
  %2950 = vst [vmem:[%s2936] ss:$9 sm:$0xff] %v2462
  %2951 = vst [vmem:[%s2938] ss:$9 sm:$0xff] %v2463
  %2952 = vst [vmem:[%s2940] ss:$9 sm:$0xff] %v2464
  %2953 = vst [vmem:[%s2942] ss:$9 sm:$0xff] %v2465
  %v2954 = vld [vmem:[#allocation1] sm:$0xff]
  %2955 = vst [vmem:[#allocation1] ss:$9 sm:$0xff] %v2466
  %2956 = vst [vmem:[%s2932] ss:$9 sm:$0xff] %v2467
  %2957 = vst [vmem:[%s2934] ss:$9 sm:$0xff] %v2468
  %2958 = vst [vmem:[%s2936] ss:$9 sm:$0xff] %v2469
  %2959 = vst [vmem:[%s2938] ss:$9 sm:$0xff] %v2470
  %2960 = vst [vmem:[%s2940] ss:$9 sm:$0xff] %v2471
  %2961 = vst [vmem:[%s2942] ss:$9 sm:$0xff] %v2472
  %2962 = vst [vmem:[%s2944] ss:$9 sm:$0xff] %v2473
  %v2963 = vld [vmem:[#allocation1] sm:$0xff]
  %2964 = vst [vmem:[#allocation1] ss:$9 sm:$0xff] %v2474
  %2965 = vst [vmem:[%s2932] ss:$9 sm:$0xff] %v2475
  %2966 = vst [vmem:[%s2934] ss:$9 sm:$0xff] %v2476
  %2967 = vst [vmem:[%s2936] ss:$9 sm:$0xff] %v2477
  %2968 = vst [vmem:[%s2938] ss:$9 sm:$0xff] %v2478
  %2969 = vst [vmem:[%s2940] ss:$9 sm:$0xff] %v2479
  %2970 = vst [vmem:[%s2942] ss:$9 sm:$0xff] %v2480
  %v2971 = vld [vmem:[#allocation1] sm:$0xff]
  %2972 = vst [vmem:[#allocation1] ss:$9 sm:$0xff] %v2481
  %2973 = vst [vmem:[%s2932] ss:$9 sm:$0xff] %v2482
  %2974 = vst [vmem:[%s2934] ss:$9 sm:$0xff] %v2483
  %2975 = vst [vmem:[%s2936] ss:$9 sm:$0xff] %v2484
  %2976 = vst [vmem:[%s2938] ss:$9 sm:$0xff] %v2485
  %2977 = vst [vmem:[%s2940] ss:$9 sm:$0xff] %v2486
  %2978 = vst [vmem:[%s2942] ss:$9 sm:$0xff] %v2487
  %2979 = vst [vmem:[%s2944] ss:$9 sm:$0xff] %v2488
  %v2980 = vld [vmem:[#allocation1] sm:$0xff]
  %2981 = vst [vmem:[#allocation1] ss:$9 sm:$0xff] %v2489
  %2982 = vst [vmem:[%s2932] ss:$9 sm:$0xff] %v2490
  %2983 = vst [vmem:[%s2934] ss:$9 sm:$0xff] %v2491
  %2984 = vst [vmem:[%s2936] ss:$9 sm:$0xff] %v2492
  %2985 = vst [vmem:[%s2938] ss:$9 sm:$0xff] %v2493
  %2986 = vst [vmem:[%s2940] ss:$9 sm:$0xff] %v2494
  %2987 = vst [vmem:[%s2942] ss:$9 sm:$0xff] %v2495
  %v2988 = vld [vmem:[#allocation1] sm:$0xff]
  %2989 = vst [vmem:[#allocation1] ss:$9 sm:$0xff] %v2496
  %2990 = vst [vmem:[%s2932] ss:$9 sm:$0xff] %v2497
  %2991 = vst [vmem:[%s2934] ss:$9 sm:$0xff] %v2498
  %2992 = vst [vmem:[%s2936] ss:$9 sm:$0xff] %v2499
  %2993 = vst [vmem:[%s2938] ss:$9 sm:$0xff] %v2500
  %2994 = vst [vmem:[%s2940] ss:$9 sm:$0xff] %v2501
  %2995 = vst [vmem:[%s2942] ss:$9 sm:$0xff] %v2502
  %2996 = vst [vmem:[%s2944] ss:$9 sm:$0xff] %v2503
  %v2997 = vld [vmem:[#allocation1] sm:$0xff]
  %2998 = vst [vmem:[#allocation1] ss:$9 sm:$0xff] %v2504
  %2999 = vst [vmem:[%s2932] ss:$9 sm:$0xff] %v2505
  %3000 = vst [vmem:[%s2934] ss:$9 sm:$0xff] %v2506
  %3001 = vst [vmem:[%s2936] ss:$9 sm:$0xff] %v2507
  %3002 = vst [vmem:[%s2938] ss:$9 sm:$0xff] %v2508
  %3003 = vst [vmem:[%s2940] ss:$9 sm:$0xff] %v2509
  %3004 = vst [vmem:[%s2942] ss:$9 sm:$0xff] %v2510
  %v3005 = vld [vmem:[#allocation1] sm:$0xff]
  %3006 = vst [vmem:[#allocation1] ss:$9 sm:$0xff] %v2511
  %3007 = vst [vmem:[%s2932] ss:$9 sm:$0xff] %v2512
  %3008 = vst [vmem:[%s2934] ss:$9 sm:$0xff] %v2513
  %3009 = vst [vmem:[%s2936] ss:$9 sm:$0xff] %v2514
  %3010 = vst [vmem:[%s2938] ss:$9 sm:$0xff] %v2515
  %3011 = vst [vmem:[%s2940] ss:$9 sm:$0xff] %v2516
  %3012 = vst [vmem:[%s2942] ss:$9 sm:$0xff] %v2517
  %3013 = vst [vmem:[%s2944] ss:$9 sm:$0xff] %v2518
  %v3014 = vld [vmem:[#allocation1] sm:$0xff]
  %3015 = vst [vmem:[#allocation1] ss:$9 sm:$0xff] %v2519
  %3016 = vst [vmem:[%s2932] ss:$9 sm:$0xff] %v2520
  %3017 = vst [vmem:[%s2934] ss:$9 sm:$0xff] %v2521
  %3018 = vst [vmem:[%s2936] ss:$9 sm:$0xff] %v2522
  %3019 = vst [vmem:[%s2938] ss:$9 sm:$0xff] %v2523
  %3020 = vst [vmem:[%s2940] ss:$9 sm:$0xff] %v2524
  %3021 = vst [vmem:[%s2942] ss:$9 sm:$0xff] %v2525
  %v3022 = vld [vmem:[#allocation1] sm:$0xff]
  %3023 = vst [vmem:[#allocation1] ss:$9 sm:$0xff] %v2526
  %3024 = vst [vmem:[%s2932] ss:$9 sm:$0xff] %v2527
  %3025 = vst [vmem:[%s2934] ss:$9 sm:$0xff] %v2528
  %3026 = vst [vmem:[%s2936] ss:$9 sm:$0xff] %v2529
  %3027 = vst [vmem:[%s2938] ss:$9 sm:$0xff] %v2530
  %3028 = vst [vmem:[%s2940] ss:$9 sm:$0xff] %v2531
  %3029 = vst [vmem:[%s2942] ss:$9 sm:$0xff] %v2532
  %3030 = vst [vmem:[%s2944] ss:$9 sm:$0xff] %v2533
  %v3031 = vld [vmem:[#allocation1] sm:$0xff]
  %3032 = vst [vmem:[#allocation1] ss:$9 sm:$0xff] %v2534
  %3033 = vst [vmem:[%s2932] ss:$9 sm:$0xff] %v2535
  %3034 = vst [vmem:[%s2934] ss:$9 sm:$0xff] %v2536
  %3035 = vst [vmem:[%s2936] ss:$9 sm:$0xff] %v2537
  %3036 = vst [vmem:[%s2938] ss:$9 sm:$0xff] %v2538
  %3037 = vst [vmem:[%s2940] ss:$9 sm:$0xff] %v2539
  %3038 = vst [vmem:[%s2942] ss:$9 sm:$0xff] %v2540
  %v3039 = vld [vmem:[#allocation1] sm:$0xff]
  %3040 = vst [vmem:[#allocation1] ss:$9 sm:$0xff] %v2541
  %3041 = vst [vmem:[%s2932] ss:$9 sm:$0xff] %v2542
  %3042 = vst [vmem:[%s2934] ss:$9 sm:$0xff] %v2543
  %3043 = vst [vmem:[%s2936] ss:$9 sm:$0xff] %v2544
  %3044 = vst [vmem:[%s2938] ss:$9 sm:$0xff] %v2545
  %3045 = vst [vmem:[%s2940] ss:$9 sm:$0xff] %v2546
  %3046 = vst [vmem:[%s2942] ss:$9 sm:$0xff] %v2547
  %3047 = vst [vmem:[%s2944] ss:$9 sm:$0xff] %v2548
  %v3048 = vld [vmem:[#allocation1] sm:$0xff]
  %3049 = vst [vmem:[#allocation1] ss:$9 sm:$0xff] %v2549
  %3050 = vst [vmem:[%s2932] ss:$9 sm:$0xff] %v2550
  %3051 = vst [vmem:[%s2934] ss:$9 sm:$0xff] %v2551
  %3052 = vst [vmem:[%s2936] ss:$9 sm:$0xff] %v2552
  %3053 = vst [vmem:[%s2938] ss:$9 sm:$0xff] %v2553
  %3054 = vst [vmem:[%s2940] ss:$9 sm:$0xff] %v2554
  %3055 = vst [vmem:[%s2942] ss:$9 sm:$0xff] %v2555
  %v3056 = vld [vmem:[#allocation1] sm:$0xff]
  %3057 = vst [vmem:[#allocation1] ss:$9 sm:$0xff] %v2556
  %3058 = vst [vmem:[%s2932] ss:$9 sm:$0xff] %v2557
  %3059 = vst [vmem:[%s2934] ss:$9 sm:$0xff] %v2558
  %3060 = vst [vmem:[%s2936] ss:$9 sm:$0xff] %v2559
  %3061 = vst [vmem:[%s2938] ss:$9 sm:$0xff] %v2560
  %3062 = vst [vmem:[%s2940] ss:$9 sm:$0xff] %v2561
  %3063 = vst [vmem:[%s2942] ss:$9 sm:$0xff] %v2562
  %3064 = vst [vmem:[%s2944] ss:$9 sm:$0xff] %v2563
  %v3065 = vld [vmem:[#allocation1] sm:$0xff]
  %3066 = vst [vmem:[#allocation1] ss:$9 sm:$0xff] %v2564
  %3067 = vst [vmem:[%s2932] ss:$9 sm:$0xff] %v2565
  %3068 = vst [vmem:[%s2934] ss:$9 sm:$0xff] %v2566
  %3069 = vst [vmem:[%s2936] ss:$9 sm:$0xff] %v2567
  %3070 = vst [vmem:[%s2938] ss:$9 sm:$0xff] %v2568
  %3071 = vst [vmem:[%s2940] ss:$9 sm:$0xff] %v2569
  %3072 = vst [vmem:[%s2942] ss:$9 sm:$0xff] %v2570
  %v3073 = vld [vmem:[#allocation1] sm:$0xff]
  %3074 = vst [vmem:[#allocation1] ss:$9 sm:$0xff] %v2571
  %3075 = vst [vmem:[%s2932] ss:$9 sm:$0xff] %v2572
  %3076 = vst [vmem:[%s2934] ss:$9 sm:$0xff] %v2573
  %3077 = vst [vmem:[%s2936] ss:$9 sm:$0xff] %v2574
  %3078 = vst [vmem:[%s2938] ss:$9 sm:$0xff] %v2575
  %3079 = vst [vmem:[%s2940] ss:$9 sm:$0xff] %v2576
  %3080 = vst [vmem:[%s2942] ss:$9 sm:$0xff] %v2577
  %3081 = vst [vmem:[%s2944] ss:$9 sm:$0xff] %v2578
  %v3082 = vld [vmem:[#allocation1] sm:$0xff]
  %3083 = vst [vmem:[#allocation1] ss:$9 sm:$0xff] %v2579
  %3084 = vst [vmem:[%s2932] ss:$9 sm:$0xff] %v2580
  %3085 = vst [vmem:[%s2934] ss:$9 sm:$0xff] %v2581
  %3086 = vst [vmem:[%s2936] ss:$9 sm:$0xff] %v2582
  %3087 = vst [vmem:[%s2938] ss:$9 sm:$0xff] %v2583
  %3088 = vst [vmem:[%s2940] ss:$9 sm:$0xff] %v2584
  %3089 = vst [vmem:[%s2942] ss:$9 sm:$0xff] %v2585
  %v3090 = vld [vmem:[#allocation1] sm:$0xff]
  %3091 = vst [vmem:[#allocation1] ss:$9 sm:$0xff] %v2586
  %3092 = vst [vmem:[%s2932] ss:$9 sm:$0xff] %v2587
  %3093 = vst [vmem:[%s2934] ss:$9 sm:$0xff] %v2588
  %3094 = vst [vmem:[%s2936] ss:$9 sm:$0xff] %v2589
  %3095 = vst [vmem:[%s2938] ss:$9 sm:$0xff] %v2590
  %3096 = vst [vmem:[%s2940] ss:$9 sm:$0xff] %v2591
  %3097 = vst [vmem:[%s2942] ss:$9 sm:$0xff] %v2592
  %3098 = vst [vmem:[%s2944] ss:$9 sm:$0xff] %v2593
  %v3099 = vld [vmem:[#allocation1] sm:$0xff]
  %3100 = vst [vmem:[#allocation1] ss:$9 sm:$0xff] %v2594
  %3101 = vst [vmem:[%s2932] ss:$9 sm:$0xff] %v2595
  %3102 = vst [vmem:[%s2934] ss:$9 sm:$0xff] %v2596
  %3103 = vst [vmem:[%s2936] ss:$9 sm:$0xff] %v2597
  %3104 = vst [vmem:[%s2938] ss:$9 sm:$0xff] %v2598
  %3105 = vst [vmem:[%s2940] ss:$9 sm:$0xff] %v2599
  %3106 = vst [vmem:[%s2942] ss:$9 sm:$0xff] %v2600
  %v3107 = vld [vmem:[#allocation1] sm:$0xff]
  %3108 = vst [vmem:[#allocation1] ss:$9 sm:$0xff] %v2601
  %3109 = vst [vmem:[%s2932] ss:$9 sm:$0xff] %v2602
  %3110 = vst [vmem:[%s2934] ss:$9 sm:$0xff] %v2603
  %3111 = vst [vmem:[%s2936] ss:$9 sm:$0xff] %v2604
  %3112 = vst [vmem:[%s2938] ss:$9 sm:$0xff] %v2605
  %3113 = vst [vmem:[%s2940] ss:$9 sm:$0xff] %v2606
  %3114 = vst [vmem:[%s2942] ss:$9 sm:$0xff] %v2607
  %3115 = vst [vmem:[%s2944] ss:$9 sm:$0xff] %v2608
  %v3116 = vld [vmem:[#allocation1] sm:$0xff]
  %3117 = vst [vmem:[#allocation1] ss:$9 sm:$0xff] %v2609
  %3118 = vst [vmem:[%s2932] ss:$9 sm:$0xff] %v2610
  %3119 = vst [vmem:[%s2934] ss:$9 sm:$0xff] %v2611
  %3120 = vst [vmem:[%s2936] ss:$9 sm:$0xff] %v2612
  %3121 = vst [vmem:[%s2938] ss:$9 sm:$0xff] %v2613
  %3122 = vst [vmem:[%s2940] ss:$9 sm:$0xff] %v2614
  %3123 = vst [vmem:[%s2942] ss:$9 sm:$0xff] %v2615
  %v3124 = vld [vmem:[#allocation1] sm:$0xff]
  %3125 = vst [vmem:[#allocation1] ss:$9 sm:$0xff] %v2616
  %3126 = vst [vmem:[%s2932] ss:$9 sm:$0xff] %v2617
  %3127 = vst [vmem:[%s2934] ss:$9 sm:$0xff] %v2618
  %3128 = vst [vmem:[%s2936] ss:$9 sm:$0xff] %v2619
  %3129 = vst [vmem:[%s2938] ss:$9 sm:$0xff] %v2620
  %3130 = vst [vmem:[%s2940] ss:$9 sm:$0xff] %v2621
  %3131 = vst [vmem:[%s2942] ss:$9 sm:$0xff] %v2622
  %3132 = vst [vmem:[%s2944] ss:$9 sm:$0xff] %v2623
  %v3133 = vld [vmem:[#allocation1] sm:$0xff]
  %3134 = vst [vmem:[#allocation1] ss:$9 sm:$0xff] %v2624
  %3135 = vst [vmem:[%s2932] ss:$9 sm:$0xff] %v2625
  %3136 = vst [vmem:[%s2934] ss:$9 sm:$0xff] %v2626
  %3137 = vst [vmem:[%s2936] ss:$9 sm:$0xff] %v2627
  %3138 = vst [vmem:[%s2938] ss:$9 sm:$0xff] %v2628
  %3139 = vst [vmem:[%s2940] ss:$9 sm:$0xff] %v2629
  %3140 = vst [vmem:[%s2942] ss:$9 sm:$0xff] %v2630
  %v3141 = vld [vmem:[#allocation1] sm:$0xff]
  %3142 = vst [vmem:[#allocation1] ss:$9 sm:$0xff] %v2631
  %3143 = vst [vmem:[%s2932] ss:$9 sm:$0xff] %v2632
  %3144 = vst [vmem:[%s2934] ss:$9 sm:$0xff] %v2633
  %3145 = vst [vmem:[%s2936] ss:$9 sm:$0xff] %v2634
  %3146 = vst [vmem:[%s2938] ss:$9 sm:$0xff] %v2635
  %3147 = vst [vmem:[%s2940] ss:$9 sm:$0xff] %v2636
  %3148 = vst [vmem:[%s2942] ss:$9 sm:$0xff] %v2637
  %3149 = vst [vmem:[%s2944] ss:$9 sm:$0xff] %v2638
  %v3150 = vld [vmem:[#allocation1] sm:$0xff]
  %3151 = vst [vmem:[#allocation1] ss:$9 sm:$0xff] %v2639
  %3152 = vst [vmem:[%s2932] ss:$9 sm:$0xff] %v2640
  %3153 = vst [vmem:[%s2934] ss:$9 sm:$0xff] %v2641
  %3154 = vst [vmem:[%s2936] ss:$9 sm:$0xff] %v2642
  %3155 = vst [vmem:[%s2938] ss:$9 sm:$0xff] %v2643
  %3156 = vst [vmem:[%s2940] ss:$9 sm:$0xff] %v2644
  %3157 = vst [vmem:[%s2942] ss:$9 sm:$0xff] %v2645
  %v3158 = vld [vmem:[#allocation1] sm:$0xff]
  %3159 = vst [vmem:[#allocation1] ss:$9 sm:$0xff] %v2646
  %3160 = vst [vmem:[%s2932] ss:$9 sm:$0xff] %v2647
  %3161 = vst [vmem:[%s2934] ss:$9 sm:$0xff] %v2648
  %3162 = vst [vmem:[%s2936] ss:$9 sm:$0xff] %v2649
  %3163 = vst [vmem:[%s2938] ss:$9 sm:$0xff] %v2650
  %3164 = vst [vmem:[%s2940] ss:$9 sm:$0xff] %v2651
  %3165 = vst [vmem:[%s2942] ss:$9 sm:$0xff] %v2652
  %3166 = vst [vmem:[%s2944] ss:$9 sm:$0xff] %v2653
  %v3167 = vld [vmem:[#allocation1] sm:$0xff]
  %3168 = vst [vmem:[#allocation1] ss:$9 sm:$0xff] %v2654
  %3169 = vst [vmem:[%s2932] ss:$9 sm:$0xff] %v2655
  %3170 = vst [vmem:[%s2934] ss:$9 sm:$0xff] %v2656
  %3171 = vst [vmem:[%s2936] ss:$9 sm:$0xff] %v2657
  %3172 = vst [vmem:[%s2938] ss:$9 sm:$0xff] %v2658
  %3173 = vst [vmem:[%s2940] ss:$9 sm:$0xff] %v2659
  %3174 = vst [vmem:[%s2942] ss:$9 sm:$0xff] %v2660
  %v3175 = vld [vmem:[#allocation1] sm:$0xff]
  %3176 = vst [vmem:[#allocation1] ss:$9 sm:$0xff] %v2661
  %3177 = vst [vmem:[%s2932] ss:$9 sm:$0xff] %v2662
  %3178 = vst [vmem:[%s2934] ss:$9 sm:$0xff] %v2663
  %3179 = vst [vmem:[%s2936] ss:$9 sm:$0xff] %v2664
  %3180 = vst [vmem:[%s2938] ss:$9 sm:$0xff] %v2665
  %3181 = vst [vmem:[%s2940] ss:$9 sm:$0xff] %v2666
  %3182 = vst [vmem:[%s2942] ss:$9 sm:$0xff] %v2667
  %3183 = vst [vmem:[%s2944] ss:$9 sm:$0xff] %v2668
  %v3184 = vld [vmem:[#allocation1] sm:$0xff]
  %3185 = vst [vmem:[#allocation1] ss:$9 sm:$0xff] %v2669
  %3186 = vst [vmem:[%s2932] ss:$9 sm:$0xff] %v2670
  %3187 = vst [vmem:[%s2934] ss:$9 sm:$0xff] %v2671
  %3188 = vst [vmem:[%s2936] ss:$9 sm:$0xff] %v2672
  %3189 = vst [vmem:[%s2938] ss:$9 sm:$0xff] %v2673
  %3190 = vst [vmem:[%s2940] ss:$9 sm:$0xff] %v2674
  %3191 = vst [vmem:[%s2942] ss:$9 sm:$0xff] %v2675
  %v3192 = vld [vmem:[#allocation1] sm:$0xff]
  %3193 = vst [vmem:[#allocation1] ss:$9 sm:$0xff] %v2676
  %3194 = vst [vmem:[%s2932] ss:$9 sm:$0xff] %v2677
  %3195 = vst [vmem:[%s2934] ss:$9 sm:$0xff] %v2678
  %3196 = vst [vmem:[%s2936] ss:$9 sm:$0xff] %v2679
  %3197 = vst [vmem:[%s2938] ss:$9 sm:$0xff] %v2680
  %3198 = vst [vmem:[%s2940] ss:$9 sm:$0xff] %v2681
  %3199 = vst [vmem:[%s2942] ss:$9 sm:$0xff] %v2682
  %3200 = vst [vmem:[%s2944] ss:$9 sm:$0xff] %v2683
  %v3201 = vld [vmem:[#allocation1] sm:$0xff]
  %3202 = vst [vmem:[#allocation1] ss:$9 sm:$0xff] %v2684
  %3203 = vst [vmem:[%s2932] ss:$9 sm:$0xff] %v2685
  %3204 = vst [vmem:[%s2934] ss:$9 sm:$0xff] %v2686
  %3205 = vst [vmem:[%s2936] ss:$9 sm:$0xff] %v2687
  %3206 = vst [vmem:[%s2938] ss:$9 sm:$0xff] %v2688
  %3207 = vst [vmem:[%s2940] ss:$9 sm:$0xff] %v2689
  %3208 = vst [vmem:[%s2942] ss:$9 sm:$0xff] %v2690
  %v3209 = vld [vmem:[#allocation1] sm:$0xff]
  %vm3242 = vcmask 130048
  %v3243 = vsel %vm3242, %v2946, -inf
  %vm3244 = vcmask 129024
  %v3245 = vsel %vm3244, %v2954, -inf
  %v3246 = vmax.f32 %v3243, %v3245
  %v3247 = vrot.slane %v3246, 4
  %v3248 = vmax.f32 %v3246, %v3247
  %v3249 = vrot.slane %v3248, 2
  %v3250 = vmax.f32 %v3248, %v3249
  %v3251 = vrot.slane %v3250, 1
  %v3252 = vmax.f32 %v3250, %v3251
  %v3253 = vsel %vm3242, %v2963, -inf
  %v3254 = vsel %vm3244, %v2971, -inf
  %v3255 = vmax.f32 %v3253, %v3254
  %v3256 = vrot.slane %v3255, 4
  %v3257 = vmax.f32 %v3255, %v3256
  %v3258 = vrot.slane %v3257, 2
  %v3259 = vmax.f32 %v3257, %v3258
  %v3260 = vrot.slane %v3259, 1
  %v3261 = vmax.f32 %v3259, %v3260
  %v3262 = vsel %vm3242, %v2980, -inf
  %v3263 = vsel %vm3244, %v2988, -inf
  %v3264 = vmax.f32 %v3262, %v3263
  %v3265 = vrot.slane %v3264, 4
  %v3266 = vmax.f32 %v3264, %v3265
  %v3267 = vrot.slane %v3266, 2
  %v3268 = vmax.f32 %v3266, %v3267
  %v3269 = vrot.slane %v3268, 1
  %v3270 = vmax.f32 %v3268, %v3269
  %v3271 = vsel %vm3242, %v2997, -inf
  %v3272 = vsel %vm3244, %v3005, -inf
  %v3273 = vmax.f32 %v3271, %v3272
  %v3274 = vrot.slane %v3273, 4
  %v3275 = vmax.f32 %v3273, %v3274
  %v3276 = vrot.slane %v3275, 2
  %v3277 = vmax.f32 %v3275, %v3276
  %v3278 = vrot.slane %v3277, 1
  %v3279 = vmax.f32 %v3277, %v3278
  %v3280 = vsel %vm3242, %v3014, -inf
  %v3281 = vsel %vm3244, %v3022, -inf
  %v3282 = vmax.f32 %v3280, %v3281
  %v3283 = vrot.slane %v3282, 4
  %v3284 = vmax.f32 %v3282, %v3283
  %v3285 = vrot.slane %v3284, 2
  %v3286 = vmax.f32 %v3284, %v3285
  %v3287 = vrot.slane %v3286, 1
  %v3288 = vmax.f32 %v3286, %v3287
  %v3289 = vsel %vm3242, %v3031, -inf
  %v3290 = vsel %vm3244, %v3039, -inf
  %v3291 = vmax.f32 %v3289, %v3290
  %v3292 = vrot.slane %v3291, 4
  %v3293 = vmax.f32 %v3291, %v3292
  %v3294 = vrot.slane %v3293, 2
  %v3295 = vmax.f32 %v3293, %v3294
  %v3296 = vrot.slane %v3295, 1
  %v3297 = vmax.f32 %v3295, %v3296
  %v3298 = vsel %vm3242, %v3048, -inf
  %v3299 = vsel %vm3244, %v3056, -inf
  %v3300 = vmax.f32 %v3298, %v3299
  %v3301 = vrot.slane %v3300, 4
  %v3302 = vmax.f32 %v3300, %v3301
  %v3303 = vrot.slane %v3302, 2
  %v3304 = vmax.f32 %v3302, %v3303
  %v3305 = vrot.slane %v3304, 1
  %v3306 = vmax.f32 %v3304, %v3305
  %v3307 = vsel %vm3242, %v3065, -inf
  %v3308 = vsel %vm3244, %v3073, -inf
  %v3309 = vmax.f32 %v3307, %v3308
  %v3310 = vrot.slane %v3309, 4
  %v3311 = vmax.f32 %v3309, %v3310
  %v3312 = vrot.slane %v3311, 2
  %v3313 = vmax.f32 %v3311, %v3312
  %v3314 = vrot.slane %v3313, 1
  %v3315 = vmax.f32 %v3313, %v3314
  %v3316 = vsel %vm3242, %v3082, -inf
  %v3317 = vsel %vm3244, %v3090, -inf
  %v3318 = vmax.f32 %v3316, %v3317
  %v3319 = vrot.slane %v3318, 4
  %v3320 = vmax.f32 %v3318, %v3319
  %v3321 = vrot.slane %v3320, 2
  %v3322 = vmax.f32 %v3320, %v3321
  %v3323 = vrot.slane %v3322, 1
  %v3324 = vmax.f32 %v3322, %v3323
  %v3325 = vsel %vm3242, %v3099, -inf
  %v3326 = vsel %vm3244, %v3107, -inf
  %v3327 = vmax.f32 %v3325, %v3326
  %v3328 = vrot.slane %v3327, 4
  %v3329 = vmax.f32 %v3327, %v3328
  %v3330 = vrot.slane %v3329, 2
  %v3331 = vmax.f32 %v3329, %v3330
  %v3332 = vrot.slane %v3331, 1
  %v3333 = vmax.f32 %v3331, %v3332
  %v3334 = vsel %vm3242, %v3116, -inf
  %v3335 = vsel %vm3244, %v3124, -inf
  %v3336 = vmax.f32 %v3334, %v3335
  %v3337 = vrot.slane %v3336, 4
  %v3338 = vmax.f32 %v3336, %v3337
  %v3339 = vrot.slane %v3338, 2
  %v3340 = vmax.f32 %v3338, %v3339
  %v3341 = vrot.slane %v3340, 1
  %v3342 = vmax.f32 %v3340, %v3341
  %v3343 = vsel %vm3242, %v3133, -inf
  %v3344 = vsel %vm3244, %v3141, -inf
  %v3345 = vmax.f32 %v3343, %v3344
  %v3346 = vrot.slane %v3345, 4
  %v3347 = vmax.f32 %v3345, %v3346
  %v3348 = vrot.slane %v3347, 2
  %v3349 = vmax.f32 %v3347, %v3348
  %v3350 = vrot.slane %v3349, 1
  %v3351 = vmax.f32 %v3349, %v3350
  %v3352 = vsel %vm3242, %v3150, -inf
  %v3353 = vsel %vm3244, %v3158, -inf
  %v3354 = vmax.f32 %v3352, %v3353
  %v3355 = vrot.slane %v3354, 4
  %v3356 = vmax.f32 %v3354, %v3355
  %v3357 = vrot.slane %v3356, 2
  %v3358 = vmax.f32 %v3356, %v3357
  %v3359 = vrot.slane %v3358, 1
  %v3360 = vmax.f32 %v3358, %v3359
  %v3361 = vsel %vm3242, %v3167, -inf
  %v3362 = vsel %vm3244, %v3175, -inf
  %v3363 = vmax.f32 %v3361, %v3362
  %v3364 = vrot.slane %v3363, 4
  %v3365 = vmax.f32 %v3363, %v3364
  %v3366 = vrot.slane %v3365, 2
  %v3367 = vmax.f32 %v3365, %v3366
  %v3368 = vrot.slane %v3367, 1
  %v3369 = vmax.f32 %v3367, %v3368
  %v3370 = vsel %vm3242, %v3184, -inf
  %v3371 = vsel %vm3244, %v3192, -inf
  %v3372 = vmax.f32 %v3370, %v3371
  %v3373 = vrot.slane %v3372, 4
  %v3374 = vmax.f32 %v3372, %v3373
  %v3375 = vrot.slane %v3374, 2
  %v3376 = vmax.f32 %v3374, %v3375
  %v3377 = vrot.slane %v3376, 1
  %v3378 = vmax.f32 %v3376, %v3377
  %v3379 = vsel %vm3242, %v3201, -inf
  %v3380 = vsel %vm3244, %v3209, -inf
  %v3381 = vmax.f32 %v3379, %v3380
  %v3382 = vrot.slane %v3381, 4
  %v3383 = vmax.f32 %v3381, %v3382
  %v3384 = vrot.slane %v3383, 2
  %v3385 = vmax.f32 %v3383, %v3384
  %v3386 = vrot.slane %v3385, 1
  %v3387 = vmax.f32 %v3385, %v3386
  %vm3404 = vcmask 1041409
  %v3405 = vsel %vm3404, %v3261, %v3252
  %vm3406 = vcmask 1042434
  %v3407 = vsel %vm3406, %v3270, %v3405
  %vm3408 = vcmask 1043459
  %v3409 = vsel %vm3408, %v3279, %v3407
  %vm3410 = vcmask 1044484
  %v3411 = vsel %vm3410, %v3288, %v3409
  %vm3412 = vcmask 1045509
  %v3413 = vsel %vm3412, %v3297, %v3411
  %vm3414 = vcmask 1046534
  %v3415 = vsel %vm3414, %v3306, %v3413
  %vm3416 = vcmask 1047559
  %v3417 = vsel %vm3416, %v3315, %v3415
  %v3418 = vsel %vm3404, %v3333, %v3324
  %v3419 = vsel %vm3406, %v3342, %v3418
  %v3420 = vsel %vm3408, %v3351, %v3419
  %v3421 = vsel %vm3410, %v3360, %v3420
  %v3422 = vsel %vm3412, %v3369, %v3421
  %v3423 = vsel %vm3414, %v3378, %v3422
  %v3424 = vsel %vm3416, %v3387, %v3423
  %3427 = vst.msk [vmem:[%s4] sm:$0xff] %vm3242, %v3417
  %3428 = vst.msk [vmem:[%s4 + $0x8] sm:$0xff] %vm3242, %v3424
  // Predicated region
  $region18: #{run.4} parent=0 // pred_check
    _
  $region19: #{run.4} parent=0 // pred_check_branch
    %3430 = sbr.rel (0) target = $region21
  $region20: #{run.4} parent=0 // pred_region
    _
  $region21: #{run.4} parent=0 // pred_fallthru
    _
  // Predicated region
  $region22: #{run.4} parent=0 // pred_check
    _
  $region23: #{run.4} parent=0 // pred_check_branch
    %3432 = sbr.rel (0) target = $region25
  $region24: #{run.4} parent=0 // pred_region
    _
  $region25: #{run.4} parent=0 // pred_fallthru
    _

</llo_original>
